<compile_context>
chip_gen: v6e
topology: v6e:2x2x1
jax: 0.10.0
libtpu: 0.0.40
codegen_flags: <defaults>
</compile_context>

<pallas_src>
import functools

import jax
import jax.numpy as jnp
from jax.experimental import pallas as pl
from jax.experimental.pallas import tpu as pltpu


# ----------------------------------------------------------------------------
# Kernel 1: one full EncoderLayer forward for a single batch element.
# ----------------------------------------------------------------------------
def _encoder_kernel(n_heads, head_dim, ln_eps,
                    # inputs
                    x_ref,
                    wq_ref, bq_ref, wk_ref, bk_ref, wv_ref, bv_ref,
                    wo_ref, bo_ref,
                    rk_ref, rv_ref,
                    ln1_g_ref, ln1_b_ref,
                    w1_ref, b1_ref, w2_ref, b2_ref,
                    ln2_g_ref, ln2_b_ref,
                    # outputs
                    out_ref,
                    # scratch
                    q3_ref, k3_ref, v3_ref, qt_ref, sq_ref, ah_ref, ctx_ref):
    f32 = jnp.float32
    bf16 = jnp.bfloat16

    x = x_ref[0]                                        # (L, H) f32
    L, H = x.shape
    inv_scale = float(head_dim) ** -0.5

    # --- fused QKV projections: three full-width (L,H) x (H,H) MXU matmuls ---
    xb = x.astype(bf16)
    q = jnp.dot(xb, wq_ref[...], preferred_element_type=f32) + bq_ref[...]
    k = jnp.dot(xb, wk_ref[...], preferred_element_type=f32) + bk_ref[...]
    v = jnp.dot(xb, wv_ref[...], preferred_element_type=f32) + bv_ref[...]
    q = q * inv_scale        # fold 1/sqrt(head_dim) into q once (scales attn1 & attn2)

    # split heads into scratch (layout shuffle only; matmuls stay head-batched)
    for h in range(n_heads):
        lo = h * head_dim
        q_h = q[:, lo:lo + head_dim]
        q3_ref[h] = q_h                                  # (nh, L, hd) head-major
        qt_ref[:, h, :] = q_h                            # (L, nh, hd) query-major
        k3_ref[h] = k[:, lo:lo + head_dim]
        v3_ref[h] = v[:, lo:lo + head_dim]

    q3 = q3_ref[...].astype(bf16)
    k3 = k3_ref[...].astype(bf16)
    v3 = v3_ref[...].astype(bf16)

    # --- attention scores ---
    # content term: batched over heads (MXU)
    attn1 = jnp.einsum('hqd,hkd->hqk', q3, k3, preferred_element_type=f32)    # (nh,L,L)
    # relative-position K term: batched over query positions (MXU)
    attn2 = jnp.einsum('qhd,qkd->qhk', qt_ref[...].astype(bf16), rk_ref[...],
                       preferred_element_type=f32)                            # (L,nh,L)

    for h in range(n_heads):                             # bring attn1 to query-major
        sq_ref[:, h, :] = attn1[h]

    # --- softmax (f32), query-major layout (L, nh, L) ---
    s = sq_ref[...] + attn2
    s = s - jnp.max(s, axis=-1, keepdims=True)
    e = jnp.exp(s)
    a = e * pl.reciprocal(jnp.sum(e, axis=-1, keepdims=True), approx=True)

    # --- attention outputs ---
    # relative-position V term: batched over query positions (MXU)
    o2q = jnp.einsum('qhk,qkd->qhd', a.astype(bf16), rv_ref[...],
                     preferred_element_type=f32)                              # (L,nh,hd)

    for h in range(n_heads):                             # probabilities, head-major
        ah_ref[h] = a[:, h, :]

    # content term: batched over heads (MXU)
    o1h = jnp.einsum('hqk,hkd->hqd', ah_ref[...].astype(bf16), v3,
                     preferred_element_type=f32)                              # (nh,L,hd)

    for h in range(n_heads):                             # combine the two terms
        ctx_ref[h] = o1h[h] + o2q[:, h, :]

    # output projection: per-head (hd, H) blocks of Wo, summed over heads
    # (equivalent to concat(heads) @ Wo, without a lane-merging reshape)
    attn_out = jnp.einsum('hqd,hde->hqe', ctx_ref[...].astype(bf16), wo_ref[...],
                          preferred_element_type=f32)
    attn_out = jnp.sum(attn_out, axis=0) + bo_ref[...]                        # (L, H)

    # --- residual + LayerNorm 1 (f32) ---
    h1 = x + attn_out
    mu1 = jnp.mean(h1, axis=-1, keepdims=True)
    var1 = jnp.mean((h1 - mu1) ** 2, axis=-1, keepdims=True)
    h1 = (h1 - mu1) * jax.lax.rsqrt(var1 + ln_eps) * ln1_g_ref[...] + ln1_b_ref[...]

    # --- positionwise feed-forward (bf16 matmuls, f32 accumulation) ---
    ff = jnp.dot(h1.astype(bf16), w1_ref[...], preferred_element_type=f32) + b1_ref[...]
    ff = jnp.maximum(ff, 0.0)
    ff = jnp.dot(ff.astype(bf16), w2_ref[...], preferred_element_type=f32) + b2_ref[...]

    # --- residual + LayerNorm 2 (f32) ---
    h2 = h1 + ff
    mu2 = jnp.mean(h2, axis=-1, keepdims=True)
    var2 = jnp.mean((h2 - mu2) ** 2, axis=-1, keepdims=True)
    out_ref[0] = (h2 - mu2) * jax.lax.rsqrt(var2 + ln_eps) * ln2_g_ref[...] + ln2_b_ref[...]


# ----------------------------------------------------------------------------
# Kernel 2: ConvTranspose1d(k=4, s=2, p=1) + fused BatchNorm1d (batch stats).
#   4 full-size matmuls + shifted adds; BN stats computed in-register and the
#   normalized result stored once (no output round trip).
#   even rows -> output positions t = 2j, odd rows -> t = 2j + 1.
# ----------------------------------------------------------------------------
def _deconv_bn_kernel(seq_len, bn_eps, x_ref, w_ref, b_ref, g_ref, beta_ref,
                      even_ref, odd_ref):
    f32 = jnp.float32
    xb = x_ref[...].astype(jnp.bfloat16)                 # (N, H), N = B * L
    N = xb.shape[0]
    O = w_ref.shape[2]

    # one MXU matmul per deconv tap
    y0 = jnp.dot(xb, w_ref[0], preferred_element_type=f32)
    y1 = jnp.dot(xb, w_ref[1], preferred_element_type=f32)
    y2 = jnp.dot(xb, w_ref[2], preferred_element_type=f32)
    y3 = jnp.dot(xb, w_ref[3], preferred_element_type=f32)

    # shifted adds; shifts must not cross a batch-element boundary
    row = jax.lax.broadcasted_iota(jnp.int32, (N, 1), 0)
    not_first = (row % seq_len) != 0
    not_last = (row % seq_len) != (seq_len - 1)
    zrow = jnp.zeros((1, O), f32)
    y3_prev = jnp.where(not_first, jnp.concatenate([zrow, y3[:N - 1, :]], axis=0), 0.0)
    y0_next = jnp.where(not_last, jnp.concatenate([y0[1:, :], zrow], axis=0), 0.0)

    bias = b_ref[...]                                    # (1, O)
    even = y1 + y3_prev + bias                           # t = 2j      (taps k=1, k=3)
    odd = y2 + y0_next + bias                            # t = 2j + 1  (taps k=2, k=0)

    # fused BatchNorm1d over (batch, time) per channel, biased variance
    inv_cnt = 1.0 / float(2 * N)
    mu = (jnp.sum(even, axis=0, keepdims=True)
          + jnp.sum(odd, axis=0, keepdims=True)) * inv_cnt
    de = even - mu
    do = odd - mu
    var = (jnp.sum(de * de, axis=0, keepdims=True)
           + jnp.sum(do * do, axis=0, keepdims=True)) * inv_cnt
    inv = jax.lax.rsqrt(var + bn_eps) * g_ref[...]
    even_ref[...] = de * inv + beta_ref[...]
    odd_ref[...] = do * inv + beta_ref[...]


# ----------------------------------------------------------------------------
# Glue: parameter init, relative-position tables, pallas_call wrappers.
# ----------------------------------------------------------------------------
def _rel_embeddings(table, length, max_rel):
    r = jnp.arange(length)
    dist = r[None, :] - r[:, None]
    idx = jnp.clip(dist, -max_rel, max_rel) + max_rel
    return table[idx]                                    # (L, L, head_dim)


def init_params(key, hid_dim, n_heads, pos_ff_dim, out_dim, max_rel=64):
    head_dim = hid_dim // n_heads
    ks = jax.random.split(key, 16)

    def xavier(k, shape):
        fan_in, fan_out = shape[0], shape[-1]
        lim = jnp.sqrt(6.0 / (fan_in + fan_out))
        return jax.random.uniform(k, shape, jnp.float32, -lim, lim)

    def bias(k, n, fan_in):
        lim = 1.0 / jnp.sqrt(float(fan_in))
        return jax.random.uniform(k, (1, n), jnp.float32, -lim, lim)

    p = {
        "wq": xavier(ks[0], (hid_dim, hid_dim)), "bq": bias(ks[1], hid_dim, hid_dim),
        "wk": xavier(ks[2], (hid_dim, hid_dim)), "bk": bias(ks[3], hid_dim, hid_dim),
        "wv": xavier(ks[4], (hid_dim, hid_dim)), "bv": bias(ks[5], hid_dim, hid_dim),
        "wo": xavier(ks[6], (hid_dim, hid_dim)), "bo": bias(ks[7], hid_dim, hid_dim),
        "rel_k_table": xavier(ks[8], (2 * max_rel + 1, head_dim)),
        "rel_v_table": xavier(ks[9], (2 * max_rel + 1, head_dim)),
        "ln1_g": jnp.ones((1, hid_dim), jnp.float32), "ln1_b": jnp.zeros((1, hid_dim), jnp.float32),
        "w1": xavier(ks[10], (hid_dim, pos_ff_dim)), "b1": bias(ks[11], pos_ff_dim, hid_dim),
        "w2": xavier(ks[12], (pos_ff_dim, hid_dim)), "b2": bias(ks[13], hid_dim, pos_ff_dim),
        "ln2_g": jnp.ones((1, hid_dim), jnp.float32), "ln2_b": jnp.zeros((1, hid_dim), jnp.float32),
        # ConvTranspose1d weight, per-tap: (kernel=4, in=hid, out=out_dim)
        "deconv_w": xavier(ks[14], (hid_dim, out_dim, 4)).transpose(2, 0, 1),
        "deconv_b": bias(ks[15], out_dim, hid_dim * 4),
        "bn_g": jnp.ones((1, out_dim), jnp.float32), "bn_b": jnp.zeros((1, out_dim), jnp.float32),
        "max_rel": max_rel,
    }
    return p


def decoder_layer_forward(x, params, *, n_heads, upsample=True):
    B, L, H = x.shape
    head_dim = H // n_heads
    bf16 = jnp.bfloat16

    rk = _rel_embeddings(params["rel_k_table"], L, params["max_rel"]).astype(bf16)
    rv = _rel_embeddings(params["rel_v_table"], L, params["max_rel"]).astype(bf16)

    weights = [
        params["wq"].astype(bf16), params["bq"],
        params["wk"].astype(bf16), params["bk"],
        params["wv"].astype(bf16), params["bv"],
        params["wo"].reshape(n_heads, head_dim, H).astype(bf16), params["bo"],
        rk, rv,
        params["ln1_g"], params["ln1_b"],
        params["w1"].astype(bf16), params["b1"],
        params["w2"].astype(bf16), params["b2"],
        params["ln2_g"], params["ln2_b"],
    ]

    def full_spec(shape):
        nd = len(shape)
        return pl.BlockSpec(shape, lambda b, nd=nd: (0,) * nd)

    enc = pl.pallas_call(
        functools.partial(_encoder_kernel, n_heads, head_dim, 1e-5),
        out_shape=jax.ShapeDtypeStruct((B, L, H), jnp.float32),
        grid=(B,),
        in_specs=[pl.BlockSpec((1, L, H), lambda b: (b, 0, 0))]
                 + [full_spec(tuple(w.shape)) for w in weights],
        out_specs=pl.BlockSpec((1, L, H), lambda b: (b, 0, 0)),
        scratch_shapes=[
            pltpu.VMEM((n_heads, L, head_dim), jnp.float32),   # q, head-major
            pltpu.VMEM((n_heads, L, head_dim), jnp.float32),   # k, head-major
            pltpu.VMEM((n_heads, L, head_dim), jnp.float32),   # v, head-major
            pltpu.VMEM((L, n_heads, head_dim), jnp.float32),   # q, query-major
            pltpu.VMEM((L, n_heads, L), jnp.float32),          # content scores, query-major
            pltpu.VMEM((n_heads, L, L), jnp.float32),          # probabilities, head-major
            pltpu.VMEM((n_heads, L, head_dim), jnp.float32),   # combined context
        ],
        compiler_params=pltpu.CompilerParams(
            dimension_semantics=("parallel",),
            vmem_limit_bytes=32 * 1024 * 1024),
    )(x, *weights)

    if not upsample:
        return enc

    out_dim = params["deconv_w"].shape[2]
    even, odd = pl.pallas_call(
        functools.partial(_deconv_bn_kernel, L, 1e-5),
        out_shape=(jax.ShapeDtypeStruct((B * L, out_dim), jnp.float32),
                   jax.ShapeDtypeStruct((B * L, out_dim), jnp.float32)),
        in_specs=[pl.BlockSpec(memory_space=pltpu.MemorySpace.VMEM)] * 5,
        out_specs=(pl.BlockSpec(memory_space=pltpu.MemorySpace.VMEM),
                   pl.BlockSpec(memory_space=pltpu.MemorySpace.VMEM)),
        compiler_params=pltpu.CompilerParams(vmem_limit_bytes=32 * 1024 * 1024),
    )(enc.reshape(B * L, H),
      params["deconv_w"].astype(bf16), params["deconv_b"],
      params["bn_g"], params["bn_b"])

    # interleave even (t = 2j) / odd (t = 2j + 1) along the time axis
    out = jnp.stack(
        [even.reshape(B, L, out_dim), odd.reshape(B, L, out_dim)], axis=2
    ).reshape(B, 2 * L, out_dim)
    return out


if __name__ == "__main__":
    B, L = 2, 8
    hid_dim, n_heads, pos_ff_dim, out_dim = 32, 4, 64, 16

    key = jax.random.PRNGKey(0)
    pkey, xkey = jax.random.split(key)
    params = init_params(pkey, hid_dim, n_heads, pos_ff_dim, out_dim)
    x = jax.random.normal(xkey, (B, L, hid_dim), jnp.float32)

    y = decoder_layer_forward(x, params, n_heads=n_heads, upsample=True)
    y = jax.block_until_ready(y)

    assert y.shape == (B, 2 * L, out_dim), y.shape
    assert bool(jnp.all(jnp.isfinite(y)))
    print("KERNEL_OK")
</pallas_src>

<mosaic_0001>
module attributes {stable_mosaic.version = 11 : i64} {
  func.func @_encoder_kernel(%arg0: i32, %arg1: memref<1x8x32xf32, #tpu.memory_space<vmem>>, %arg2: memref<32x32xbf16, #tpu.memory_space<vmem>>, %arg3: memref<1x32xf32, #tpu.memory_space<vmem>>, %arg4: memref<32x32xbf16, #tpu.memory_space<vmem>>, %arg5: memref<1x32xf32, #tpu.memory_space<vmem>>, %arg6: memref<32x32xbf16, #tpu.memory_space<vmem>>, %arg7: memref<1x32xf32, #tpu.memory_space<vmem>>, %arg8: memref<4x8x32xbf16, #tpu.memory_space<vmem>>, %arg9: memref<1x32xf32, #tpu.memory_space<vmem>>, %arg10: memref<8x8x8xbf16, #tpu.memory_space<vmem>>, %arg11: memref<8x8x8xbf16, #tpu.memory_space<vmem>>, %arg12: memref<1x32xf32, #tpu.memory_space<vmem>>, %arg13: memref<1x32xf32, #tpu.memory_space<vmem>>, %arg14: memref<32x64xbf16, #tpu.memory_space<vmem>>, %arg15: memref<1x64xf32, #tpu.memory_space<vmem>>, %arg16: memref<64x32xbf16, #tpu.memory_space<vmem>>, %arg17: memref<1x32xf32, #tpu.memory_space<vmem>>, %arg18: memref<1x32xf32, #tpu.memory_space<vmem>>, %arg19: memref<1x32xf32, #tpu.memory_space<vmem>>, %arg20: memref<1x8x32xf32, #tpu.memory_space<vmem>>, %arg21: memref<4x8x8xf32, #tpu.memory_space<vmem>>, %arg22: memref<4x8x8xf32, #tpu.memory_space<vmem>>, %arg23: memref<4x8x8xf32, #tpu.memory_space<vmem>>, %arg24: memref<8x4x8xf32, #tpu.memory_space<vmem>>, %arg25: memref<8x4x8xf32, #tpu.memory_space<vmem>>, %arg26: memref<4x8x8xf32, #tpu.memory_space<vmem>>, %arg27: memref<4x8x8xf32, #tpu.memory_space<vmem>>) attributes {dimension_semantics = [#tpu.dimension_semantics<parallel>], iteration_bounds = array<i64: 2>, scalar_prefetch = 0 : i64, scratch_operands = 7 : i64, tpu.core_type = #tpu.core_type<tc>, window_params = [{transform_indices = @transform_0, window_bounds = array<i64: 1, 8, 32>}, {pipeline_mode = #tpu.pipeline_mode<synchronous>, transform_indices = @transform_1, window_bounds = array<i64: 32, 32>}, {pipeline_mode = #tpu.pipeline_mode<synchronous>, transform_indices = @transform_2, window_bounds = array<i64: 1, 32>}, {pipeline_mode = #tpu.pipeline_mode<synchronous>, transform_indices = @transform_3, window_bounds = array<i64: 32, 32>}, {pipeline_mode = #tpu.pipeline_mode<synchronous>, transform_indices = @transform_4, window_bounds = array<i64: 1, 32>}, {pipeline_mode = #tpu.pipeline_mode<synchronous>, transform_indices = @transform_5, window_bounds = array<i64: 32, 32>}, {pipeline_mode = #tpu.pipeline_mode<synchronous>, transform_indices = @transform_6, window_bounds = array<i64: 1, 32>}, {pipeline_mode = #tpu.pipeline_mode<synchronous>, transform_indices = @transform_7, window_bounds = array<i64: 4, 8, 32>}, {pipeline_mode = #tpu.pipeline_mode<synchronous>, transform_indices = @transform_8, window_bounds = array<i64: 1, 32>}, {pipeline_mode = #tpu.pipeline_mode<synchronous>, transform_indices = @transform_9, window_bounds = array<i64: 8, 8, 8>}, {pipeline_mode = #tpu.pipeline_mode<synchronous>, transform_indices = @transform_10, window_bounds = array<i64: 8, 8, 8>}, {pipeline_mode = #tpu.pipeline_mode<synchronous>, transform_indices = @transform_11, window_bounds = array<i64: 1, 32>}, {pipeline_mode = #tpu.pipeline_mode<synchronous>, transform_indices = @transform_12, window_bounds = array<i64: 1, 32>}, {pipeline_mode = #tpu.pipeline_mode<synchronous>, transform_indices = @transform_13, window_bounds = array<i64: 32, 64>}, {pipeline_mode = #tpu.pipeline_mode<synchronous>, transform_indices = @transform_14, window_bounds = array<i64: 1, 64>}, {pipeline_mode = #tpu.pipeline_mode<synchronous>, transform_indices = @transform_15, window_bounds = array<i64: 64, 32>}, {pipeline_mode = #tpu.pipeline_mode<synchronous>, transform_indices = @transform_16, window_bounds = array<i64: 1, 32>}, {pipeline_mode = #tpu.pipeline_mode<synchronous>, transform_indices = @transform_17, window_bounds = array<i64: 1, 32>}, {pipeline_mode = #tpu.pipeline_mode<synchronous>, transform_indices = @transform_18, window_bounds = array<i64: 1, 32>}, {transform_indices = @transform_19, window_bounds = array<i64: 1, 8, 32>}]} {
    %c0 = arith.constant 0 : index
    %c0_0 = arith.constant 0 : index
    %c0_1 = arith.constant 0 : index
    %0 = vector.load %arg1[%c0, %c0_0, %c0_1] : memref<1x8x32xf32, #tpu.memory_space<vmem>>, vector<1x8x32xf32>
    %1 = vector.shape_cast %0 : vector<1x8x32xf32> to vector<8x32xf32>
    %2 = arith.truncf %1 : vector<8x32xf32> to vector<8x32xbf16>
    %c0_2 = arith.constant 0 : index
    %c0_3 = arith.constant 0 : index
    %3 = vector.load %arg2[%c0_2, %c0_3] : memref<32x32xbf16, #tpu.memory_space<vmem>>, vector<32x32xbf16>
    %cst = arith.constant dense<0.000000e+00> : vector<8x32xf32>
    %4 = tpu.matmul %2, %3, %cst {dimension_numbers = #tpu.dot_dimension_numbers<[1], [0], [0], [1], [0, 0, 1, 1], [], []>} : vector<8x32xbf16>, vector<32x32xbf16>, vector<8x32xf32> -> vector<8x32xf32>
    %c0_4 = arith.constant 0 : index
    %c0_5 = arith.constant 0 : index
    %5 = vector.load %arg3[%c0_4, %c0_5] : memref<1x32xf32, #tpu.memory_space<vmem>>, vector<1x32xf32>
    %6 = vector.broadcast %5 : vector<1x32xf32> to vector<8x32xf32>
    %7 = arith.addf %4, %6 : vector<8x32xf32>
    %c0_6 = arith.constant 0 : index
    %c0_7 = arith.constant 0 : index
    %8 = vector.load %arg4[%c0_6, %c0_7] : memref<32x32xbf16, #tpu.memory_space<vmem>>, vector<32x32xbf16>
    %cst_8 = arith.constant dense<0.000000e+00> : vector<8x32xf32>
    %9 = tpu.matmul %2, %8, %cst_8 {dimension_numbers = #tpu.dot_dimension_numbers<[1], [0], [0], [1], [0, 0, 1, 1], [], []>} : vector<8x32xbf16>, vector<32x32xbf16>, vector<8x32xf32> -> vector<8x32xf32>
    %c0_9 = arith.constant 0 : index
    %c0_10 = arith.constant 0 : index
    %10 = vector.load %arg5[%c0_9, %c0_10] : memref<1x32xf32, #tpu.memory_space<vmem>>, vector<1x32xf32>
    %11 = vector.broadcast %10 : vector<1x32xf32> to vector<8x32xf32>
    %12 = arith.addf %9, %11 : vector<8x32xf32>
    %c0_11 = arith.constant 0 : index
    %c0_12 = arith.constant 0 : index
    %13 = vector.load %arg6[%c0_11, %c0_12] : memref<32x32xbf16, #tpu.memory_space<vmem>>, vector<32x32xbf16>
    %cst_13 = arith.constant dense<0.000000e+00> : vector<8x32xf32>
    %14 = tpu.matmul %2, %13, %cst_13 {dimension_numbers = #tpu.dot_dimension_numbers<[1], [0], [0], [1], [0, 0, 1, 1], [], []>} : vector<8x32xbf16>, vector<32x32xbf16>, vector<8x32xf32> -> vector<8x32xf32>
    %c0_14 = arith.constant 0 : index
    %c0_15 = arith.constant 0 : index
    %15 = vector.load %arg7[%c0_14, %c0_15] : memref<1x32xf32, #tpu.memory_space<vmem>>, vector<1x32xf32>
    %16 = vector.broadcast %15 : vector<1x32xf32> to vector<8x32xf32>
    %17 = arith.addf %14, %16 : vector<8x32xf32>
    %cst_16 = arith.constant 0.353553385 : f32
    %18 = vector.broadcast %cst_16 : f32 to vector<8x32xf32>
    %19 = arith.mulf %7, %18 : vector<8x32xf32>
    %20 = vector.extract_strided_slice %19 {offsets = [0, 0], sizes = [8, 8], strides = [1, 1]} : vector<8x32xf32> to vector<8x8xf32>
    %c0_17 = arith.constant 0 : index
    %c0_18 = arith.constant 0 : index
    %c0_19 = arith.constant 0 : index
    %21 = vector.load %arg21[%c0_17, %c0_18, %c0_19] : memref<4x8x8xf32, #tpu.memory_space<vmem>>, vector<1x8x8xf32>
    %22 = vector.shape_cast %21 : vector<1x8x8xf32> to vector<8x8xf32>
    %23 = vector.shape_cast %20 : vector<8x8xf32> to vector<1x8x8xf32>
    tpu.vector_store %arg21[%c0_17, %c0_18, %c0_19], %23 {strides = array<i32>} : memref<4x8x8xf32, #tpu.memory_space<vmem>>, vector<1x8x8xf32>,
    %c0_20 = arith.constant 0 : index
    %c0_21 = arith.constant 0 : index
    %c0_22 = arith.constant 0 : index
    %24 = vector.load %arg24[%c0_20, %c0_21, %c0_22] : memref<8x4x8xf32, #tpu.memory_space<vmem>>, vector<8x1x8xf32>
    %25 = vector.shape_cast %24 : vector<8x1x8xf32> to vector<8x8xf32>
    %26 = vector.shape_cast %20 : vector<8x8xf32> to vector<8x1x8xf32>
    tpu.vector_store %arg24[%c0_20, %c0_21, %c0_22], %26 {strides = array<i32>} : memref<8x4x8xf32, #tpu.memory_space<vmem>>, vector<8x1x8xf32>,
    %27 = vector.extract_strided_slice %12 {offsets = [0, 0], sizes = [8, 8], strides = [1, 1]} : vector<8x32xf32> to vector<8x8xf32>
    %c0_23 = arith.constant 0 : index
    %c0_24 = arith.constant 0 : index
    %c0_25 = arith.constant 0 : index
    %28 = vector.load %arg22[%c0_23, %c0_24, %c0_25] : memref<4x8x8xf32, #tpu.memory_space<vmem>>, vector<1x8x8xf32>
    %29 = vector.shape_cast %28 : vector<1x8x8xf32> to vector<8x8xf32>
    %30 = vector.shape_cast %27 : vector<8x8xf32> to vector<1x8x8xf32>
    tpu.vector_store %arg22[%c0_23, %c0_24, %c0_25], %30 {strides = array<i32>} : memref<4x8x8xf32, #tpu.memory_space<vmem>>, vector<1x8x8xf32>,
    %31 = vector.extract_strided_slice %17 {offsets = [0, 0], sizes = [8, 8], strides = [1, 1]} : vector<8x32xf32> to vector<8x8xf32>
    %c0_26 = arith.constant 0 : index
    %c0_27 = arith.constant 0 : index
    %c0_28 = arith.constant 0 : index
    %32 = vector.load %arg23[%c0_26, %c0_27, %c0_28] : memref<4x8x8xf32, #tpu.memory_space<vmem>>, vector<1x8x8xf32>
    %33 = vector.shape_cast %32 : vector<1x8x8xf32> to vector<8x8xf32>
    %34 = vector.shape_cast %31 : vector<8x8xf32> to vector<1x8x8xf32>
    tpu.vector_store %arg23[%c0_26, %c0_27, %c0_28], %34 {strides = array<i32>} : memref<4x8x8xf32, #tpu.memory_space<vmem>>, vector<1x8x8xf32>,
    %35 = vector.extract_strided_slice %19 {offsets = [0, 8], sizes = [8, 8], strides = [1, 1]} : vector<8x32xf32> to vector<8x8xf32>
    %c1 = arith.constant 1 : index
    %c0_29 = arith.constant 0 : index
    %c0_30 = arith.constant 0 : index
    %36 = vector.load %arg21[%c1, %c0_29, %c0_30] : memref<4x8x8xf32, #tpu.memory_space<vmem>>, vector<1x8x8xf32>
    %37 = vector.shape_cast %36 : vector<1x8x8xf32> to vector<8x8xf32>
    %38 = vector.shape_cast %35 : vector<8x8xf32> to vector<1x8x8xf32>
    tpu.vector_store %arg21[%c1, %c0_29, %c0_30], %38 {strides = array<i32>} : memref<4x8x8xf32, #tpu.memory_space<vmem>>, vector<1x8x8xf32>,
    %c0_31 = arith.constant 0 : index
    %c1_32 = arith.constant 1 : index
    %c0_33 = arith.constant 0 : index
    %39 = vector.load %arg24[%c0_31, %c1_32, %c0_33] : memref<8x4x8xf32, #tpu.memory_space<vmem>>, vector<8x1x8xf32>
    %40 = vector.shape_cast %39 : vector<8x1x8xf32> to vector<8x8xf32>
    %41 = vector.shape_cast %35 : vector<8x8xf32> to vector<8x1x8xf32>
    tpu.vector_store %arg24[%c0_31, %c1_32, %c0_33], %41 {strides = array<i32>} : memref<8x4x8xf32, #tpu.memory_space<vmem>>, vector<8x1x8xf32>,
    %42 = vector.extract_strided_slice %12 {offsets = [0, 8], sizes = [8, 8], strides = [1, 1]} : vector<8x32xf32> to vector<8x8xf32>
    %c1_34 = arith.constant 1 : index
    %c0_35 = arith.constant 0 : index
    %c0_36 = arith.constant 0 : index
    %43 = vector.load %arg22[%c1_34, %c0_35, %c0_36] : memref<4x8x8xf32, #tpu.memory_space<vmem>>, vector<1x8x8xf32>
    %44 = vector.shape_cast %43 : vector<1x8x8xf32> to vector<8x8xf32>
    %45 = vector.shape_cast %42 : vector<8x8xf32> to vector<1x8x8xf32>
    tpu.vector_store %arg22[%c1_34, %c0_35, %c0_36], %45 {strides = array<i32>} : memref<4x8x8xf32, #tpu.memory_space<vmem>>, vector<1x8x8xf32>,
    %46 = vector.extract_strided_slice %17 {offsets = [0, 8], sizes = [8, 8], strides = [1, 1]} : vector<8x32xf32> to vector<8x8xf32>
    %c1_37 = arith.constant 1 : index
    %c0_38 = arith.constant 0 : index
    %c0_39 = arith.constant 0 : index
    %47 = vector.load %arg23[%c1_37, %c0_38, %c0_39] : memref<4x8x8xf32, #tpu.memory_space<vmem>>, vector<1x8x8xf32>
    %48 = vector.shape_cast %47 : vector<1x8x8xf32> to vector<8x8xf32>
    %49 = vector.shape_cast %46 : vector<8x8xf32> to vector<1x8x8xf32>
    tpu.vector_store %arg23[%c1_37, %c0_38, %c0_39], %49 {strides = array<i32>} : memref<4x8x8xf32, #tpu.memory_space<vmem>>, vector<1x8x8xf32>,
    %50 = vector.extract_strided_slice %19 {offsets = [0, 16], sizes = [8, 8], strides = [1, 1]} : vector<8x32xf32> to vector<8x8xf32>
    %c2 = arith.constant 2 : index
    %c0_40 = arith.constant 0 : index
    %c0_41 = arith.constant 0 : index
    %51 = vector.load %arg21[%c2, %c0_40, %c0_41] : memref<4x8x8xf32, #tpu.memory_space<vmem>>, vector<1x8x8xf32>
    %52 = vector.shape_cast %51 : vector<1x8x8xf32> to vector<8x8xf32>
    %53 = vector.shape_cast %50 : vector<8x8xf32> to vector<1x8x8xf32>
    tpu.vector_store %arg21[%c2, %c0_40, %c0_41], %53 {strides = array<i32>} : memref<4x8x8xf32, #tpu.memory_space<vmem>>, vector<1x8x8xf32>,
    %c0_42 = arith.constant 0 : index
    %c2_43 = arith.constant 2 : index
    %c0_44 = arith.constant 0 : index
    %54 = vector.load %arg24[%c0_42, %c2_43, %c0_44] : memref<8x4x8xf32, #tpu.memory_space<vmem>>, vector<8x1x8xf32>
    %55 = vector.shape_cast %54 : vector<8x1x8xf32> to vector<8x8xf32>
    %56 = vector.shape_cast %50 : vector<8x8xf32> to vector<8x1x8xf32>
    tpu.vector_store %arg24[%c0_42, %c2_43, %c0_44], %56 {strides = array<i32>} : memref<8x4x8xf32, #tpu.memory_space<vmem>>, vector<8x1x8xf32>,
    %57 = vector.extract_strided_slice %12 {offsets = [0, 16], sizes = [8, 8], strides = [1, 1]} : vector<8x32xf32> to vector<8x8xf32>
    %c2_45 = arith.constant 2 : index
    %c0_46 = arith.constant 0 : index
    %c0_47 = arith.constant 0 : index
    %58 = vector.load %arg22[%c2_45, %c0_46, %c0_47] : memref<4x8x8xf32, #tpu.memory_space<vmem>>, vector<1x8x8xf32>
    %59 = vector.shape_cast %58 : vector<1x8x8xf32> to vector<8x8xf32>
    %60 = vector.shape_cast %57 : vector<8x8xf32> to vector<1x8x8xf32>
    tpu.vector_store %arg22[%c2_45, %c0_46, %c0_47], %60 {strides = array<i32>} : memref<4x8x8xf32, #tpu.memory_space<vmem>>, vector<1x8x8xf32>,
    %61 = vector.extract_strided_slice %17 {offsets = [0, 16], sizes = [8, 8], strides = [1, 1]} : vector<8x32xf32> to vector<8x8xf32>
    %c2_48 = arith.constant 2 : index
    %c0_49 = arith.constant 0 : index
    %c0_50 = arith.constant 0 : index
    %62 = vector.load %arg23[%c2_48, %c0_49, %c0_50] : memref<4x8x8xf32, #tpu.memory_space<vmem>>, vector<1x8x8xf32>
    %63 = vector.shape_cast %62 : vector<1x8x8xf32> to vector<8x8xf32>
    %64 = vector.shape_cast %61 : vector<8x8xf32> to vector<1x8x8xf32>
    tpu.vector_store %arg23[%c2_48, %c0_49, %c0_50], %64 {strides = array<i32>} : memref<4x8x8xf32, #tpu.memory_space<vmem>>, vector<1x8x8xf32>,
    %65 = vector.extract_strided_slice %19 {offsets = [0, 24], sizes = [8, 8], strides = [1, 1]} : vector<8x32xf32> to vector<8x8xf32>
    %c3 = arith.constant 3 : index
    %c0_51 = arith.constant 0 : index
    %c0_52 = arith.constant 0 : index
    %66 = vector.load %arg21[%c3, %c0_51, %c0_52] : memref<4x8x8xf32, #tpu.memory_space<vmem>>, vector<1x8x8xf32>
    %67 = vector.shape_cast %66 : vector<1x8x8xf32> to vector<8x8xf32>
    %68 = vector.shape_cast %65 : vector<8x8xf32> to vector<1x8x8xf32>
    tpu.vector_store %arg21[%c3, %c0_51, %c0_52], %68 {strides = array<i32>} : memref<4x8x8xf32, #tpu.memory_space<vmem>>, vector<1x8x8xf32>,
    %c0_53 = arith.constant 0 : index
    %c3_54 = arith.constant 3 : index
    %c0_55 = arith.constant 0 : index
    %69 = vector.load %arg24[%c0_53, %c3_54, %c0_55] : memref<8x4x8xf32, #tpu.memory_space<vmem>>, vector<8x1x8xf32>
    %70 = vector.shape_cast %69 : vector<8x1x8xf32> to vector<8x8xf32>
    %71 = vector.shape_cast %65 : vector<8x8xf32> to vector<8x1x8xf32>
    tpu.vector_store %arg24[%c0_53, %c3_54, %c0_55], %71 {strides = array<i32>} : memref<8x4x8xf32, #tpu.memory_space<vmem>>, vector<8x1x8xf32>,
    %72 = vector.extract_strided_slice %12 {offsets = [0, 24], sizes = [8, 8], strides = [1, 1]} : vector<8x32xf32> to vector<8x8xf32>
    %c3_56 = arith.constant 3 : index
    %c0_57 = arith.constant 0 : index
    %c0_58 = arith.constant 0 : index
    %73 = vector.load %arg22[%c3_56, %c0_57, %c0_58] : memref<4x8x8xf32, #tpu.memory_space<vmem>>, vector<1x8x8xf32>
    %74 = vector.shape_cast %73 : vector<1x8x8xf32> to vector<8x8xf32>
    %75 = vector.shape_cast %72 : vector<8x8xf32> to vector<1x8x8xf32>
    tpu.vector_store %arg22[%c3_56, %c0_57, %c0_58], %75 {strides = array<i32>} : memref<4x8x8xf32, #tpu.memory_space<vmem>>, vector<1x8x8xf32>,
    %76 = vector.extract_strided_slice %17 {offsets = [0, 24], sizes = [8, 8], strides = [1, 1]} : vector<8x32xf32> to vector<8x8xf32>
    %c3_59 = arith.constant 3 : index
    %c0_60 = arith.constant 0 : index
    %c0_61 = arith.constant 0 : index
    %77 = vector.load %arg23[%c3_59, %c0_60, %c0_61] : memref<4x8x8xf32, #tpu.memory_space<vmem>>, vector<1x8x8xf32>
    %78 = vector.shape_cast %77 : vector<1x8x8xf32> to vector<8x8xf32>
    %79 = vector.shape_cast %76 : vector<8x8xf32> to vector<1x8x8xf32>
    tpu.vector_store %arg23[%c3_59, %c0_60, %c0_61], %79 {strides = array<i32>} : memref<4x8x8xf32, #tpu.memory_space<vmem>>, vector<1x8x8xf32>,
    %c0_62 = arith.constant 0 : index
    %c0_63 = arith.constant 0 : index
    %c0_64 = arith.constant 0 : index
    %80 = vector.load %arg21[%c0_62, %c0_63, %c0_64] : memref<4x8x8xf32, #tpu.memory_space<vmem>>, vector<4x8x8xf32>
    %81 = arith.truncf %80 : vector<4x8x8xf32> to vector<4x8x8xbf16>
    %c0_65 = arith.constant 0 : index
    %c0_66 = arith.constant 0 : index
    %c0_67 = arith.constant 0 : index
    %82 = vector.load %arg22[%c0_65, %c0_66, %c0_67] : memref<4x8x8xf32, #tpu.memory_space<vmem>>, vector<4x8x8xf32>
    %83 = arith.truncf %82 : vector<4x8x8xf32> to vector<4x8x8xbf16>
    %c0_68 = arith.constant 0 : index
    %c0_69 = arith.constant 0 : index
    %c0_70 = arith.constant 0 : index
    %84 = vector.load %arg23[%c0_68, %c0_69, %c0_70] : memref<4x8x8xf32, #tpu.memory_space<vmem>>, vector<4x8x8xf32>
    %85 = arith.truncf %84 : vector<4x8x8xf32> to vector<4x8x8xbf16>
    "tpu.trace_start"() <{level = 10 : i32, message = "hqd,hkd->hqk"}> : () -> ()
    %cst_71 = arith.constant dense<0.000000e+00> : vector<4x8x8xf32>
    %86 = tpu.matmul %81, %83, %cst_71 {dimension_numbers = #tpu.dot_dimension_numbers<[2], [2], [1], [1], [0, 0, 0, 1, 1, 1], [0], [0]>} : vector<4x8x8xbf16>, vector<4x8x8xbf16>, vector<4x8x8xf32> -> vector<4x8x8xf32>
    "tpu.trace_stop"() : () -> ()
    %c0_72 = arith.constant 0 : index
    %c0_73 = arith.constant 0 : index
    %c0_74 = arith.constant 0 : index
    %87 = vector.load %arg24[%c0_72, %c0_73, %c0_74] : memref<8x4x8xf32, #tpu.memory_space<vmem>>, vector<8x4x8xf32>
    %88 = arith.truncf %87 : vector<8x4x8xf32> to vector<8x4x8xbf16>
    %c0_75 = arith.constant 0 : index
    %c0_76 = arith.constant 0 : index
    %c0_77 = arith.constant 0 : index
    %89 = vector.load %arg10[%c0_75, %c0_76, %c0_77] : memref<8x8x8xbf16, #tpu.memory_space<vmem>>, vector<8x8x8xbf16>
    "tpu.trace_start"() <{level = 10 : i32, message = "qhd,qkd->qhk"}> : () -> ()
    %cst_78 = arith.constant dense<0.000000e+00> : vector<8x4x8xf32>
    %90 = tpu.matmul %88, %89, %cst_78 {dimension_numbers = #tpu.dot_dimension_numbers<[2], [2], [1], [1], [0, 0, 0, 1, 1, 1], [0], [0]>} : vector<8x4x8xbf16>, vector<8x8x8xbf16>, vector<8x4x8xf32> -> vector<8x4x8xf32>
    "tpu.trace_stop"() : () -> ()
    %91 = vector.extract_strided_slice %86 {offsets = [0, 0, 0], sizes = [1, 8, 8], strides = [1, 1, 1]} : vector<4x8x8xf32> to vector<1x8x8xf32>
    %92 = vector.shape_cast %91 : vector<1x8x8xf32> to vector<8x8xf32>
    %c0_79 = arith.constant 0 : index
    %c0_80 = arith.constant 0 : index
    %c0_81 = arith.constant 0 : index
    %93 = vector.load %arg25[%c0_79, %c0_80, %c0_81] : memref<8x4x8xf32, #tpu.memory_space<vmem>>, vector<8x1x8xf32>
    %94 = vector.shape_cast %93 : vector<8x1x8xf32> to vector<8x8xf32>
    %95 = vector.shape_cast %92 : vector<8x8xf32> to vector<8x1x8xf32>
    tpu.vector_store %arg25[%c0_79, %c0_80, %c0_81], %95 {strides = array<i32>} : memref<8x4x8xf32, #tpu.memory_space<vmem>>, vector<8x1x8xf32>,
    %96 = vector.extract_strided_slice %86 {offsets = [1, 0, 0], sizes = [1, 8, 8], strides = [1, 1, 1]} : vector<4x8x8xf32> to vector<1x8x8xf32>
    %97 = vector.shape_cast %96 : vector<1x8x8xf32> to vector<8x8xf32>
    %c0_82 = arith.constant 0 : index
    %c1_83 = arith.constant 1 : index
    %c0_84 = arith.constant 0 : index
    %98 = vector.load %arg25[%c0_82, %c1_83, %c0_84] : memref<8x4x8xf32, #tpu.memory_space<vmem>>, vector<8x1x8xf32>
    %99 = vector.shape_cast %98 : vector<8x1x8xf32> to vector<8x8xf32>
    %100 = vector.shape_cast %97 : vector<8x8xf32> to vector<8x1x8xf32>
    tpu.vector_store %arg25[%c0_82, %c1_83, %c0_84], %100 {strides = array<i32>} : memref<8x4x8xf32, #tpu.memory_space<vmem>>, vector<8x1x8xf32>,
    %101 = vector.extract_strided_slice %86 {offsets = [2, 0, 0], sizes = [1, 8, 8], strides = [1, 1, 1]} : vector<4x8x8xf32> to vector<1x8x8xf32>
    %102 = vector.shape_cast %101 : vector<1x8x8xf32> to vector<8x8xf32>
    %c0_85 = arith.constant 0 : index
    %c2_86 = arith.constant 2 : index
    %c0_87 = arith.constant 0 : index
    %103 = vector.load %arg25[%c0_85, %c2_86, %c0_87] : memref<8x4x8xf32, #tpu.memory_space<vmem>>, vector<8x1x8xf32>
    %104 = vector.shape_cast %103 : vector<8x1x8xf32> to vector<8x8xf32>
    %105 = vector.shape_cast %102 : vector<8x8xf32> to vector<8x1x8xf32>
    tpu.vector_store %arg25[%c0_85, %c2_86, %c0_87], %105 {strides = array<i32>} : memref<8x4x8xf32, #tpu.memory_space<vmem>>, vector<8x1x8xf32>,
    %106 = vector.extract_strided_slice %86 {offsets = [3, 0, 0], sizes = [1, 8, 8], strides = [1, 1, 1]} : vector<4x8x8xf32> to vector<1x8x8xf32>
    %107 = vector.shape_cast %106 : vector<1x8x8xf32> to vector<8x8xf32>
    %c0_88 = arith.constant 0 : index
    %c3_89 = arith.constant 3 : index
    %c0_90 = arith.constant 0 : index
    %108 = vector.load %arg25[%c0_88, %c3_89, %c0_90] : memref<8x4x8xf32, #tpu.memory_space<vmem>>, vector<8x1x8xf32>
    %109 = vector.shape_cast %108 : vector<8x1x8xf32> to vector<8x8xf32>
    %110 = vector.shape_cast %107 : vector<8x8xf32> to vector<8x1x8xf32>
    tpu.vector_store %arg25[%c0_88, %c3_89, %c0_90], %110 {strides = array<i32>} : memref<8x4x8xf32, #tpu.memory_space<vmem>>, vector<8x1x8xf32>,
    %c0_91 = arith.constant 0 : index
    %c0_92 = arith.constant 0 : index
    %c0_93 = arith.constant 0 : index
    %111 = vector.load %arg25[%c0_91, %c0_92, %c0_93] : memref<8x4x8xf32, #tpu.memory_space<vmem>>, vector<8x4x8xf32>
    %112 = arith.addf %111, %90 : vector<8x4x8xf32>
    %cst_94 = arith.constant dense<0xFF800000> : vector<8x4xf32>
    %113 = vector.multi_reduction <maximumf>, %112, %cst_94 [2] : vector<8x4x8xf32> to vector<8x4xf32>
    %114 = vector.shape_cast %113 : vector<8x4xf32> to vector<8x4x1xf32>
    %115 = vector.broadcast %114 : vector<8x4x1xf32> to vector<8x4x8xf32>
    %116 = arith.subf %112, %115 : vector<8x4x8xf32>
    %117 = math.exp %116 : vector<8x4x8xf32>
    %cst_95 = arith.constant dense<0.000000e+00> : vector<8x4xf32>
    %118 = vector.multi_reduction <add>, %117, %cst_95 [2] : vector<8x4x8xf32> to vector<8x4xf32>
    %119 = vector.shape_cast %118 : vector<8x4xf32> to vector<8x4x1xf32>
    %120 = tpu.reciprocal %119 {approx = true} : vector<8x4x1xf32> -> vector<8x4x1xf32>
    %121 = vector.broadcast %120 : vector<8x4x1xf32> to vector<8x4x8xf32>
    %122 = arith.mulf %117, %121 : vector<8x4x8xf32>
    %123 = arith.truncf %122 : vector<8x4x8xf32> to vector<8x4x8xbf16>
    %c0_96 = arith.constant 0 : index
    %c0_97 = arith.constant 0 : index
    %c0_98 = arith.constant 0 : index
    %124 = vector.load %arg11[%c0_96, %c0_97, %c0_98] : memref<8x8x8xbf16, #tpu.memory_space<vmem>>, vector<8x8x8xbf16>
    "tpu.trace_start"() <{level = 10 : i32, message = "qhk,qkd->qhd"}> : () -> ()
    %cst_99 = arith.constant dense<0.000000e+00> : vector<8x4x8xf32>
    %125 = tpu.matmul %123, %124, %cst_99 {dimension_numbers = #tpu.dot_dimension_numbers<[2], [1], [1], [2], [0, 0, 0, 1, 1, 2], [0], [0]>} : vector<8x4x8xbf16>, vector<8x8x8xbf16>, vector<8x4x8xf32> -> vector<8x4x8xf32>
    "tpu.trace_stop"() : () -> ()
    %126 = vector.extract_strided_slice %122 {offsets = [0, 0, 0], sizes = [8, 1, 8], strides = [1, 1, 1]} : vector<8x4x8xf32> to vector<8x1x8xf32>
    %127 = vector.shape_cast %126 : vector<8x1x8xf32> to vector<8x8xf32>
    %c0_100 = arith.constant 0 : index
    %c0_101 = arith.constant 0 : index
    %c0_102 = arith.constant 0 : index
    %128 = vector.load %arg26[%c0_100, %c0_101, %c0_102] : memref<4x8x8xf32, #tpu.memory_space<vmem>>, vector<1x8x8xf32>
    %129 = vector.shape_cast %128 : vector<1x8x8xf32> to vector<8x8xf32>
    %130 = vector.shape_cast %127 : vector<8x8xf32> to vector<1x8x8xf32>
    tpu.vector_store %arg26[%c0_100, %c0_101, %c0_102], %130 {strides = array<i32>} : memref<4x8x8xf32, #tpu.memory_space<vmem>>, vector<1x8x8xf32>,
    %131 = vector.extract_strided_slice %122 {offsets = [0, 1, 0], sizes = [8, 1, 8], strides = [1, 1, 1]} : vector<8x4x8xf32> to vector<8x1x8xf32>
    %132 = vector.shape_cast %131 : vector<8x1x8xf32> to vector<8x8xf32>
    %c1_103 = arith.constant 1 : index
    %c0_104 = arith.constant 0 : index
    %c0_105 = arith.constant 0 : index
    %133 = vector.load %arg26[%c1_103, %c0_104, %c0_105] : memref<4x8x8xf32, #tpu.memory_space<vmem>>, vector<1x8x8xf32>
    %134 = vector.shape_cast %133 : vector<1x8x8xf32> to vector<8x8xf32>
    %135 = vector.shape_cast %132 : vector<8x8xf32> to vector<1x8x8xf32>
    tpu.vector_store %arg26[%c1_103, %c0_104, %c0_105], %135 {strides = array<i32>} : memref<4x8x8xf32, #tpu.memory_space<vmem>>, vector<1x8x8xf32>,
    %136 = vector.extract_strided_slice %122 {offsets = [0, 2, 0], sizes = [8, 1, 8], strides = [1, 1, 1]} : vector<8x4x8xf32> to vector<8x1x8xf32>
    %137 = vector.shape_cast %136 : vector<8x1x8xf32> to vector<8x8xf32>
    %c2_106 = arith.constant 2 : index
    %c0_107 = arith.constant 0 : index
    %c0_108 = arith.constant 0 : index
    %138 = vector.load %arg26[%c2_106, %c0_107, %c0_108] : memref<4x8x8xf32, #tpu.memory_space<vmem>>, vector<1x8x8xf32>
    %139 = vector.shape_cast %138 : vector<1x8x8xf32> to vector<8x8xf32>
    %140 = vector.shape_cast %137 : vector<8x8xf32> to vector<1x8x8xf32>
    tpu.vector_store %arg26[%c2_106, %c0_107, %c0_108], %140 {strides = array<i32>} : memref<4x8x8xf32, #tpu.memory_space<vmem>>, vector<1x8x8xf32>,
    %141 = vector.extract_strided_slice %122 {offsets = [0, 3, 0], sizes = [8, 1, 8], strides = [1, 1, 1]} : vector<8x4x8xf32> to vector<8x1x8xf32>
    %142 = vector.shape_cast %141 : vector<8x1x8xf32> to vector<8x8xf32>
    %c3_109 = arith.constant 3 : index
    %c0_110 = arith.constant 0 : index
    %c0_111 = arith.constant 0 : index
    %143 = vector.load %arg26[%c3_109, %c0_110, %c0_111] : memref<4x8x8xf32, #tpu.memory_space<vmem>>, vector<1x8x8xf32>
    %144 = vector.shape_cast %143 : vector<1x8x8xf32> to vector<8x8xf32>
    %145 = vector.shape_cast %142 : vector<8x8xf32> to vector<1x8x8xf32>
    tpu.vector_store %arg26[%c3_109, %c0_110, %c0_111], %145 {strides = array<i32>} : memref<4x8x8xf32, #tpu.memory_space<vmem>>, vector<1x8x8xf32>,
    %c0_112 = arith.constant 0 : index
    %c0_113 = arith.constant 0 : index
    %c0_114 = arith.constant 0 : index
    %146 = vector.load %arg26[%c0_112, %c0_113, %c0_114] : memref<4x8x8xf32, #tpu.memory_space<vmem>>, vector<4x8x8xf32>
    %147 = arith.truncf %146 : vector<4x8x8xf32> to vector<4x8x8xbf16>
    "tpu.trace_start"() <{level = 10 : i32, message = "hqk,hkd->hqd"}> : () -> ()
    %cst_115 = arith.constant dense<0.000000e+00> : vector<4x8x8xf32>
    %148 = tpu.matmul %147, %85, %cst_115 {dimension_numbers = #tpu.dot_dimension_numbers<[2], [1], [1], [2], [0, 0, 0, 1, 1, 2], [0], [0]>} : vector<4x8x8xbf16>, vector<4x8x8xbf16>, vector<4x8x8xf32> -> vector<4x8x8xf32>
    "tpu.trace_stop"() : () -> ()
    %149 = vector.extract_strided_slice %148 {offsets = [0, 0, 0], sizes = [1, 8, 8], strides = [1, 1, 1]} : vector<4x8x8xf32> to vector<1x8x8xf32>
    %150 = vector.shape_cast %149 : vector<1x8x8xf32> to vector<8x8xf32>
    %151 = vector.extract_strided_slice %125 {offsets = [0, 0, 0], sizes = [8, 1, 8], strides = [1, 1, 1]} : vector<8x4x8xf32> to vector<8x1x8xf32>
    %152 = vector.shape_cast %151 : vector<8x1x8xf32> to vector<8x8xf32>
    %153 = arith.addf %150, %152 : vector<8x8xf32>
    %c0_116 = arith.constant 0 : index
    %c0_117 = arith.constant 0 : index
    %c0_118 = arith.constant 0 : index
    %154 = vector.load %arg27[%c0_116, %c0_117, %c0_118] : memref<4x8x8xf32, #tpu.memory_space<vmem>>, vector<1x8x8xf32>
    %155 = vector.shape_cast %154 : vector<1x8x8xf32> to vector<8x8xf32>
    %156 = vector.shape_cast %153 : vector<8x8xf32> to vector<1x8x8xf32>
    tpu.vector_store %arg27[%c0_116, %c0_117, %c0_118], %156 {strides = array<i32>} : memref<4x8x8xf32, #tpu.memory_space<vmem>>, vector<1x8x8xf32>,
    %157 = vector.extract_strided_slice %148 {offsets = [1, 0, 0], sizes = [1, 8, 8], strides = [1, 1, 1]} : vector<4x8x8xf32> to vector<1x8x8xf32>
    %158 = vector.shape_cast %157 : vector<1x8x8xf32> to vector<8x8xf32>
    %159 = vector.extract_strided_slice %125 {offsets = [0, 1, 0], sizes = [8, 1, 8], strides = [1, 1, 1]} : vector<8x4x8xf32> to vector<8x1x8xf32>
    %160 = vector.shape_cast %159 : vector<8x1x8xf32> to vector<8x8xf32>
    %161 = arith.addf %158, %160 : vector<8x8xf32>
    %c1_119 = arith.constant 1 : index
    %c0_120 = arith.constant 0 : index
    %c0_121 = arith.constant 0 : index
    %162 = vector.load %arg27[%c1_119, %c0_120, %c0_121] : memref<4x8x8xf32, #tpu.memory_space<vmem>>, vector<1x8x8xf32>
    %163 = vector.shape_cast %162 : vector<1x8x8xf32> to vector<8x8xf32>
    %164 = vector.shape_cast %161 : vector<8x8xf32> to vector<1x8x8xf32>
    tpu.vector_store %arg27[%c1_119, %c0_120, %c0_121], %164 {strides = array<i32>} : memref<4x8x8xf32, #tpu.memory_space<vmem>>, vector<1x8x8xf32>,
    %165 = vector.extract_strided_slice %148 {offsets = [2, 0, 0], sizes = [1, 8, 8], strides = [1, 1, 1]} : vector<4x8x8xf32> to vector<1x8x8xf32>
    %166 = vector.shape_cast %165 : vector<1x8x8xf32> to vector<8x8xf32>
    %167 = vector.extract_strided_slice %125 {offsets = [0, 2, 0], sizes = [8, 1, 8], strides = [1, 1, 1]} : vector<8x4x8xf32> to vector<8x1x8xf32>
    %168 = vector.shape_cast %167 : vector<8x1x8xf32> to vector<8x8xf32>
    %169 = arith.addf %166, %168 : vector<8x8xf32>
    %c2_122 = arith.constant 2 : index
    %c0_123 = arith.constant 0 : index
    %c0_124 = arith.constant 0 : index
    %170 = vector.load %arg27[%c2_122, %c0_123, %c0_124] : memref<4x8x8xf32, #tpu.memory_space<vmem>>, vector<1x8x8xf32>
    %171 = vector.shape_cast %170 : vector<1x8x8xf32> to vector<8x8xf32>
    %172 = vector.shape_cast %169 : vector<8x8xf32> to vector<1x8x8xf32>
    tpu.vector_store %arg27[%c2_122, %c0_123, %c0_124], %172 {strides = array<i32>} : memref<4x8x8xf32, #tpu.memory_space<vmem>>, vector<1x8x8xf32>,
    %173 = vector.extract_strided_slice %148 {offsets = [3, 0, 0], sizes = [1, 8, 8], strides = [1, 1, 1]} : vector<4x8x8xf32> to vector<1x8x8xf32>
    %174 = vector.shape_cast %173 : vector<1x8x8xf32> to vector<8x8xf32>
    %175 = vector.extract_strided_slice %125 {offsets = [0, 3, 0], sizes = [8, 1, 8], strides = [1, 1, 1]} : vector<8x4x8xf32> to vector<8x1x8xf32>
    %176 = vector.shape_cast %175 : vector<8x1x8xf32> to vector<8x8xf32>
    %177 = arith.addf %174, %176 : vector<8x8xf32>
    %c3_125 = arith.constant 3 : index
    %c0_126 = arith.constant 0 : index
    %c0_127 = arith.constant 0 : index
    %178 = vector.load %arg27[%c3_125, %c0_126, %c0_127] : memref<4x8x8xf32, #tpu.memory_space<vmem>>, vector<1x8x8xf32>
    %179 = vector.shape_cast %178 : vector<1x8x8xf32> to vector<8x8xf32>
    %180 = vector.shape_cast %177 : vector<8x8xf32> to vector<1x8x8xf32>
    tpu.vector_store %arg27[%c3_125, %c0_126, %c0_127], %180 {strides = array<i32>} : memref<4x8x8xf32, #tpu.memory_space<vmem>>, vector<1x8x8xf32>,
    %c0_128 = arith.constant 0 : index
    %c0_129 = arith.constant 0 : index
    %c0_130 = arith.constant 0 : index
    %181 = vector.load %arg27[%c0_128, %c0_129, %c0_130] : memref<4x8x8xf32, #tpu.memory_space<vmem>>, vector<4x8x8xf32>
    %182 = arith.truncf %181 : vector<4x8x8xf32> to vector<4x8x8xbf16>
    %c0_131 = arith.constant 0 : index
    %c0_132 = arith.constant 0 : index
    %c0_133 = arith.constant 0 : index
    %183 = vector.load %arg8[%c0_131, %c0_132, %c0_133] : memref<4x8x32xbf16, #tpu.memory_space<vmem>>, vector<4x8x32xbf16>
    "tpu.trace_start"() <{level = 10 : i32, message = "hqd,hde->hqe"}> : () -> ()
    %cst_134 = arith.constant dense<0.000000e+00> : vector<4x8x32xf32>
    %184 = tpu.matmul %182, %183, %cst_134 {dimension_numbers = #tpu.dot_dimension_numbers<[2], [1], [1], [2], [0, 0, 0, 1, 1, 2], [0], [0]>} : vector<4x8x8xbf16>, vector<4x8x32xbf16>, vector<4x8x32xf32> -> vector<4x8x32xf32>
    "tpu.trace_stop"() : () -> ()
    %cst_135 = arith.constant dense<0.000000e+00> : vector<8x32xf32>
    %185 = vector.multi_reduction <add>, %184, %cst_135 [0] : vector<4x8x32xf32> to vector<8x32xf32>
    %c0_136 = arith.constant 0 : index
    %c0_137 = arith.constant 0 : index
    %186 = vector.load %arg9[%c0_136, %c0_137] : memref<1x32xf32, #tpu.memory_space<vmem>>, vector<1x32xf32>
    %187 = vector.broadcast %186 : vector<1x32xf32> to vector<8x32xf32>
    %188 = arith.addf %185, %187 : vector<8x32xf32>
    %189 = arith.addf %1, %188 : vector<8x32xf32>
    %cst_138 = arith.constant dense<0.000000e+00> : vector<8xf32>
    %190 = vector.multi_reduction <add>, %189, %cst_138 [1] : vector<8x32xf32> to vector<8xf32>
    %191 = vector.shape_cast %190 : vector<8xf32> to vector<8x1xf32>
    %cst_139 = arith.constant 3.200000e+01 : f32
    %192 = vector.broadcast %cst_139 : f32 to vector<8x1xf32>
    %193 = arith.divf %191, %192 : vector<8x1xf32>
    %194 = vector.broadcast %193 : vector<8x1xf32> to vector<8x32xf32>
    %195 = arith.subf %189, %194 : vector<8x32xf32>
    %196 = arith.mulf %195, %195 : vector<8x32xf32>
    %cst_140 = arith.constant dense<0.000000e+00> : vector<8xf32>
    %197 = vector.multi_reduction <add>, %196, %cst_140 [1] : vector<8x32xf32> to vector<8xf32>
    %198 = vector.shape_cast %197 : vector<8xf32> to vector<8x1xf32>
    %cst_141 = arith.constant 3.200000e+01 : f32
    %199 = vector.broadcast %cst_141 : f32 to vector<8x1xf32>
    %200 = arith.divf %198, %199 : vector<8x1xf32>
    %201 = vector.broadcast %193 : vector<8x1xf32> to vector<8x32xf32>
    %202 = arith.subf %189, %201 : vector<8x32xf32>
    %cst_142 = arith.constant 9.99999974E-6 : f32
    %203 = vector.broadcast %cst_142 : f32 to vector<8x1xf32>
    %204 = arith.addf %200, %203 : vector<8x1xf32>
    %205 = math.rsqrt %204 : vector<8x1xf32>
    %206 = vector.broadcast %205 : vector<8x1xf32> to vector<8x32xf32>
    %207 = arith.mulf %202, %206 : vector<8x32xf32>
    %c0_143 = arith.constant 0 : index
    %c0_144 = arith.constant 0 : index
    %208 = vector.load %arg12[%c0_143, %c0_144] : memref<1x32xf32, #tpu.memory_space<vmem>>, vector<1x32xf32>
    %209 = vector.broadcast %208 : vector<1x32xf32> to vector<8x32xf32>
    %210 = arith.mulf %207, %209 : vector<8x32xf32>
    %c0_145 = arith.constant 0 : index
    %c0_146 = arith.constant 0 : index
    %211 = vector.load %arg13[%c0_145, %c0_146] : memref<1x32xf32, #tpu.memory_space<vmem>>, vector<1x32xf32>
    %212 = vector.broadcast %211 : vector<1x32xf32> to vector<8x32xf32>
    %213 = arith.addf %210, %212 : vector<8x32xf32>
    %214 = arith.truncf %213 : vector<8x32xf32> to vector<8x32xbf16>
    %c0_147 = arith.constant 0 : index
    %c0_148 = arith.constant 0 : index
    %215 = vector.load %arg14[%c0_147, %c0_148] : memref<32x64xbf16, #tpu.memory_space<vmem>>, vector<32x64xbf16>
    %cst_149 = arith.constant dense<0.000000e+00> : vector<8x64xf32>
    %216 = tpu.matmul %214, %215, %cst_149 {dimension_numbers = #tpu.dot_dimension_numbers<[1], [0], [0], [1], [0, 0, 1, 1], [], []>} : vector<8x32xbf16>, vector<32x64xbf16>, vector<8x64xf32> -> vector<8x64xf32>
    %c0_150 = arith.constant 0 : index
    %c0_151 = arith.constant 0 : index
    %217 = vector.load %arg15[%c0_150, %c0_151] : memref<1x64xf32, #tpu.memory_space<vmem>>, vector<1x64xf32>
    %218 = vector.broadcast %217 : vector<1x64xf32> to vector<8x64xf32>
    %219 = arith.addf %216, %218 : vector<8x64xf32>
    %cst_152 = arith.constant 0.000000e+00 : f32
    %220 = vector.broadcast %cst_152 : f32 to vector<8x64xf32>
    %221 = arith.maximumf %219, %220 : vector<8x64xf32>
    %222 = arith.truncf %221 : vector<8x64xf32> to vector<8x64xbf16>
    %c0_153 = arith.constant 0 : index
    %c0_154 = arith.constant 0 : index
    %223 = vector.load %arg16[%c0_153, %c0_154] : memref<64x32xbf16, #tpu.memory_space<vmem>>, vector<64x32xbf16>
    %cst_155 = arith.constant dense<0.000000e+00> : vector<8x32xf32>
    %224 = tpu.matmul %222, %223, %cst_155 {dimension_numbers = #tpu.dot_dimension_numbers<[1], [0], [0], [1], [0, 0, 1, 1], [], []>} : vector<8x64xbf16>, vector<64x32xbf16>, vector<8x32xf32> -> vector<8x32xf32>
    %c0_156 = arith.constant 0 : index
    %c0_157 = arith.constant 0 : index
    %225 = vector.load %arg17[%c0_156, %c0_157] : memref<1x32xf32, #tpu.memory_space<vmem>>, vector<1x32xf32>
    %226 = vector.broadcast %225 : vector<1x32xf32> to vector<8x32xf32>
    %227 = arith.addf %224, %226 : vector<8x32xf32>
    %228 = arith.addf %213, %227 : vector<8x32xf32>
    %cst_158 = arith.constant dense<0.000000e+00> : vector<8xf32>
    %229 = vector.multi_reduction <add>, %228, %cst_158 [1] : vector<8x32xf32> to vector<8xf32>
    %230 = vector.shape_cast %229 : vector<8xf32> to vector<8x1xf32>
    %cst_159 = arith.constant 3.200000e+01 : f32
    %231 = vector.broadcast %cst_159 : f32 to vector<8x1xf32>
    %232 = arith.divf %230, %231 : vector<8x1xf32>
    %233 = vector.broadcast %232 : vector<8x1xf32> to vector<8x32xf32>
    %234 = arith.subf %228, %233 : vector<8x32xf32>
    %235 = arith.mulf %234, %234 : vector<8x32xf32>
    %cst_160 = arith.constant dense<0.000000e+00> : vector<8xf32>
    %236 = vector.multi_reduction <add>, %235, %cst_160 [1] : vector<8x32xf32> to vector<8xf32>
    %237 = vector.shape_cast %236 : vector<8xf32> to vector<8x1xf32>
    %cst_161 = arith.constant 3.200000e+01 : f32
    %238 = vector.broadcast %cst_161 : f32 to vector<8x1xf32>
    %239 = arith.divf %237, %238 : vector<8x1xf32>
    %240 = vector.broadcast %232 : vector<8x1xf32> to vector<8x32xf32>
    %241 = arith.subf %228, %240 : vector<8x32xf32>
    %cst_162 = arith.constant 9.99999974E-6 : f32
    %242 = vector.broadcast %cst_162 : f32 to vector<8x1xf32>
    %243 = arith.addf %239, %242 : vector<8x1xf32>
    %244 = math.rsqrt %243 : vector<8x1xf32>
    %245 = vector.broadcast %244 : vector<8x1xf32> to vector<8x32xf32>
    %246 = arith.mulf %241, %245 : vector<8x32xf32>
    %c0_163 = arith.constant 0 : index
    %c0_164 = arith.constant 0 : index
    %247 = vector.load %arg18[%c0_163, %c0_164] : memref<1x32xf32, #tpu.memory_space<vmem>>, vector<1x32xf32>
    %248 = vector.broadcast %247 : vector<1x32xf32> to vector<8x32xf32>
    %249 = arith.mulf %246, %248 : vector<8x32xf32>
    %c0_165 = arith.constant 0 : index
    %c0_166 = arith.constant 0 : index
    %250 = vector.load %arg19[%c0_165, %c0_166] : memref<1x32xf32, #tpu.memory_space<vmem>>, vector<1x32xf32>
    %251 = vector.broadcast %250 : vector<1x32xf32> to vector<8x32xf32>
    %252 = arith.addf %249, %251 : vector<8x32xf32>
    %c0_167 = arith.constant 0 : index
    %c0_168 = arith.constant 0 : index
    %c0_169 = arith.constant 0 : index
    %253 = vector.load %arg20[%c0_167, %c0_168, %c0_169] : memref<1x8x32xf32, #tpu.memory_space<vmem>>, vector<1x8x32xf32>
    %254 = vector.shape_cast %253 : vector<1x8x32xf32> to vector<8x32xf32>
    %255 = vector.shape_cast %252 : vector<8x32xf32> to vector<1x8x32xf32>
    tpu.vector_store %arg20[%c0_167, %c0_168, %c0_169], %255 {strides = array<i32>} : memref<1x8x32xf32, #tpu.memory_space<vmem>>, vector<1x8x32xf32>,
    return
  }
  func.func @transform_0(%arg0: i32) -> (i32, i32, i32) {
    %c0_i32 = arith.constant 0 : i32
    %c0_i32_0 = arith.constant 0 : i32
    %c0_i32_1 = arith.constant 0 : i32
    return %arg0, %c0_i32, %c0_i32_0 : i32, i32, i32
  }
  func.func @transform_1(%arg0: i32) -> (i32, i32) {
    %c0_i32 = arith.constant 0 : i32
    %c0_i32_0 = arith.constant 0 : i32
    %c0_i32_1 = arith.constant 0 : i32
    return %c0_i32, %c0_i32_0 : i32, i32
  }
  func.func @transform_2(%arg0: i32) -> (i32, i32) {
    %c0_i32 = arith.constant 0 : i32
    %c0_i32_0 = arith.constant 0 : i32
    %c0_i32_1 = arith.constant 0 : i32
    return %c0_i32, %c0_i32_0 : i32, i32
  }
  func.func @transform_3(%arg0: i32) -> (i32, i32) {
    %c0_i32 = arith.constant 0 : i32
    %c0_i32_0 = arith.constant 0 : i32
    %c0_i32_1 = arith.constant 0 : i32
    return %c0_i32, %c0_i32_0 : i32, i32
  }
  func.func @transform_4(%arg0: i32) -> (i32, i32) {
    %c0_i32 = arith.constant 0 : i32
    %c0_i32_0 = arith.constant 0 : i32
    %c0_i32_1 = arith.constant 0 : i32
    return %c0_i32, %c0_i32_0 : i32, i32
  }
  func.func @transform_5(%arg0: i32) -> (i32, i32) {
    %c0_i32 = arith.constant 0 : i32
    %c0_i32_0 = arith.constant 0 : i32
    %c0_i32_1 = arith.constant 0 : i32
    return %c0_i32, %c0_i32_0 : i32, i32
  }
  func.func @transform_6(%arg0: i32) -> (i32, i32) {
    %c0_i32 = arith.constant 0 : i32
    %c0_i32_0 = arith.constant 0 : i32
    %c0_i32_1 = arith.constant 0 : i32
    return %c0_i32, %c0_i32_0 : i32, i32
  }
  func.func @transform_7(%arg0: i32) -> (i32, i32, i32) {
    %c0_i32 = arith.constant 0 : i32
    %c0_i32_0 = arith.constant 0 : i32
    %c0_i32_1 = arith.constant 0 : i32
    %c0_i32_2 = arith.constant 0 : i32
    return %c0_i32, %c0_i32_0, %c0_i32_1 : i32, i32, i32
  }
  func.func @transform_8(%arg0: i32) -> (i32, i32) {
    %c0_i32 = arith.constant 0 : i32
    %c0_i32_0 = arith.constant 0 : i32
    %c0_i32_1 = arith.constant 0 : i32
    return %c0_i32, %c0_i32_0 : i32, i32
  }
  func.func @transform_9(%arg0: i32) -> (i32, i32, i32) {
    %c0_i32 = arith.constant 0 : i32
    %c0_i32_0 = arith.constant 0 : i32
    %c0_i32_1 = arith.constant 0 : i32
    %c0_i32_2 = arith.constant 0 : i32
    return %c0_i32, %c0_i32_0, %c0_i32_1 : i32, i32, i32
  }
  func.func @transform_10(%arg0: i32) -> (i32, i32, i32) {
    %c0_i32 = arith.constant 0 : i32
    %c0_i32_0 = arith.constant 0 : i32
    %c0_i32_1 = arith.constant 0 : i32
    %c0_i32_2 = arith.constant 0 : i32
    return %c0_i32, %c0_i32_0, %c0_i32_1 : i32, i32, i32
  }
  func.func @transform_11(%arg0: i32) -> (i32, i32) {
    %c0_i32 = arith.constant 0 : i32
    %c0_i32_0 = arith.constant 0 : i32
    %c0_i32_1 = arith.constant 0 : i32
    return %c0_i32, %c0_i32_0 : i32, i32
  }
  func.func @transform_12(%arg0: i32) -> (i32, i32) {
    %c0_i32 = arith.constant 0 : i32
    %c0_i32_0 = arith.constant 0 : i32
    %c0_i32_1 = arith.constant 0 : i32
    return %c0_i32, %c0_i32_0 : i32, i32
  }
  func.func @transform_13(%arg0: i32) -> (i32, i32) {
    %c0_i32 = arith.constant 0 : i32
    %c0_i32_0 = arith.constant 0 : i32
    %c0_i32_1 = arith.constant 0 : i32
    return %c0_i32, %c0_i32_0 : i32, i32
  }
  func.func @transform_14(%arg0: i32) -> (i32, i32) {
    %c0_i32 = arith.constant 0 : i32
    %c0_i32_0 = arith.constant 0 : i32
    %c0_i32_1 = arith.constant 0 : i32
    return %c0_i32, %c0_i32_0 : i32, i32
  }
  func.func @transform_15(%arg0: i32) -> (i32, i32) {
    %c0_i32 = arith.constant 0 : i32
    %c0_i32_0 = arith.constant 0 : i32
    %c0_i32_1 = arith.constant 0 : i32
    return %c0_i32, %c0_i32_0 : i32, i32
  }
  func.func @transform_16(%arg0: i32) -> (i32, i32) {
    %c0_i32 = arith.constant 0 : i32
    %c0_i32_0 = arith.constant 0 : i32
    %c0_i32_1 = arith.constant 0 : i32
    return %c0_i32, %c0_i32_0 : i32, i32
  }
  func.func @transform_17(%arg0: i32) -> (i32, i32) {
    %c0_i32 = arith.constant 0 : i32
    %c0_i32_0 = arith.constant 0 : i32
    %c0_i32_1 = arith.constant 0 : i32
    return %c0_i32, %c0_i32_0 : i32, i32
  }
  func.func @transform_18(%arg0: i32) -> (i32, i32) {
    %c0_i32 = arith.constant 0 : i32
    %c0_i32_0 = arith.constant 0 : i32
    %c0_i32_1 = arith.constant 0 : i32
    return %c0_i32, %c0_i32_0 : i32, i32
  }
  func.func @transform_19(%arg0: i32) -> (i32, i32, i32) {
    %c0_i32 = arith.constant 0 : i32
    %c0_i32_0 = arith.constant 0 : i32
    %c0_i32_1 = arith.constant 0 : i32
    return %arg0, %c0_i32, %c0_i32_0 : i32, i32, i32
  }
}

</mosaic_0001>

<llo_original>
// kernel: tpu_custom_call.1
$region0: #{tpu_custom_call.1}
  #allocation0 [shape = 'u32[]', space=smem, size = 0x4, offset = 0x4, fixed_abs, tag = 'smem constant byte address 0x4 - core index']
  #allocation1 [shape = 'u32[144,128]{1,0:T(1,128)}', space=vmem, size = 0x12000, scoped, tag = 'internal scratch']
  #allocation2 [shape = 'f32[4,8,8]{2,1,0:T(8,128)}', space=vmem, size = 0x4000, scoped, tag = 'scratch operand']
  #allocation3 [shape = 'f32[4,8,8]{2,1,0:T(8,128)}', space=vmem, size = 0x4000, scoped, tag = 'scratch operand']
  #allocation4 [shape = 'f32[4,8,8]{2,1,0:T(8,128)}', space=vmem, size = 0x4000, scoped, tag = 'scratch operand']
  #allocation5 [shape = 'f32[8,4,8]{2,1,0:T(4,128)}', space=vmem, size = 0x4000, scoped, tag = 'scratch operand']
  #allocation6 [shape = 'f32[8,4,8]{2,1,0:T(4,128)}', space=vmem, size = 0x4000, scoped, tag = 'scratch operand']
  #allocation7 [shape = 'f32[4,8,8]{2,1,0:T(8,128)}', space=vmem, size = 0x4000, scoped, tag = 'scratch operand']
  #allocation8 [shape = 'f32[4,8,8]{2,1,0:T(8,128)}', space=vmem, size = 0x4000, scoped, tag = 'scratch operand']
  %s0 = inlined_call_operand.hbm [shape: f32[2,8,32], index: 0, kind: input, shape index: {}]
  %s1 = inlined_call_operand.hbm [shape: bf16[32,32], index: 1, kind: input, shape index: {}]
  %s2 = inlined_call_operand.hbm [shape: f32[1,32], index: 2, kind: input, shape index: {}]
  %s3 = inlined_call_operand.hbm [shape: bf16[32,32], index: 3, kind: input, shape index: {}]
  %s4 = inlined_call_operand.hbm [shape: f32[1,32], index: 4, kind: input, shape index: {}]
  %s5 = inlined_call_operand.hbm [shape: bf16[32,32], index: 5, kind: input, shape index: {}]
  %s6 = inlined_call_operand.hbm [shape: f32[1,32], index: 6, kind: input, shape index: {}]
  %s7 = inlined_call_operand.hbm [shape: bf16[4,8,32], index: 7, kind: input, shape index: {}]
  %s8 = inlined_call_operand.hbm [shape: f32[1,32], index: 8, kind: input, shape index: {}]
  %s9 = inlined_call_operand.vmem [shape: bf16[8,8,8], index: 9, kind: input, shape index: {}]
  %s10 = inlined_call_operand.vmem [shape: bf16[8,8,8], index: 10, kind: input, shape index: {}]
  %s11 = inlined_call_operand.vmem [shape: f32[1,32], index: 11, kind: input, shape index: {}]
  %s12 = inlined_call_operand.vmem [shape: f32[1,32], index: 12, kind: input, shape index: {}]
  %s13 = inlined_call_operand.hbm [shape: bf16[32,64], index: 13, kind: input, shape index: {}]
  %s14 = inlined_call_operand.vmem [shape: f32[1,64], index: 14, kind: input, shape index: {}]
  %s15 = inlined_call_operand.vmem [shape: bf16[64,32], index: 15, kind: input, shape index: {}]
  %s16 = inlined_call_operand.vmem [shape: f32[1,32], index: 16, kind: input, shape index: {}]
  %s17 = inlined_call_operand.vmem [shape: f32[1,32], index: 17, kind: input, shape index: {}]
  %s18 = inlined_call_operand.vmem [shape: f32[1,32], index: 18, kind: input, shape index: {}]
  %s19 = inlined_call_operand.hbm [shape: f32[2,8,32], index: 19, kind: output, shape index: {}]
  %s20 = sld [smem:[#allocation0]]
  $region149: #{tpu_custom_call.1} parent=0
    _
  %s22 = ssub.s32 1, %s20
  %s23 = scalar_select 0, %s22, %s20
  $region1: #{tpu_custom_call.1} parent=0
    #allocation9 [shape = 'u8[8192]{0}', space=vmem, size = 0x2000, scoped, tag = 'input window, operand 0']
    #allocation10 [shape = 's32[2]{0}', space=sflag, size = 0x8, scoped, tag = 'scoped memory for tpu_custom_call.1']
    #allocation11 [shape = 's32[2]{0}', space=sflag, size = 0x8, scoped, tag = 'scoped memory for tpu_custom_call.1']
    #allocation12 [shape = 'u8[8192]{0}', space=vmem, size = 0x2000, scoped, tag = 'input window, operand 1, single buffered']
    #allocation13 [shape = 's32[1]{0}', space=sflag, size = 0x4, scoped, tag = 'scoped memory for tpu_custom_call.1']
    #allocation14 [shape = 'u8[512]{0}', space=vmem, size = 0x400, scoped, tag = 'input window, operand 2, single buffered']
    #allocation15 [shape = 'u8[8192]{0}', space=vmem, size = 0x2000, scoped, tag = 'input window, operand 3, single buffered']
    #allocation16 [shape = 's32[1]{0}', space=sflag, size = 0x4, scoped, tag = 'scoped memory for tpu_custom_call.1']
    #allocation17 [shape = 'u8[512]{0}', space=vmem, size = 0x400, scoped, tag = 'input window, operand 4, single buffered']
    #allocation18 [shape = 'u8[8192]{0}', space=vmem, size = 0x2000, scoped, tag = 'input window, operand 5, single buffered']
    #allocation19 [shape = 's32[1]{0}', space=sflag, size = 0x4, scoped, tag = 'scoped memory for tpu_custom_call.1']
    #allocation20 [shape = 'u8[512]{0}', space=vmem, size = 0x400, scoped, tag = 'input window, operand 6, single buffered']
    #allocation21 [shape = 'u8[8192]{0}', space=vmem, size = 0x2000, scoped, tag = 'input window, operand 7, single buffered']
    #allocation22 [shape = 's32[1]{0}', space=sflag, size = 0x4, scoped, tag = 'scoped memory for tpu_custom_call.1']
    #allocation23 [shape = 'u8[512]{0}', space=vmem, size = 0x400, scoped, tag = 'input window, operand 8, single buffered']
    #allocation24 [shape = 'u8[8192]{0}', space=vmem, size = 0x2000, scoped, tag = 'input window, operand 13, single buffered']
    #allocation25 [shape = 's32[1]{0}', space=sflag, size = 0x4, scoped, tag = 'scoped memory for tpu_custom_call.1']
    #allocation26 [shape = 'u8[8192]{0}', space=vmem, size = 0x2000, scoped, tag = 'output window, operand 0']
    %24 = vsyncpa [#allocation10], 0
    %s25 = scalar_lea.sflag [#allocation10], 1
    %26 = vsyncpa %s25, 0
    %27 = vsyncpa [#allocation13], 0
    %28 = vsyncpa [#allocation16], 0
    %29 = vsyncpa [#allocation19], 0
    %30 = vsyncpa [#allocation22], 0
    %31 = vsyncpa [#allocation25], 0
    %32 = vsyncpa [#allocation11], 0
    %s33 = scalar_lea.sflag [#allocation11], 1
    %34 = vsyncpa %s33, 0
    loop: start=0, step=1, limit=4
    $region2: #{tpu_custom_call.1} parent=1 // loop_pre_header
      _
    $region3: #{tpu_custom_call.1} parent=1 // loop_header
      %s36 = sphi 0, %s40
      %p37 = scmp.ge.s32.totalorder %s36, 4
      %s46 = sphi 0, %s48
      %s49 = sphi 0, %s46
      %s50 = sphi 0, %s49
      %s66 = sphi 0, %s50
      %s70 = sphi 0, %s70
      %s72 = sphi 0, %s70
      %s73 = sphi 0, %s72
      %s87 = sphi 0, %s73
      %s91 = sphi 0, %s91
      %s93 = sphi 0, %s91
      %s94 = sphi 0, %s93
      %s108 = sphi 0, %s94
      %s112 = sphi 0, %s112
      %s114 = sphi 0, %s112
      %s115 = sphi 0, %s114
      %s129 = sphi 0, %s115
      %s133 = sphi 0, %s133
      %s135 = sphi 0, %s133
      %s136 = sphi 0, %s135
      %s150 = sphi 0, %s136
      %s154 = sphi 0, %s154
      %s156 = sphi 0, %s154
      %s157 = sphi 0, %s156
      %s171 = sphi 0, %s157
      %s175 = sphi 0, %s175
      %s177 = sphi 0, %s175
      %s178 = sphi 0, %s177
      %s192 = sphi 0, %s178
      %s196 = sphi 0, %s196
      %s198 = sphi 0, %s196
      %s199 = sphi 0, %s198
      %s213 = sphi 0, %s199
      %s217 = sphi 0, %s217
      %s219 = sphi 0, %s217
      %s220 = sphi 0, %s219
      %s234 = sphi 0, %s220
      %s238 = sphi 0, %s238
      %s240 = sphi 0, %s238
      %s241 = sphi 0, %s240
      %s255 = sphi 0, %s241
      %s259 = sphi 0, %s259
      %s261 = sphi 0, %s259
      %s262 = sphi 0, %s261
      %s276 = sphi 0, %s262
      %s280 = sphi 0, %s280
      %s282 = sphi 0, %s280
      %s283 = sphi 0, %s282
      %s297 = sphi 0, %s283
      %s301 = sphi 0, %s301
      %s303 = sphi 0, %s301
      %s304 = sphi 0, %s303
      %s318 = sphi 0, %s304
      %s322 = sphi 0, %s322
      %s324 = sphi 0, %s322
      %s325 = sphi 0, %s324
      %s339 = sphi 0, %s325
      %s343 = sphi 0, %s343
      %s345 = sphi 0, %s343
      %s346 = sphi 0, %s345
      %s360 = sphi 0, %s346
      %s364 = sphi 0, %s364
      %s366 = sphi 0, %s364
      %s367 = sphi 0, %s366
      %s381 = sphi 0, %s367
      %s385 = sphi 0, %s385
      %s387 = sphi 0, %s385
      %s388 = sphi 0, %s387
      %s402 = sphi 0, %s388
      %s406 = sphi 0, %s406
      %s408 = sphi 0, %s406
      %s409 = sphi 0, %s408
      %s423 = sphi 0, %s409
      %s427 = sphi 0, %s427
      %s429 = sphi 0, %s427
      %s430 = sphi 0, %s429
      %s444 = sphi 0, %s430
      %s450 = sphi 0, %s452
      %s453 = sphi 0, %s450
      %s454 = sphi 0, %s453
      %s470 = sphi 0, %s454
    $region4: #{tpu_custom_call.1} parent=1 // loop_header_branch
      %39 = sbr.rel (%p37) target = $region8
    $region5: #{tpu_custom_call.1} parent=1 // loop_body
      %s41 = ssub.s32 %s36, 1
      %s42 = ssub.s32 %s36, 2
      %s43 = sadd.s32 %s36, 1
      %s44 = ssub.s32 %s36, %s43
      %p45 = scmp.eq.s32.totalorder %s44, 0
      %s47 = sadd.s32 %s46, 1
      %s48 = scalar_select %p45, %s46, %s47
      %p51 = pneg %p45
      %p52 = scmp.eq.s32.totalorder %s36, 1
      %p53 = por %p51, %p52
      %p54 = scmp.ne.s32.totalorder %s46, %s49
      %p55 = scmp.eq.s32.totalorder %s36, 0
      %p56 = por %p54, %p55
      %p57 = scmp.ne.s32.totalorder %s46, %s49
      %p58 = scmp.eq.s32.totalorder %s41, 1
      %p59 = por %p57, %p58
      %p60 = scmp.ne.s32.totalorder %s49, %s50
      %p61 = scmp.eq.s32.totalorder %s41, 0
      %p62 = por %p60, %p61
      %p63 = scmp.ne.s32.totalorder %s49, %s50
      %p64 = scmp.eq.s32.totalorder %s42, 1
      %p65 = por %p63, %p64
      %p67 = scmp.ne.s32.totalorder %s50, %s66
      %p68 = scmp.eq.s32.totalorder %s42, 0
      %p69 = por %p67, %p68
      %s71 = sadd.s32 %s70, 1
      %p74 = scmp.eq.s32.totalorder %s36, 1
      %p75 = scmp.ne.s32.totalorder %s70, %s72
      %p76 = scmp.eq.s32.totalorder %s36, 0
      %p77 = por %p75, %p76
      %p78 = scmp.ne.s32.totalorder %s70, %s72
      %p79 = scmp.eq.s32.totalorder %s41, 1
      %p80 = por %p78, %p79
      %p81 = scmp.ne.s32.totalorder %s72, %s73
      %p82 = scmp.eq.s32.totalorder %s41, 0
      %p83 = por %p81, %p82
      %p84 = scmp.ne.s32.totalorder %s72, %s73
      %p85 = scmp.eq.s32.totalorder %s42, 1
      %p86 = por %p84, %p85
      %p88 = scmp.ne.s32.totalorder %s73, %s87
      %p89 = scmp.eq.s32.totalorder %s42, 0
      %p90 = por %p88, %p89
      %s92 = sadd.s32 %s91, 1
      %p95 = scmp.eq.s32.totalorder %s36, 1
      %p96 = scmp.ne.s32.totalorder %s91, %s93
      %p97 = scmp.eq.s32.totalorder %s36, 0
      %p98 = por %p96, %p97
      %p99 = scmp.ne.s32.totalorder %s91, %s93
      %p100 = scmp.eq.s32.totalorder %s41, 1
      %p101 = por %p99, %p100
      %p102 = scmp.ne.s32.totalorder %s93, %s94
      %p103 = scmp.eq.s32.totalorder %s41, 0
      %p104 = por %p102, %p103
      %p105 = scmp.ne.s32.totalorder %s93, %s94
      %p106 = scmp.eq.s32.totalorder %s42, 1
      %p107 = por %p105, %p106
      %p109 = scmp.ne.s32.totalorder %s94, %s108
      %p110 = scmp.eq.s32.totalorder %s42, 0
      %p111 = por %p109, %p110
      %s113 = sadd.s32 %s112, 1
      %p116 = scmp.eq.s32.totalorder %s36, 1
      %p117 = scmp.ne.s32.totalorder %s112, %s114
      %p118 = scmp.eq.s32.totalorder %s36, 0
      %p119 = por %p117, %p118
      %p120 = scmp.ne.s32.totalorder %s112, %s114
      %p121 = scmp.eq.s32.totalorder %s41, 1
      %p122 = por %p120, %p121
      %p123 = scmp.ne.s32.totalorder %s114, %s115
      %p124 = scmp.eq.s32.totalorder %s41, 0
      %p125 = por %p123, %p124
      %p126 = scmp.ne.s32.totalorder %s114, %s115
      %p127 = scmp.eq.s32.totalorder %s42, 1
      %p128 = por %p126, %p127
      %p130 = scmp.ne.s32.totalorder %s115, %s129
      %p131 = scmp.eq.s32.totalorder %s42, 0
      %p132 = por %p130, %p131
      %s134 = sadd.s32 %s133, 1
      %p137 = scmp.eq.s32.totalorder %s36, 1
      %p138 = scmp.ne.s32.totalorder %s133, %s135
      %p139 = scmp.eq.s32.totalorder %s36, 0
      %p140 = por %p138, %p139
      %p141 = scmp.ne.s32.totalorder %s133, %s135
      %p142 = scmp.eq.s32.totalorder %s41, 1
      %p143 = por %p141, %p142
      %p144 = scmp.ne.s32.totalorder %s135, %s136
      %p145 = scmp.eq.s32.totalorder %s41, 0
      %p146 = por %p144, %p145
      %p147 = scmp.ne.s32.totalorder %s135, %s136
      %p148 = scmp.eq.s32.totalorder %s42, 1
      %p149 = por %p147, %p148
      %p151 = scmp.ne.s32.totalorder %s136, %s150
      %p152 = scmp.eq.s32.totalorder %s42, 0
      %p153 = por %p151, %p152
      %s155 = sadd.s32 %s154, 1
      %p158 = scmp.eq.s32.totalorder %s36, 1
      %p159 = scmp.ne.s32.totalorder %s154, %s156
      %p160 = scmp.eq.s32.totalorder %s36, 0
      %p161 = por %p159, %p160
      %p162 = scmp.ne.s32.totalorder %s154, %s156
      %p163 = scmp.eq.s32.totalorder %s41, 1
      %p164 = por %p162, %p163
      %p165 = scmp.ne.s32.totalorder %s156, %s157
      %p166 = scmp.eq.s32.totalorder %s41, 0
      %p167 = por %p165, %p166
      %p168 = scmp.ne.s32.totalorder %s156, %s157
      %p169 = scmp.eq.s32.totalorder %s42, 1
      %p170 = por %p168, %p169
      %p172 = scmp.ne.s32.totalorder %s157, %s171
      %p173 = scmp.eq.s32.totalorder %s42, 0
      %p174 = por %p172, %p173
      %s176 = sadd.s32 %s175, 1
      %p179 = scmp.eq.s32.totalorder %s36, 1
      %p180 = scmp.ne.s32.totalorder %s175, %s177
      %p181 = scmp.eq.s32.totalorder %s36, 0
      %p182 = por %p180, %p181
      %p183 = scmp.ne.s32.totalorder %s175, %s177
      %p184 = scmp.eq.s32.totalorder %s41, 1
      %p185 = por %p183, %p184
      %p186 = scmp.ne.s32.totalorder %s177, %s178
      %p187 = scmp.eq.s32.totalorder %s41, 0
      %p188 = por %p186, %p187
      %p189 = scmp.ne.s32.totalorder %s177, %s178
      %p190 = scmp.eq.s32.totalorder %s42, 1
      %p191 = por %p189, %p190
      %p193 = scmp.ne.s32.totalorder %s178, %s192
      %p194 = scmp.eq.s32.totalorder %s42, 0
      %p195 = por %p193, %p194
      %s197 = sadd.s32 %s196, 1
      %p200 = scmp.eq.s32.totalorder %s36, 1
      %p201 = scmp.ne.s32.totalorder %s196, %s198
      %p202 = scmp.eq.s32.totalorder %s36, 0
      %p203 = por %p201, %p202
      %p204 = scmp.ne.s32.totalorder %s196, %s198
      %p205 = scmp.eq.s32.totalorder %s41, 1
      %p206 = por %p204, %p205
      %p207 = scmp.ne.s32.totalorder %s198, %s199
      %p208 = scmp.eq.s32.totalorder %s41, 0
      %p209 = por %p207, %p208
      %p210 = scmp.ne.s32.totalorder %s198, %s199
      %p211 = scmp.eq.s32.totalorder %s42, 1
      %p212 = por %p210, %p211
      %p214 = scmp.ne.s32.totalorder %s199, %s213
      %p215 = scmp.eq.s32.totalorder %s42, 0
      %p216 = por %p214, %p215
      %s218 = sadd.s32 %s217, 1
      %p221 = scmp.eq.s32.totalorder %s36, 1
      %p222 = scmp.ne.s32.totalorder %s217, %s219
      %p223 = scmp.eq.s32.totalorder %s36, 0
      %p224 = por %p222, %p223
      %p225 = scmp.ne.s32.totalorder %s217, %s219
      %p226 = scmp.eq.s32.totalorder %s41, 1
      %p227 = por %p225, %p226
      %p228 = scmp.ne.s32.totalorder %s219, %s220
      %p229 = scmp.eq.s32.totalorder %s41, 0
      %p230 = por %p228, %p229
      %p231 = scmp.ne.s32.totalorder %s219, %s220
      %p232 = scmp.eq.s32.totalorder %s42, 1
      %p233 = por %p231, %p232
      %p235 = scmp.ne.s32.totalorder %s220, %s234
      %p236 = scmp.eq.s32.totalorder %s42, 0
      %p237 = por %p235, %p236
      %s239 = sadd.s32 %s238, 1
      %p242 = scmp.eq.s32.totalorder %s36, 1
      %p243 = scmp.ne.s32.totalorder %s238, %s240
      %p244 = scmp.eq.s32.totalorder %s36, 0
      %p245 = por %p243, %p244
      %p246 = scmp.ne.s32.totalorder %s238, %s240
      %p247 = scmp.eq.s32.totalorder %s41, 1
      %p248 = por %p246, %p247
      %p249 = scmp.ne.s32.totalorder %s240, %s241
      %p250 = scmp.eq.s32.totalorder %s41, 0
      %p251 = por %p249, %p250
      %p252 = scmp.ne.s32.totalorder %s240, %s241
      %p253 = scmp.eq.s32.totalorder %s42, 1
      %p254 = por %p252, %p253
      %p256 = scmp.ne.s32.totalorder %s241, %s255
      %p257 = scmp.eq.s32.totalorder %s42, 0
      %p258 = por %p256, %p257
      %s260 = sadd.s32 %s259, 1
      %p263 = scmp.eq.s32.totalorder %s36, 1
      %p264 = scmp.ne.s32.totalorder %s259, %s261
      %p265 = scmp.eq.s32.totalorder %s36, 0
      %p266 = por %p264, %p265
      %p267 = scmp.ne.s32.totalorder %s259, %s261
      %p268 = scmp.eq.s32.totalorder %s41, 1
      %p269 = por %p267, %p268
      %p270 = scmp.ne.s32.totalorder %s261, %s262
      %p271 = scmp.eq.s32.totalorder %s41, 0
      %p272 = por %p270, %p271
      %p273 = scmp.ne.s32.totalorder %s261, %s262
      %p274 = scmp.eq.s32.totalorder %s42, 1
      %p275 = por %p273, %p274
      %p277 = scmp.ne.s32.totalorder %s262, %s276
      %p278 = scmp.eq.s32.totalorder %s42, 0
      %p279 = por %p277, %p278
      %s281 = sadd.s32 %s280, 1
      %p284 = scmp.eq.s32.totalorder %s36, 1
      %p285 = scmp.ne.s32.totalorder %s280, %s282
      %p286 = scmp.eq.s32.totalorder %s36, 0
      %p287 = por %p285, %p286
      %p288 = scmp.ne.s32.totalorder %s280, %s282
      %p289 = scmp.eq.s32.totalorder %s41, 1
      %p290 = por %p288, %p289
      %p291 = scmp.ne.s32.totalorder %s282, %s283
      %p292 = scmp.eq.s32.totalorder %s41, 0
      %p293 = por %p291, %p292
      %p294 = scmp.ne.s32.totalorder %s282, %s283
      %p295 = scmp.eq.s32.totalorder %s42, 1
      %p296 = por %p294, %p295
      %p298 = scmp.ne.s32.totalorder %s283, %s297
      %p299 = scmp.eq.s32.totalorder %s42, 0
      %p300 = por %p298, %p299
      %s302 = sadd.s32 %s301, 1
      %p305 = scmp.eq.s32.totalorder %s36, 1
      %p306 = scmp.ne.s32.totalorder %s301, %s303
      %p307 = scmp.eq.s32.totalorder %s36, 0
      %p308 = por %p306, %p307
      %p309 = scmp.ne.s32.totalorder %s301, %s303
      %p310 = scmp.eq.s32.totalorder %s41, 1
      %p311 = por %p309, %p310
      %p312 = scmp.ne.s32.totalorder %s303, %s304
      %p313 = scmp.eq.s32.totalorder %s41, 0
      %p314 = por %p312, %p313
      %p315 = scmp.ne.s32.totalorder %s303, %s304
      %p316 = scmp.eq.s32.totalorder %s42, 1
      %p317 = por %p315, %p316
      %p319 = scmp.ne.s32.totalorder %s304, %s318
      %p320 = scmp.eq.s32.totalorder %s42, 0
      %p321 = por %p319, %p320
      %s323 = sadd.s32 %s322, 1
      %p326 = scmp.eq.s32.totalorder %s36, 1
      %p327 = scmp.ne.s32.totalorder %s322, %s324
      %p328 = scmp.eq.s32.totalorder %s36, 0
      %p329 = por %p327, %p328
      %p330 = scmp.ne.s32.totalorder %s322, %s324
      %p331 = scmp.eq.s32.totalorder %s41, 1
      %p332 = por %p330, %p331
      %p333 = scmp.ne.s32.totalorder %s324, %s325
      %p334 = scmp.eq.s32.totalorder %s41, 0
      %p335 = por %p333, %p334
      %p336 = scmp.ne.s32.totalorder %s324, %s325
      %p337 = scmp.eq.s32.totalorder %s42, 1
      %p338 = por %p336, %p337
      %p340 = scmp.ne.s32.totalorder %s325, %s339
      %p341 = scmp.eq.s32.totalorder %s42, 0
      %p342 = por %p340, %p341
      %s344 = sadd.s32 %s343, 1
      %p347 = scmp.eq.s32.totalorder %s36, 1
      %p348 = scmp.ne.s32.totalorder %s343, %s345
      %p349 = scmp.eq.s32.totalorder %s36, 0
      %p350 = por %p348, %p349
      %p351 = scmp.ne.s32.totalorder %s343, %s345
      %p352 = scmp.eq.s32.totalorder %s41, 1
      %p353 = por %p351, %p352
      %p354 = scmp.ne.s32.totalorder %s345, %s346
      %p355 = scmp.eq.s32.totalorder %s41, 0
      %p356 = por %p354, %p355
      %p357 = scmp.ne.s32.totalorder %s345, %s346
      %p358 = scmp.eq.s32.totalorder %s42, 1
      %p359 = por %p357, %p358
      %p361 = scmp.ne.s32.totalorder %s346, %s360
      %p362 = scmp.eq.s32.totalorder %s42, 0
      %p363 = por %p361, %p362
      %s365 = sadd.s32 %s364, 1
      %p368 = scmp.eq.s32.totalorder %s36, 1
      %p369 = scmp.ne.s32.totalorder %s364, %s366
      %p370 = scmp.eq.s32.totalorder %s36, 0
      %p371 = por %p369, %p370
      %p372 = scmp.ne.s32.totalorder %s364, %s366
      %p373 = scmp.eq.s32.totalorder %s41, 1
      %p374 = por %p372, %p373
      %p375 = scmp.ne.s32.totalorder %s366, %s367
      %p376 = scmp.eq.s32.totalorder %s41, 0
      %p377 = por %p375, %p376
      %p378 = scmp.ne.s32.totalorder %s366, %s367
      %p379 = scmp.eq.s32.totalorder %s42, 1
      %p380 = por %p378, %p379
      %p382 = scmp.ne.s32.totalorder %s367, %s381
      %p383 = scmp.eq.s32.totalorder %s42, 0
      %p384 = por %p382, %p383
      %s386 = sadd.s32 %s385, 1
      %p389 = scmp.eq.s32.totalorder %s36, 1
      %p390 = scmp.ne.s32.totalorder %s385, %s387
      %p391 = scmp.eq.s32.totalorder %s36, 0
      %p392 = por %p390, %p391
      %p393 = scmp.ne.s32.totalorder %s385, %s387
      %p394 = scmp.eq.s32.totalorder %s41, 1
      %p395 = por %p393, %p394
      %p396 = scmp.ne.s32.totalorder %s387, %s388
      %p397 = scmp.eq.s32.totalorder %s41, 0
      %p398 = por %p396, %p397
      %p399 = scmp.ne.s32.totalorder %s387, %s388
      %p400 = scmp.eq.s32.totalorder %s42, 1
      %p401 = por %p399, %p400
      %p403 = scmp.ne.s32.totalorder %s388, %s402
      %p404 = scmp.eq.s32.totalorder %s42, 0
      %p405 = por %p403, %p404
      %s407 = sadd.s32 %s406, 1
      %p410 = scmp.eq.s32.totalorder %s36, 1
      %p411 = scmp.ne.s32.totalorder %s406, %s408
      %p412 = scmp.eq.s32.totalorder %s36, 0
      %p413 = por %p411, %p412
      %p414 = scmp.ne.s32.totalorder %s406, %s408
      %p415 = scmp.eq.s32.totalorder %s41, 1
      %p416 = por %p414, %p415
      %p417 = scmp.ne.s32.totalorder %s408, %s409
      %p418 = scmp.eq.s32.totalorder %s41, 0
      %p419 = por %p417, %p418
      %p420 = scmp.ne.s32.totalorder %s408, %s409
      %p421 = scmp.eq.s32.totalorder %s42, 1
      %p422 = por %p420, %p421
      %p424 = scmp.ne.s32.totalorder %s409, %s423
      %p425 = scmp.eq.s32.totalorder %s42, 0
      %p426 = por %p424, %p425
      %s428 = sadd.s32 %s427, 1
      %p431 = scmp.eq.s32.totalorder %s36, 1
      %p432 = scmp.ne.s32.totalorder %s427, %s429
      %p433 = scmp.eq.s32.totalorder %s36, 0
      %p434 = por %p432, %p433
      %p435 = scmp.ne.s32.totalorder %s427, %s429
      %p436 = scmp.eq.s32.totalorder %s41, 1
      %p437 = por %p435, %p436
      %p438 = scmp.ne.s32.totalorder %s429, %s430
      %p439 = scmp.eq.s32.totalorder %s41, 0
      %p440 = por %p438, %p439
      %p441 = scmp.ne.s32.totalorder %s429, %s430
      %p442 = scmp.eq.s32.totalorder %s42, 1
      %p443 = por %p441, %p442
      %p445 = scmp.ne.s32.totalorder %s430, %s444
      %p446 = scmp.eq.s32.totalorder %s42, 0
      %p447 = por %p445, %p446
      %s448 = ssub.s32 %s36, %s43
      %p449 = scmp.eq.s32.totalorder %s448, 0
      %s451 = sadd.s32 %s450, 1
      %s452 = scalar_select %p449, %s450, %s451
      %p455 = pneg %p449
      %p456 = scmp.eq.s32.totalorder %s36, 1
      %p457 = por %p455, %p456
      %p458 = scmp.ne.s32.totalorder %s450, %s453
      %p459 = scmp.eq.s32.totalorder %s36, 0
      %p460 = por %p458, %p459
      %p461 = scmp.ne.s32.totalorder %s450, %s453
      %p462 = scmp.eq.s32.totalorder %s41, 1
      %p463 = por %p461, %p462
      %p464 = scmp.ne.s32.totalorder %s453, %s454
      %p465 = scmp.eq.s32.totalorder %s41, 0
      %p466 = por %p464, %p465
      %p467 = scmp.ne.s32.totalorder %s453, %s454
      %p468 = scmp.eq.s32.totalorder %s42, 1
      %p469 = por %p467, %p468
      %p471 = scmp.ne.s32.totalorder %s454, %s470
      %p472 = scmp.eq.s32.totalorder %s42, 0
      %p473 = por %p471, %p472
      %p474 = scmp.le.s32.totalorder 1, %s36
      %p475 = scmp.lt.s32.totalorder %s36, 3
      %p476 = pnand %p474, %p475
      %p477 = pneg %p476
      // Predicated region
      $region9: #{tpu_custom_call.1} parent=5 // pred_check
        _
      $region10: #{tpu_custom_call.1} parent=5 // pred_check_branch
        %479 = sbr.rel (%p476) target = $region12
      $region11: #{tpu_custom_call.1} parent=5 // pred_region
        %s480 = ssub.s32 %s36, 1
        // Predicated region
        $region13: #{tpu_custom_call.1} parent=11 // pred_check
          %p481 = pneg %p83
        $region14: #{tpu_custom_call.1} parent=11 // pred_check_branch
          %483 = sbr.rel (%p481) target = $region16
        $region15: #{tpu_custom_call.1} parent=11 // pred_region
          %s485 = ssub.s32 256, 256
          %486 = vsyncadd [#allocation13], %s485
          %s487 = sshll.u32 [#allocation12], 4
          %s488 = int_to_ptr.vmem [resolvable:$true] %s487
          %493 = dma.hbm_to_vmem [thread:$0]  %s1, 256, %s488, [#allocation13], 64, 64, 4
        $region16: #{tpu_custom_call.1} parent=11 // pred_fallthru
          _
        // Predicated region
        $region17: #{tpu_custom_call.1} parent=11 // pred_check
          %p494 = pneg %p104
        $region18: #{tpu_custom_call.1} parent=11 // pred_check_branch
          %496 = sbr.rel (%p494) target = $region20
        $region19: #{tpu_custom_call.1} parent=11 // pred_region
          %s498 = ssub.s32 16, 16
          %499 = vsyncadd [#allocation13], %s498
          %s501 = sshll.u32 [#allocation14], 4
          %s502 = int_to_ptr.vmem [resolvable:$true] %s501
          %504 = dma.hbm_to_vmem [thread:$0]  %s2, 16, %s502, [#allocation13]
        $region20: #{tpu_custom_call.1} parent=11 // pred_fallthru
          _
        // Predicated region
        $region21: #{tpu_custom_call.1} parent=11 // pred_check
          %p505 = pneg %p125
        $region22: #{tpu_custom_call.1} parent=11 // pred_check_branch
          %507 = sbr.rel (%p505) target = $region24
        $region23: #{tpu_custom_call.1} parent=11 // pred_region
          %s509 = ssub.s32 256, 256
          %510 = vsyncadd [#allocation16], %s509
          %s511 = sshll.u32 [#allocation15], 4
          %s512 = int_to_ptr.vmem [resolvable:$true] %s511
          %517 = dma.hbm_to_vmem [thread:$0]  %s3, 256, %s512, [#allocation16], 64, 64, 4
        $region24: #{tpu_custom_call.1} parent=11 // pred_fallthru
          _
        // Predicated region
        $region25: #{tpu_custom_call.1} parent=11 // pred_check
          %p518 = pneg %p146
        $region26: #{tpu_custom_call.1} parent=11 // pred_check_branch
          %520 = sbr.rel (%p518) target = $region28
        $region27: #{tpu_custom_call.1} parent=11 // pred_region
          %s522 = ssub.s32 16, 16
          %523 = vsyncadd [#allocation16], %s522
          %s525 = sshll.u32 [#allocation17], 4
          %s526 = int_to_ptr.vmem [resolvable:$true] %s525
          %528 = dma.hbm_to_vmem [thread:$0]  %s4, 16, %s526, [#allocation16]
        $region28: #{tpu_custom_call.1} parent=11 // pred_fallthru
          _
        // Predicated region
        $region29: #{tpu_custom_call.1} parent=11 // pred_check
          %p529 = pneg %p167
        $region30: #{tpu_custom_call.1} parent=11 // pred_check_branch
          %531 = sbr.rel (%p529) target = $region32
        $region31: #{tpu_custom_call.1} parent=11 // pred_region
          %s533 = ssub.s32 256, 256
          %534 = vsyncadd [#allocation19], %s533
          %s535 = sshll.u32 [#allocation18], 4
          %s536 = int_to_ptr.vmem [resolvable:$true] %s535
          %541 = dma.hbm_to_vmem [thread:$0]  %s5, 256, %s536, [#allocation19], 64, 64, 4
        $region32: #{tpu_custom_call.1} parent=11 // pred_fallthru
          _
        // Predicated region
        $region33: #{tpu_custom_call.1} parent=11 // pred_check
          %p542 = pneg %p188
        $region34: #{tpu_custom_call.1} parent=11 // pred_check_branch
          %544 = sbr.rel (%p542) target = $region36
        $region35: #{tpu_custom_call.1} parent=11 // pred_region
          %s546 = ssub.s32 16, 16
          %547 = vsyncadd [#allocation19], %s546
          %s549 = sshll.u32 [#allocation20], 4
          %s550 = int_to_ptr.vmem [resolvable:$true] %s549
          %552 = dma.hbm_to_vmem [thread:$0]  %s6, 16, %s550, [#allocation19]
        $region36: #{tpu_custom_call.1} parent=11 // pred_fallthru
          _
        // Predicated region
        $region37: #{tpu_custom_call.1} parent=11 // pred_check
          %p553 = pneg %p209
        $region38: #{tpu_custom_call.1} parent=11 // pred_check_branch
          %555 = sbr.rel (%p553) target = $region40
        $region39: #{tpu_custom_call.1} parent=11 // pred_region
          %s557 = ssub.s32 256, 256
          %558 = vsyncadd [#allocation22], %s557
          %s559 = sshll.u32 [#allocation21], 4
          %s560 = int_to_ptr.vmem [resolvable:$true] %s559
          %565 = dma.hbm_to_vmem [thread:$0]  %s7, 256, %s560, [#allocation22], 64, 64, 4
        $region40: #{tpu_custom_call.1} parent=11 // pred_fallthru
          _
        // Predicated region
        $region41: #{tpu_custom_call.1} parent=11 // pred_check
          %p566 = pneg %p230
        $region42: #{tpu_custom_call.1} parent=11 // pred_check_branch
          %568 = sbr.rel (%p566) target = $region44
        $region43: #{tpu_custom_call.1} parent=11 // pred_region
          %s570 = ssub.s32 16, 16
          %571 = vsyncadd [#allocation22], %s570
          %s573 = sshll.u32 [#allocation23], 4
          %s574 = int_to_ptr.vmem [resolvable:$true] %s573
          %576 = dma.hbm_to_vmem [thread:$0]  %s8, 16, %s574, [#allocation22]
        $region44: #{tpu_custom_call.1} parent=11 // pred_fallthru
          _
        // Predicated region
        $region45: #{tpu_custom_call.1} parent=11 // pred_check
          %p577 = pneg %p251
        $region46: #{tpu_custom_call.1} parent=11 // pred_check_branch
          %579 = sbr.rel (%p577) target = $region48
        $region47: #{tpu_custom_call.1} parent=11 // pred_region
          _
        $region48: #{tpu_custom_call.1} parent=11 // pred_fallthru
          _
        // Predicated region
        $region49: #{tpu_custom_call.1} parent=11 // pred_check
          %p580 = pneg %p272
        $region50: #{tpu_custom_call.1} parent=11 // pred_check_branch
          %582 = sbr.rel (%p580) target = $region52
        $region51: #{tpu_custom_call.1} parent=11 // pred_region
          _
        $region52: #{tpu_custom_call.1} parent=11 // pred_fallthru
          _
        // Predicated region
        $region53: #{tpu_custom_call.1} parent=11 // pred_check
          %p583 = pneg %p293
        $region54: #{tpu_custom_call.1} parent=11 // pred_check_branch
          %585 = sbr.rel (%p583) target = $region56
        $region55: #{tpu_custom_call.1} parent=11 // pred_region
          _
        $region56: #{tpu_custom_call.1} parent=11 // pred_fallthru
          _
        // Predicated region
        $region57: #{tpu_custom_call.1} parent=11 // pred_check
          %p586 = pneg %p314
        $region58: #{tpu_custom_call.1} parent=11 // pred_check_branch
          %588 = sbr.rel (%p586) target = $region60
        $region59: #{tpu_custom_call.1} parent=11 // pred_region
          _
        $region60: #{tpu_custom_call.1} parent=11 // pred_fallthru
          _
        // Predicated region
        $region61: #{tpu_custom_call.1} parent=11 // pred_check
          %p589 = pneg %p335
        $region62: #{tpu_custom_call.1} parent=11 // pred_check_branch
          %591 = sbr.rel (%p589) target = $region64
        $region63: #{tpu_custom_call.1} parent=11 // pred_region
          %s593 = ssub.s32 256, 256
          %594 = vsyncadd [#allocation25], %s593
          %s595 = sshll.u32 [#allocation24], 4
          %s596 = int_to_ptr.vmem [resolvable:$true] %s595
          %601 = dma.hbm_to_vmem [thread:$0]  %s13, 256, %s596, [#allocation25], 64, 64, 4
        $region64: #{tpu_custom_call.1} parent=11 // pred_fallthru
          _
        // Predicated region
        $region65: #{tpu_custom_call.1} parent=11 // pred_check
          %p602 = pneg %p356
        $region66: #{tpu_custom_call.1} parent=11 // pred_check_branch
          %604 = sbr.rel (%p602) target = $region68
        $region67: #{tpu_custom_call.1} parent=11 // pred_region
          _
        $region68: #{tpu_custom_call.1} parent=11 // pred_fallthru
          _
        // Predicated region
        $region69: #{tpu_custom_call.1} parent=11 // pred_check
          %p605 = pneg %p377
        $region70: #{tpu_custom_call.1} parent=11 // pred_check_branch
          %607 = sbr.rel (%p605) target = $region72
        $region71: #{tpu_custom_call.1} parent=11 // pred_region
          _
        $region72: #{tpu_custom_call.1} parent=11 // pred_fallthru
          _
        // Predicated region
        $region73: #{tpu_custom_call.1} parent=11 // pred_check
          %p608 = pneg %p398
        $region74: #{tpu_custom_call.1} parent=11 // pred_check_branch
          %610 = sbr.rel (%p608) target = $region76
        $region75: #{tpu_custom_call.1} parent=11 // pred_region
          _
        $region76: #{tpu_custom_call.1} parent=11 // pred_fallthru
          _
        // Predicated region
        $region77: #{tpu_custom_call.1} parent=11 // pred_check
          %p611 = pneg %p419
        $region78: #{tpu_custom_call.1} parent=11 // pred_check_branch
          %613 = sbr.rel (%p611) target = $region80
        $region79: #{tpu_custom_call.1} parent=11 // pred_region
          _
        $region80: #{tpu_custom_call.1} parent=11 // pred_fallthru
          _
        // Predicated region
        $region81: #{tpu_custom_call.1} parent=11 // pred_check
          %p614 = pneg %p440
        $region82: #{tpu_custom_call.1} parent=11 // pred_check_branch
          %616 = sbr.rel (%p614) target = $region84
        $region83: #{tpu_custom_call.1} parent=11 // pred_region
          _
        $region84: #{tpu_custom_call.1} parent=11 // pred_fallthru
          _
      $region12: #{tpu_custom_call.1} parent=5 // pred_fallthru
        _
      %p617 = scmp.lt.s32.totalorder %s36, 2
      // Predicated region
      $region85: #{tpu_custom_call.1} parent=5 // pred_check
        %p618 = pneg %p617
      $region86: #{tpu_custom_call.1} parent=5 // pred_check_branch
        %620 = sbr.rel (%p618) target = $region88
      $region87: #{tpu_custom_call.1} parent=5 // pred_region
        // Predicated region
        $region89: #{tpu_custom_call.1} parent=87 // pred_check
          %p621 = pneg %p56
        $region90: #{tpu_custom_call.1} parent=87 // pred_check_branch
          %623 = sbr.rel (%p621) target = $region92
        $region91: #{tpu_custom_call.1} parent=87 // pred_region
          %s624 = sand.u32 %s46, 1
          %s625 = scalar_lea.sflag [#allocation10], %s624
          %s626 = sand.u32 %s46, 1
          %s627 = smul.addr %s626, 8
          %s628 = scalar_lea.vmem [#allocation9], %s627
          %s630 = ssub.s32 128, 128
          %631 = vsyncadd %s625, %s630
          %s632 = smul.addr %s36, 128
          %s633 = scalar_lea.hbm %s0, %s632
          %s635 = sshll.u32 %s628, 4
          %s636 = int_to_ptr.vmem [resolvable:$true] %s635
          %638 = dma.hbm_to_vmem [thread:$0]  %s633, 128, %s636, %s625
        $region92: #{tpu_custom_call.1} parent=87 // pred_fallthru
          _
      $region88: #{tpu_custom_call.1} parent=5 // pred_fallthru
        _
      %p639 = scmp.le.s32.totalorder 1, %s36
      %p640 = scmp.lt.s32.totalorder %s36, 3
      %p641 = pnand %p639, %p640
      %p642 = pneg %p641
      // Predicated region
      $region93: #{tpu_custom_call.1} parent=5 // pred_check
        _
      $region94: #{tpu_custom_call.1} parent=5 // pred_check_branch
        %644 = sbr.rel (%p641) target = $region96
      $region95: #{tpu_custom_call.1} parent=5 // pred_region
        %s645 = ssub.s32 %s36, 1
        %s646 = sand.u32 %s49, 1
        %s647 = scalar_lea.sflag [#allocation10], %s646
        %s648 = sand.u32 %s49, 1
        %s649 = smul.addr %s648, 8
        %s650 = scalar_lea.vmem [#allocation9], %s649
        // Predicated region
        $region97: #{tpu_custom_call.1} parent=95 // pred_check
          %p651 = pneg %p62
        $region98: #{tpu_custom_call.1} parent=95 // pred_check_branch
          %653 = sbr.rel (%p651) target = $region100
        $region99: #{tpu_custom_call.1} parent=95 // pred_region
          %654 = dma.done %s647, 128
        $region100: #{tpu_custom_call.1} parent=95 // pred_fallthru
          _
        // Predicated region
        $region101: #{tpu_custom_call.1} parent=95 // pred_check
          %p655 = pneg %p83
        $region102: #{tpu_custom_call.1} parent=95 // pred_check_branch
          %657 = sbr.rel (%p655) target = $region104
        $region103: #{tpu_custom_call.1} parent=95 // pred_region
          %658 = dma.done [#allocation13], 256
        $region104: #{tpu_custom_call.1} parent=95 // pred_fallthru
          _
        // Predicated region
        $region105: #{tpu_custom_call.1} parent=95 // pred_check
          %p659 = pneg %p104
        $region106: #{tpu_custom_call.1} parent=95 // pred_check_branch
          %661 = sbr.rel (%p659) target = $region108
        $region107: #{tpu_custom_call.1} parent=95 // pred_region
          %662 = dma.done [#allocation13], 16
        $region108: #{tpu_custom_call.1} parent=95 // pred_fallthru
          _
        // Predicated region
        $region109: #{tpu_custom_call.1} parent=95 // pred_check
          %p663 = pneg %p125
        $region110: #{tpu_custom_call.1} parent=95 // pred_check_branch
          %665 = sbr.rel (%p663) target = $region112
        $region111: #{tpu_custom_call.1} parent=95 // pred_region
          %666 = dma.done [#allocation16], 256
        $region112: #{tpu_custom_call.1} parent=95 // pred_fallthru
          _
        // Predicated region
        $region113: #{tpu_custom_call.1} parent=95 // pred_check
          %p667 = pneg %p146
        $region114: #{tpu_custom_call.1} parent=95 // pred_check_branch
          %669 = sbr.rel (%p667) target = $region116
        $region115: #{tpu_custom_call.1} parent=95 // pred_region
          %670 = dma.done [#allocation16], 16
        $region116: #{tpu_custom_call.1} parent=95 // pred_fallthru
          _
        // Predicated region
        $region117: #{tpu_custom_call.1} parent=95 // pred_check
          %p671 = pneg %p167
        $region118: #{tpu_custom_call.1} parent=95 // pred_check_branch
          %673 = sbr.rel (%p671) target = $region120
        $region119: #{tpu_custom_call.1} parent=95 // pred_region
          %674 = dma.done [#allocation19], 256
        $region120: #{tpu_custom_call.1} parent=95 // pred_fallthru
          _
        // Predicated region
        $region121: #{tpu_custom_call.1} parent=95 // pred_check
          %p675 = pneg %p188
        $region122: #{tpu_custom_call.1} parent=95 // pred_check_branch
          %677 = sbr.rel (%p675) target = $region124
        $region123: #{tpu_custom_call.1} parent=95 // pred_region
          %678 = dma.done [#allocation19], 16
        $region124: #{tpu_custom_call.1} parent=95 // pred_fallthru
          _
        // Predicated region
        $region125: #{tpu_custom_call.1} parent=95 // pred_check
          %p679 = pneg %p209
        $region126: #{tpu_custom_call.1} parent=95 // pred_check_branch
          %681 = sbr.rel (%p679) target = $region128
        $region127: #{tpu_custom_call.1} parent=95 // pred_region
          %682 = dma.done [#allocation22], 256
        $region128: #{tpu_custom_call.1} parent=95 // pred_fallthru
          _
        // Predicated region
        $region129: #{tpu_custom_call.1} parent=95 // pred_check
          %p683 = pneg %p230
        $region130: #{tpu_custom_call.1} parent=95 // pred_check_branch
          %685 = sbr.rel (%p683) target = $region132
        $region131: #{tpu_custom_call.1} parent=95 // pred_region
          %686 = dma.done [#allocation22], 16
        $region132: #{tpu_custom_call.1} parent=95 // pred_fallthru
          _
        // Predicated region
        $region133: #{tpu_custom_call.1} parent=95 // pred_check
          %p687 = pneg %p335
        $region134: #{tpu_custom_call.1} parent=95 // pred_check_branch
          %689 = sbr.rel (%p687) target = $region136
        $region135: #{tpu_custom_call.1} parent=95 // pred_region
          %690 = dma.done [#allocation25], 256
        $region136: #{tpu_custom_call.1} parent=95 // pred_fallthru
          _
        %s691 = sand.u32 %s49, 1
        %s692 = scalar_lea.sflag [#allocation10], %s691
        %s693 = sand.u32 %s49, 1
        %s694 = smul.addr %s693, 8
        %s695 = scalar_lea.vmem [#allocation9], %s694
        %p696 = pneg %p62
        %p697 = pneg %p59
        %p698 = pneg %p83
        %p699 = pneg %p80
        %p700 = pneg %p104
        %p701 = pneg %p101
        %p702 = pneg %p125
        %p703 = pneg %p122
        %p704 = pneg %p146
        %p705 = pneg %p143
        %p706 = pneg %p167
        %p707 = pneg %p164
        %p708 = pneg %p188
        %p709 = pneg %p185
        %p710 = pneg %p209
        %p711 = pneg %p206
        %p712 = pneg %p230
        %p713 = pneg %p227
        %p714 = pneg %p251
        %p715 = pneg %p248
        %p716 = pneg %p272
        %p717 = pneg %p269
        %p718 = pneg %p293
        %p719 = pneg %p290
        %p720 = pneg %p314
        %p721 = pneg %p311
        %p722 = pneg %p335
        %p723 = pneg %p332
        %p724 = pneg %p356
        %p725 = pneg %p353
        %p726 = pneg %p377
        %p727 = pneg %p374
        %p728 = pneg %p398
        %p729 = pneg %p395
        %p730 = pneg %p419
        %p731 = pneg %p416
        %p732 = pneg %p440
        %p733 = pneg %p437
        %p734 = pneg %p466
        %p735 = pneg %p463
        %s736 = sand.u32 %s453, 1
        %s737 = scalar_lea.sflag [#allocation11], %s736
        %s738 = sand.u32 %s453, 1
        %s739 = smul.addr %s738, 8
        %s740 = scalar_lea.vmem [#allocation26], %s739
        %v742 = vld [vmem:[%s650] sm:$0xff]
        %v743 = vpack.c.bf16 %v742, %v742
        %v744 = vld [vmem:[#allocation12] sm:$0xf]
        %v745 = vld [vmem:[#allocation12 + $0x4] sm:$0xf]
        %v746 = vld [vmem:[#allocation12 + $0x8] sm:$0xf]
        %v747 = vld [vmem:[#allocation12 + $0xc] sm:$0xf]
        %v748 = vld [vmem:[#allocation14] sm:$0x1]
        %v750 = vlaneseq
        %v751 = vshrl.u32 %v750, 7
        %v752 = vsub.s32 0, %v751
        %v753 = vrot.slane %v748, %v752
        %v759 = vunpack.c.l.b16 %v744
        %v760 = vunpack.c.l.b16 %v745
        %v761 = vunpack.c.l.b16 %v746
        %v762 = vunpack.c.l.b16 %v747
        %v763 = vpack.c.b16 %v760, %v759
        %v764 = vpack.c.b16 %v762, %v761
        %vm767 = vcmask 261120
        %v769 = vsel %vm767, %v743, 0
        %771 = vmatprep.subr.bf16.mxu0 0
        %772 = vmatpush1.bf16.msra.mxu0 0
        %773 = vmatprep.subr.bf16.mxu0 0
        %774 = vmatpush1.bf16.msra.mxu0 0
        %775 = vmatprep.subr.bf16.mxu0 0
        %776 = vmatpush1.bf16.msra.mxu0 0
        %777 = vmatprep.subr.bf16.mxu0 0
        %778 = vmatpush1.bf16.msra.mxu0 0
        %779 = vmatprep.subr.bf16.mxu0 0
        %780 = vmatpush1.bf16.msra.mxu0 0
        %781 = vmatprep.subr.bf16.mxu0 0
        %782 = vmatpush1.bf16.msra.mxu0 0
        %783 = vmatprep.subr.bf16.mxu0 0
        %784 = vmatpush1.bf16.msra.mxu0 %v764
        %785 = vmatprep.subr.bf16.mxu0 0
        %786 = vmatpush1.bf16.msra.mxu0 %v763
        %787 = vmatprep.subr.bf16.mxu0 0
        %788 = vmatpush2.bf16.msra.mxu0 0
        %789 = vmatprep.subr.bf16.mxu0 0
        %790 = vmatpush2.bf16.msra.mxu0 0
        %791 = vmatprep.subr.bf16.mxu0 0
        %792 = vmatpush2.bf16.msra.mxu0 0
        %793 = vmatprep.subr.bf16.mxu0 0
        %794 = vmatpush2.bf16.msra.mxu0 0
        %795 = vmatprep.subr.bf16.mxu0 0
        %796 = vmatpush2.bf16.msra.mxu0 0
        %797 = vmatprep.subr.bf16.mxu0 0
        %798 = vmatpush2.bf16.msra.mxu0 0
        %799 = vmatprep.subr.bf16.mxu0 0
        %800 = vmatpush2.bf16.msra.mxu0 0
        %801 = vmatprep.subr.bf16.mxu0 0
        %802 = vmatpush2.bf16.msra.mxu0 0
        %803 = vmatprep.mubr.bf16.mxu0 0
        %804 = vmatmul.mubr.bf16.gmra.mxu0 %v769
        %v805 = vpop.f32.mrf.mxu0
        %v806 = vadd.f32 %v753, %v805
        %v807 = vpop.f32.mrf.mxu0
        %v808 = vpop.f32.mrf.mxu0
        %v809 = vpop.f32.mrf.mxu0
        %810 = vdwg.mxu0
        %v811 = vld [vmem:[#allocation15] sm:$0xf]
        %v812 = vld [vmem:[#allocation15 + $0x4] sm:$0xf]
        %v813 = vld [vmem:[#allocation15 + $0x8] sm:$0xf]
        %v814 = vld [vmem:[#allocation15 + $0xc] sm:$0xf]
        %v815 = vld [vmem:[#allocation17] sm:$0x1]
        %v817 = vlaneseq
        %v818 = vshrl.u32 %v817, 7
        %v819 = vsub.s32 0, %v818
        %v820 = vrot.slane %v815, %v819
        %v826 = vunpack.c.l.b16 %v811
        %v827 = vunpack.c.l.b16 %v812
        %v828 = vunpack.c.l.b16 %v813
        %v829 = vunpack.c.l.b16 %v814
        %v830 = vpack.c.b16 %v827, %v826
        %v831 = vpack.c.b16 %v829, %v828
        %834 = vmatprep.subr.bf16.mxu0 0
        %835 = vmatpush1.bf16.msra.mxu0 0
        %836 = vmatprep.subr.bf16.mxu0 0
        %837 = vmatpush1.bf16.msra.mxu0 0
        %838 = vmatprep.subr.bf16.mxu0 0
        %839 = vmatpush1.bf16.msra.mxu0 0
        %840 = vmatprep.subr.bf16.mxu0 0
        %841 = vmatpush1.bf16.msra.mxu0 0
        %842 = vmatprep.subr.bf16.mxu0 0
        %843 = vmatpush1.bf16.msra.mxu0 0
        %844 = vmatprep.subr.bf16.mxu0 0
        %845 = vmatpush1.bf16.msra.mxu0 0
        %846 = vmatprep.subr.bf16.mxu0 0
        %847 = vmatpush1.bf16.msra.mxu0 %v831
        %848 = vmatprep.subr.bf16.mxu0 0
        %849 = vmatpush1.bf16.msra.mxu0 %v830
        %850 = vmatprep.subr.bf16.mxu0 0
        %851 = vmatpush2.bf16.msra.mxu0 0
        %852 = vmatprep.subr.bf16.mxu0 0
        %853 = vmatpush2.bf16.msra.mxu0 0
        %854 = vmatprep.subr.bf16.mxu0 0
        %855 = vmatpush2.bf16.msra.mxu0 0
        %856 = vmatprep.subr.bf16.mxu0 0
        %857 = vmatpush2.bf16.msra.mxu0 0
        %858 = vmatprep.subr.bf16.mxu0 0
        %859 = vmatpush2.bf16.msra.mxu0 0
        %860 = vmatprep.subr.bf16.mxu0 0
        %861 = vmatpush2.bf16.msra.mxu0 0
        %862 = vmatprep.subr.bf16.mxu0 0
        %863 = vmatpush2.bf16.msra.mxu0 0
        %864 = vmatprep.subr.bf16.mxu0 0
        %865 = vmatpush2.bf16.msra.mxu0 0
        %866 = vmatprep.mubr.bf16.mxu0 0
        %867 = vmatmul.mubr.bf16.gmra.mxu0 %v769
        %v868 = vpop.f32.mrf.mxu0
        %v869 = vadd.f32 %v820, %v868
        %v870 = vpop.f32.mrf.mxu0
        %v871 = vpop.f32.mrf.mxu0
        %v872 = vpop.f32.mrf.mxu0
        %873 = vdwg.mxu0
        %v874 = vld [vmem:[#allocation18] sm:$0xf]
        %v875 = vld [vmem:[#allocation18 + $0x4] sm:$0xf]
        %v876 = vld [vmem:[#allocation18 + $0x8] sm:$0xf]
        %v877 = vld [vmem:[#allocation18 + $0xc] sm:$0xf]
        %v878 = vld [vmem:[#allocation20] sm:$0x1]
        %v880 = vlaneseq
        %v881 = vshrl.u32 %v880, 7
        %v882 = vsub.s32 0, %v881
        %v883 = vrot.slane %v878, %v882
        %v889 = vunpack.c.l.b16 %v874
        %v890 = vunpack.c.l.b16 %v875
        %v891 = vunpack.c.l.b16 %v876
        %v892 = vunpack.c.l.b16 %v877
        %v893 = vpack.c.b16 %v890, %v889
        %v894 = vpack.c.b16 %v892, %v891
        %897 = vmatprep.subr.bf16.mxu0 0
        %898 = vmatpush1.bf16.msra.mxu0 0
        %899 = vmatprep.subr.bf16.mxu0 0
        %900 = vmatpush1.bf16.msra.mxu0 0
        %901 = vmatprep.subr.bf16.mxu0 0
        %902 = vmatpush1.bf16.msra.mxu0 0
        %903 = vmatprep.subr.bf16.mxu0 0
        %904 = vmatpush1.bf16.msra.mxu0 0
        %905 = vmatprep.subr.bf16.mxu0 0
        %906 = vmatpush1.bf16.msra.mxu0 0
        %907 = vmatprep.subr.bf16.mxu0 0
        %908 = vmatpush1.bf16.msra.mxu0 0
        %909 = vmatprep.subr.bf16.mxu0 0
        %910 = vmatpush1.bf16.msra.mxu0 %v894
        %911 = vmatprep.subr.bf16.mxu0 0
        %912 = vmatpush1.bf16.msra.mxu0 %v893
        %913 = vmatprep.subr.bf16.mxu0 0
        %914 = vmatpush2.bf16.msra.mxu0 0
        %915 = vmatprep.subr.bf16.mxu0 0
        %916 = vmatpush2.bf16.msra.mxu0 0
        %917 = vmatprep.subr.bf16.mxu0 0
        %918 = vmatpush2.bf16.msra.mxu0 0
        %919 = vmatprep.subr.bf16.mxu0 0
        %920 = vmatpush2.bf16.msra.mxu0 0
        %921 = vmatprep.subr.bf16.mxu0 0
        %922 = vmatpush2.bf16.msra.mxu0 0
        %923 = vmatprep.subr.bf16.mxu0 0
        %924 = vmatpush2.bf16.msra.mxu0 0
        %925 = vmatprep.subr.bf16.mxu0 0
        %926 = vmatpush2.bf16.msra.mxu0 0
        %927 = vmatprep.subr.bf16.mxu0 0
        %928 = vmatpush2.bf16.msra.mxu0 0
        %929 = vmatprep.mubr.bf16.mxu0 0
        %930 = vmatmul.mubr.bf16.gmra.mxu0 %v769
        %v931 = vpop.f32.mrf.mxu0
        %v932 = vadd.f32 %v883, %v931
        %v933 = vpop.f32.mrf.mxu0
        %v934 = vpop.f32.mrf.mxu0
        %v935 = vpop.f32.mrf.mxu0
        %936 = vdwg.mxu0
        %v937 = vmul.f32 %v806, 0.35355338
        %vm938 = vcmask 64512
        %939 = vst.msk [vmem:[#allocation2] sm:$0xff] %vm938, %v937
        %v941 = vcombine.high %v937, %v937
        %v943 = vunpack.c.l.s4 1966171168
        %v944 = vunpack.c.0.s8 %v943
        %v945 = vlaneseq
        %v946 = vshrl.u32 %v945, 7
        %v947 = vsub.s32 %v944, %v946
        %v948 = vrot.slane %v937, %v947
        %v950 = vunpack.c.l.s4 1966171168
        %v951 = vunpack.c.0.s8 %v950
        %v952 = vlaneseq
        %v953 = vshrl.u32 %v952, 7
        %v954 = vsub.s32 %v951, %v953
        %v955 = vrot.slane %v941, %v954
        %v956 = vcombine.high %v948, %v948
        %v957 = vcombine.high %v955, %v955
        %v959 = vunpack.c.l.s4 1966171168
        %v960 = vunpack.c.0.s8 %v959
        %v961 = vlaneseq
        %v962 = vshrl.u32 %v961, 7
        %v963 = vsub.s32 %v960, %v962
        %v964 = vrot.slane %v948, %v963
        %v966 = vunpack.c.l.s4 1966171168
        %v967 = vunpack.c.0.s8 %v966
        %v968 = vlaneseq
        %v969 = vshrl.u32 %v968, 7
        %v970 = vsub.s32 %v967, %v969
        %v971 = vrot.slane %v955, %v970
        %v973 = vunpack.c.l.s4 1966171168
        %v974 = vunpack.c.0.s8 %v973
        %v975 = vlaneseq
        %v976 = vshrl.u32 %v975, 7
        %v977 = vsub.s32 %v974, %v976
        %v978 = vrot.slane %v956, %v977
        %v980 = vunpack.c.l.s4 1966171168
        %v981 = vunpack.c.0.s8 %v980
        %v982 = vlaneseq
        %v983 = vshrl.u32 %v982, 7
        %v984 = vsub.s32 %v981, %v983
        %v985 = vrot.slane %v957, %v984
        %v986 = vcombine.high %v964, %v964
        %v987 = vcombine.high %v971, %v971
        %v988 = vcombine.high %v978, %v978
        %v989 = vcombine.high %v985, %v985
        %vm998 = vcmask 57344
        %999 = vst.msk [vmem:[#allocation5] sm:$0x1] %vm998, %v964
        %1000 = vst.msk [vmem:[#allocation5 + $0x4] sm:$0x1] %vm998, %v978
        %1001 = vst.msk [vmem:[#allocation5 + $0x8] sm:$0x1] %vm998, %v986
        %1002 = vst.msk [vmem:[#allocation5 + $0xc] sm:$0x1] %vm998, %v988
        %1003 = vst.msk [vmem:[#allocation5 + $0x10] sm:$0x1] %vm998, %v971
        %1004 = vst.msk [vmem:[#allocation5 + $0x14] sm:$0x1] %vm998, %v985
        %1005 = vst.msk [vmem:[#allocation5 + $0x18] sm:$0x1] %vm998, %v987
        %1006 = vst.msk [vmem:[#allocation5 + $0x1c] sm:$0x1] %vm998, %v989
        %1007 = vst.msk [vmem:[#allocation3] sm:$0xff] %vm938, %v869
        %1008 = vst.msk [vmem:[#allocation4] sm:$0xff] %vm938, %v932
        %1009 = vrot.lane.b32.xlu0 %v937, 120
        %v1010 = vpop.permute.xlu0 %1009
        %s1012 = scalar_lea.vmem [#allocation2], 8
        %1013 = vst.msk [vmem:[%s1012] sm:$0xff] %vm938, %v1010
        %v1014 = vlaneseq
        %v1015 = vshrl.u32 %v1014, 7
        %v1016 = vsub.s32 0, %v1015
        %v1017 = vrot.slane %v964, %v1016
        %v1018 = vlaneseq
        %v1019 = vshrl.u32 %v1018, 7
        %v1020 = vsub.s32 0, %v1019
        %v1021 = vrot.slane %v978, %v1020
        %v1022 = vlaneseq
        %v1023 = vshrl.u32 %v1022, 7
        %v1024 = vsub.s32 0, %v1023
        %v1025 = vrot.slane %v986, %v1024
        %v1026 = vlaneseq
        %v1027 = vshrl.u32 %v1026, 7
        %v1028 = vsub.s32 0, %v1027
        %v1029 = vrot.slane %v988, %v1028
        %v1030 = vlaneseq
        %v1031 = vshrl.u32 %v1030, 7
        %v1032 = vsub.s32 0, %v1031
        %v1033 = vrot.slane %v971, %v1032
        %v1034 = vlaneseq
        %v1035 = vshrl.u32 %v1034, 7
        %v1036 = vsub.s32 0, %v1035
        %v1037 = vrot.slane %v985, %v1036
        %v1038 = vlaneseq
        %v1039 = vshrl.u32 %v1038, 7
        %v1040 = vsub.s32 0, %v1039
        %v1041 = vrot.slane %v987, %v1040
        %v1042 = vlaneseq
        %v1043 = vshrl.u32 %v1042, 7
        %v1044 = vsub.s32 0, %v1043
        %v1045 = vrot.slane %v989, %v1044
        %1046 = vrot.lane.b32.xlu0 %v1017, 120
        %v1047 = vpop.permute.xlu0 %1046
        %1048 = vrot.lane.b32.xlu0 %v1021, 120
        %v1049 = vpop.permute.xlu0 %1048
        %1050 = vrot.lane.b32.xlu0 %v1025, 120
        %v1051 = vpop.permute.xlu0 %1050
        %1052 = vrot.lane.b32.xlu0 %v1029, 120
        %v1053 = vpop.permute.xlu0 %1052
        %1054 = vrot.lane.b32.xlu0 %v1033, 120
        %v1055 = vpop.permute.xlu0 %1054
        %1056 = vrot.lane.b32.xlu0 %v1037, 120
        %v1057 = vpop.permute.xlu0 %1056
        %1058 = vrot.lane.b32.xlu0 %v1041, 120
        %v1059 = vpop.permute.xlu0 %1058
        %1060 = vrot.lane.b32.xlu0 %v1045, 120
        %v1061 = vpop.permute.xlu0 %1060
        %1070 = vst.msk [vmem:[#allocation5 + $0x1] sm:$0x1] %vm998, %v1047
        %1071 = vst.msk [vmem:[#allocation5 + $0x5] sm:$0x1] %vm998, %v1049
        %1072 = vst.msk [vmem:[#allocation5 + $0x9] sm:$0x1] %vm998, %v1051
        %1073 = vst.msk [vmem:[#allocation5 + $0xd] sm:$0x1] %vm998, %v1053
        %1074 = vst.msk [vmem:[#allocation5 + $0x11] sm:$0x1] %vm998, %v1055
        %1075 = vst.msk [vmem:[#allocation5 + $0x15] sm:$0x1] %vm998, %v1057
        %1076 = vst.msk [vmem:[#allocation5 + $0x19] sm:$0x1] %vm998, %v1059
        %1077 = vst.msk [vmem:[#allocation5 + $0x1d] sm:$0x1] %vm998, %v1061
        %1079 = vrot.lane.b32.xlu0 %v869, 120
        %v1080 = vpop.permute.xlu0 %1079
        %s1082 = scalar_lea.vmem [#allocation3], 8
        %1083 = vst.msk [vmem:[%s1082] sm:$0xff] %vm938, %v1080
        %1085 = vrot.lane.b32.xlu0 %v932, 120
        %v1086 = vpop.permute.xlu0 %1085
        %s1088 = scalar_lea.vmem [#allocation4], 8
        %1089 = vst.msk [vmem:[%s1088] sm:$0xff] %vm938, %v1086
        %1090 = vrot.lane.b32.xlu0 %v937, 112
        %v1091 = vpop.permute.xlu0 %1090
        %s1093 = scalar_lea.vmem [#allocation2], 16
        %1094 = vst.msk [vmem:[%s1093] sm:$0xff] %vm938, %v1091
        %1095 = vrot.lane.b32.xlu0 %v1017, 112
        %v1096 = vpop.permute.xlu0 %1095
        %1097 = vrot.lane.b32.xlu0 %v1021, 112
        %v1098 = vpop.permute.xlu0 %1097
        %1099 = vrot.lane.b32.xlu0 %v1025, 112
        %v1100 = vpop.permute.xlu0 %1099
        %1101 = vrot.lane.b32.xlu0 %v1029, 112
        %v1102 = vpop.permute.xlu0 %1101
        %1103 = vrot.lane.b32.xlu0 %v1033, 112
        %v1104 = vpop.permute.xlu0 %1103
        %1105 = vrot.lane.b32.xlu0 %v1037, 112
        %v1106 = vpop.permute.xlu0 %1105
        %1107 = vrot.lane.b32.xlu0 %v1041, 112
        %v1108 = vpop.permute.xlu0 %1107
        %1109 = vrot.lane.b32.xlu0 %v1045, 112
        %v1110 = vpop.permute.xlu0 %1109
        %1119 = vst.msk [vmem:[#allocation5 + $0x2] sm:$0x1] %vm998, %v1096
        %1120 = vst.msk [vmem:[#allocation5 + $0x6] sm:$0x1] %vm998, %v1098
        %1121 = vst.msk [vmem:[#allocation5 + $0xa] sm:$0x1] %vm998, %v1100
        %1122 = vst.msk [vmem:[#allocation5 + $0xe] sm:$0x1] %vm998, %v1102
        %1123 = vst.msk [vmem:[#allocation5 + $0x12] sm:$0x1] %vm998, %v1104
        %1124 = vst.msk [vmem:[#allocation5 + $0x16] sm:$0x1] %vm998, %v1106
        %1125 = vst.msk [vmem:[#allocation5 + $0x1a] sm:$0x1] %vm998, %v1108
        %1126 = vst.msk [vmem:[#allocation5 + $0x1e] sm:$0x1] %vm998, %v1110
        %1127 = vrot.lane.b32.xlu0 %v869, 112
        %v1128 = vpop.permute.xlu0 %1127
        %s1130 = scalar_lea.vmem [#allocation3], 16
        %1131 = vst.msk [vmem:[%s1130] sm:$0xff] %vm938, %v1128
        %1132 = vrot.lane.b32.xlu0 %v932, 112
        %v1133 = vpop.permute.xlu0 %1132
        %s1135 = scalar_lea.vmem [#allocation4], 16
        %1136 = vst.msk [vmem:[%s1135] sm:$0xff] %vm938, %v1133
        %1137 = vrot.lane.b32.xlu0 %v937, 104
        %v1138 = vpop.permute.xlu0 %1137
        %s1140 = scalar_lea.vmem [#allocation2], 24
        %1141 = vst.msk [vmem:[%s1140] sm:$0xff] %vm938, %v1138
        %1142 = vrot.lane.b32.xlu0 %v1017, 104
        %v1143 = vpop.permute.xlu0 %1142
        %1144 = vrot.lane.b32.xlu0 %v1021, 104
        %v1145 = vpop.permute.xlu0 %1144
        %1146 = vrot.lane.b32.xlu0 %v1025, 104
        %v1147 = vpop.permute.xlu0 %1146
        %1148 = vrot.lane.b32.xlu0 %v1029, 104
        %v1149 = vpop.permute.xlu0 %1148
        %1150 = vrot.lane.b32.xlu0 %v1033, 104
        %v1151 = vpop.permute.xlu0 %1150
        %1152 = vrot.lane.b32.xlu0 %v1037, 104
        %v1153 = vpop.permute.xlu0 %1152
        %1154 = vrot.lane.b32.xlu0 %v1041, 104
        %v1155 = vpop.permute.xlu0 %1154
        %1156 = vrot.lane.b32.xlu0 %v1045, 104
        %v1157 = vpop.permute.xlu0 %1156
        %1166 = vst.msk [vmem:[#allocation5 + $0x3] sm:$0x1] %vm998, %v1143
        %1167 = vst.msk [vmem:[#allocation5 + $0x7] sm:$0x1] %vm998, %v1145
        %1168 = vst.msk [vmem:[#allocation5 + $0xb] sm:$0x1] %vm998, %v1147
        %1169 = vst.msk [vmem:[#allocation5 + $0xf] sm:$0x1] %vm998, %v1149
        %1170 = vst.msk [vmem:[#allocation5 + $0x13] sm:$0x1] %vm998, %v1151
        %1171 = vst.msk [vmem:[#allocation5 + $0x17] sm:$0x1] %vm998, %v1153
        %1172 = vst.msk [vmem:[#allocation5 + $0x1b] sm:$0x1] %vm998, %v1155
        %1173 = vst.msk [vmem:[#allocation5 + $0x1f] sm:$0x1] %vm998, %v1157
        %1174 = vrot.lane.b32.xlu0 %v869, 104
        %v1175 = vpop.permute.xlu0 %1174
        %s1177 = scalar_lea.vmem [#allocation3], 24
        %1178 = vst.msk [vmem:[%s1177] sm:$0xff] %vm938, %v1175
        %1179 = vrot.lane.b32.xlu0 %v932, 104
        %v1180 = vpop.permute.xlu0 %1179
        %s1182 = scalar_lea.vmem [#allocation4], 24
        %1183 = vst.msk [vmem:[%s1182] sm:$0xff] %vm938, %v1180
        %v1184 = vld [vmem:[#allocation2] sm:$0xff]
        %v1185 = vld [vmem:[#allocation2 + $0x8] sm:$0xff]
        %v1186 = vld [vmem:[#allocation2 + $0x10] sm:$0xff]
        %v1187 = vld [vmem:[#allocation2 + $0x18] sm:$0xff]
        %v1188 = vpack.c.bf16 %v1184, %v1184
        %v1189 = vpack.c.bf16 %v1185, %v1185
        %v1190 = vpack.c.bf16 %v1186, %v1186
        %v1191 = vpack.c.bf16 %v1187, %v1187
        %v1192 = vld [vmem:[#allocation3] sm:$0xff]
        %v1193 = vld [vmem:[#allocation3 + $0x8] sm:$0xff]
        %v1194 = vld [vmem:[#allocation3 + $0x10] sm:$0xff]
        %v1195 = vld [vmem:[#allocation3 + $0x18] sm:$0xff]
        %v1196 = vpack.c.bf16 %v1192, %v1192
        %v1197 = vpack.c.bf16 %v1193, %v1193
        %v1198 = vpack.c.bf16 %v1194, %v1194
        %v1199 = vpack.c.bf16 %v1195, %v1195
        %v1200 = vld [vmem:[#allocation4] sm:$0xff]
        %v1201 = vld [vmem:[#allocation4 + $0x8] sm:$0xff]
        %v1202 = vld [vmem:[#allocation4 + $0x10] sm:$0xff]
        %v1203 = vld [vmem:[#allocation4 + $0x18] sm:$0xff]
        %v1204 = vpack.c.bf16 %v1200, %v1200
        %v1205 = vpack.c.bf16 %v1201, %v1201
        %v1206 = vpack.c.bf16 %v1202, %v1202
        %v1207 = vpack.c.bf16 %v1203, %v1203
        %v1209 = vsel %vm938, %v1188, 0
        %v1212 = vsel %vm938, %v1196, 0
        %1214 = vmatprep.subr.bf16.mxu0 0
        %1215 = vmatpush1.bf16.xpose.msra.mxu0 0
        %1216 = vmatprep.subr.bf16.mxu0 0
        %1217 = vmatpush1.bf16.xpose.msra.mxu0 0
        %1218 = vmatprep.subr.bf16.mxu0 0
        %1219 = vmatpush1.bf16.xpose.msra.mxu0 0
        %1220 = vmatprep.subr.bf16.mxu0 0
        %1221 = vmatpush1.bf16.xpose.msra.mxu0 0
        %1222 = vmatprep.subr.bf16.mxu0 0
        %1223 = vmatpush1.bf16.xpose.msra.mxu0 0
        %1224 = vmatprep.subr.bf16.mxu0 0
        %1225 = vmatpush1.bf16.xpose.msra.mxu0 0
        %1226 = vmatprep.subr.bf16.mxu0 0
        %1227 = vmatpush1.bf16.xpose.msra.mxu0 0
        %1228 = vmatprep.subr.bf16.mxu0 0
        %1229 = vmatpush1.bf16.xpose.msra.mxu0 %v1212
        %1230 = vmatprep.subr.bf16.mxu0 0
        %1231 = vmatpush2.bf16.xpose.msra.mxu0 0
        %1232 = vmatprep.subr.bf16.mxu0 0
        %1233 = vmatpush2.bf16.xpose.msra.mxu0 0
        %1234 = vmatprep.subr.bf16.mxu0 0
        %1235 = vmatpush2.bf16.xpose.msra.mxu0 0
        %1236 = vmatprep.subr.bf16.mxu0 0
        %1237 = vmatpush2.bf16.xpose.msra.mxu0 0
        %1238 = vmatprep.subr.bf16.mxu0 0
        %1239 = vmatpush2.bf16.xpose.msra.mxu0 0
        %1240 = vmatprep.subr.bf16.mxu0 0
        %1241 = vmatpush2.bf16.xpose.msra.mxu0 0
        %1242 = vmatprep.subr.bf16.mxu0 0
        %1243 = vmatpush2.bf16.xpose.msra.mxu0 0
        %1244 = vmatprep.subr.bf16.mxu0 0
        %1245 = vmatpush2.bf16.xpose.msra.mxu0 0
        %1246 = vmatprep.mubr.bf16.mxu0 0
        %1247 = vmatmul.mubr.bf16.gmra.mxu0 %v1209
        %v1248 = vpop.f32.mrf.mxu0
        %v1249 = vadd.f32 0.0, %v1248
        %v1250 = vpop.f32.mrf.mxu0
        %v1251 = vpop.f32.mrf.mxu0
        %v1252 = vpop.f32.mrf.mxu0
        %1253 = vdwg.mxu0
        %v1255 = vsel %vm938, %v1189, 0
        %v1258 = vsel %vm938, %v1197, 0
        %1260 = vmatprep.subr.bf16.mxu0 0
        %1261 = vmatpush1.bf16.xpose.msra.mxu0 0
        %1262 = vmatprep.subr.bf16.mxu0 0
        %1263 = vmatpush1.bf16.xpose.msra.mxu0 0
        %1264 = vmatprep.subr.bf16.mxu0 0
        %1265 = vmatpush1.bf16.xpose.msra.mxu0 0
        %1266 = vmatprep.subr.bf16.mxu0 0
        %1267 = vmatpush1.bf16.xpose.msra.mxu0 0
        %1268 = vmatprep.subr.bf16.mxu0 0
        %1269 = vmatpush1.bf16.xpose.msra.mxu0 0
        %1270 = vmatprep.subr.bf16.mxu0 0
        %1271 = vmatpush1.bf16.xpose.msra.mxu0 0
        %1272 = vmatprep.subr.bf16.mxu0 0
        %1273 = vmatpush1.bf16.xpose.msra.mxu0 0
        %1274 = vmatprep.subr.bf16.mxu0 0
        %1275 = vmatpush1.bf16.xpose.msra.mxu0 %v1258
        %1276 = vmatprep.subr.bf16.mxu0 0
        %1277 = vmatpush2.bf16.xpose.msra.mxu0 0
        %1278 = vmatprep.subr.bf16.mxu0 0
        %1279 = vmatpush2.bf16.xpose.msra.mxu0 0
        %1280 = vmatprep.subr.bf16.mxu0 0
        %1281 = vmatpush2.bf16.xpose.msra.mxu0 0
        %1282 = vmatprep.subr.bf16.mxu0 0
        %1283 = vmatpush2.bf16.xpose.msra.mxu0 0
        %1284 = vmatprep.subr.bf16.mxu0 0
        %1285 = vmatpush2.bf16.xpose.msra.mxu0 0
        %1286 = vmatprep.subr.bf16.mxu0 0
        %1287 = vmatpush2.bf16.xpose.msra.mxu0 0
        %1288 = vmatprep.subr.bf16.mxu0 0
        %1289 = vmatpush2.bf16.xpose.msra.mxu0 0
        %1290 = vmatprep.subr.bf16.mxu0 0
        %1291 = vmatpush2.bf16.xpose.msra.mxu0 0
        %1292 = vmatprep.mubr.bf16.mxu0 0
        %1293 = vmatmul.mubr.bf16.gmra.mxu0 %v1255
        %v1294 = vpop.f32.mrf.mxu0
        %v1295 = vadd.f32 0.0, %v1294
        %v1296 = vpop.f32.mrf.mxu0
        %v1297 = vpop.f32.mrf.mxu0
        %v1298 = vpop.f32.mrf.mxu0
        %1299 = vdwg.mxu0
        %v1301 = vsel %vm938, %v1190, 0
        %v1304 = vsel %vm938, %v1198, 0
        %1306 = vmatprep.subr.bf16.mxu0 0
        %1307 = vmatpush1.bf16.xpose.msra.mxu0 0
        %1308 = vmatprep.subr.bf16.mxu0 0
        %1309 = vmatpush1.bf16.xpose.msra.mxu0 0
        %1310 = vmatprep.subr.bf16.mxu0 0
        %1311 = vmatpush1.bf16.xpose.msra.mxu0 0
        %1312 = vmatprep.subr.bf16.mxu0 0
        %1313 = vmatpush1.bf16.xpose.msra.mxu0 0
        %1314 = vmatprep.subr.bf16.mxu0 0
        %1315 = vmatpush1.bf16.xpose.msra.mxu0 0
        %1316 = vmatprep.subr.bf16.mxu0 0
        %1317 = vmatpush1.bf16.xpose.msra.mxu0 0
        %1318 = vmatprep.subr.bf16.mxu0 0
        %1319 = vmatpush1.bf16.xpose.msra.mxu0 0
        %1320 = vmatprep.subr.bf16.mxu0 0
        %1321 = vmatpush1.bf16.xpose.msra.mxu0 %v1304
        %1322 = vmatprep.subr.bf16.mxu0 0
        %1323 = vmatpush2.bf16.xpose.msra.mxu0 0
        %1324 = vmatprep.subr.bf16.mxu0 0
        %1325 = vmatpush2.bf16.xpose.msra.mxu0 0
        %1326 = vmatprep.subr.bf16.mxu0 0
        %1327 = vmatpush2.bf16.xpose.msra.mxu0 0
        %1328 = vmatprep.subr.bf16.mxu0 0
        %1329 = vmatpush2.bf16.xpose.msra.mxu0 0
        %1330 = vmatprep.subr.bf16.mxu0 0
        %1331 = vmatpush2.bf16.xpose.msra.mxu0 0
        %1332 = vmatprep.subr.bf16.mxu0 0
        %1333 = vmatpush2.bf16.xpose.msra.mxu0 0
        %1334 = vmatprep.subr.bf16.mxu0 0
        %1335 = vmatpush2.bf16.xpose.msra.mxu0 0
        %1336 = vmatprep.subr.bf16.mxu0 0
        %1337 = vmatpush2.bf16.xpose.msra.mxu0 0
        %1338 = vmatprep.mubr.bf16.mxu0 0
        %1339 = vmatmul.mubr.bf16.gmra.mxu0 %v1301
        %v1340 = vpop.f32.mrf.mxu0
        %v1341 = vadd.f32 0.0, %v1340
        %v1342 = vpop.f32.mrf.mxu0
        %v1343 = vpop.f32.mrf.mxu0
        %v1344 = vpop.f32.mrf.mxu0
        %1345 = vdwg.mxu0
        %v1347 = vsel %vm938, %v1191, 0
        %v1350 = vsel %vm938, %v1199, 0
        %1352 = vmatprep.subr.bf16.mxu0 0
        %1353 = vmatpush1.bf16.xpose.msra.mxu0 0
        %1354 = vmatprep.subr.bf16.mxu0 0
        %1355 = vmatpush1.bf16.xpose.msra.mxu0 0
        %1356 = vmatprep.subr.bf16.mxu0 0
        %1357 = vmatpush1.bf16.xpose.msra.mxu0 0
        %1358 = vmatprep.subr.bf16.mxu0 0
        %1359 = vmatpush1.bf16.xpose.msra.mxu0 0
        %1360 = vmatprep.subr.bf16.mxu0 0
        %1361 = vmatpush1.bf16.xpose.msra.mxu0 0
        %1362 = vmatprep.subr.bf16.mxu0 0
        %1363 = vmatpush1.bf16.xpose.msra.mxu0 0
        %1364 = vmatprep.subr.bf16.mxu0 0
        %1365 = vmatpush1.bf16.xpose.msra.mxu0 0
        %1366 = vmatprep.subr.bf16.mxu0 0
        %1367 = vmatpush1.bf16.xpose.msra.mxu0 %v1350
        %1368 = vmatprep.subr.bf16.mxu0 0
        %1369 = vmatpush2.bf16.xpose.msra.mxu0 0
        %1370 = vmatprep.subr.bf16.mxu0 0
        %1371 = vmatpush2.bf16.xpose.msra.mxu0 0
        %1372 = vmatprep.subr.bf16.mxu0 0
        %1373 = vmatpush2.bf16.xpose.msra.mxu0 0
        %1374 = vmatprep.subr.bf16.mxu0 0
        %1375 = vmatpush2.bf16.xpose.msra.mxu0 0
        %1376 = vmatprep.subr.bf16.mxu0 0
        %1377 = vmatpush2.bf16.xpose.msra.mxu0 0
        %1378 = vmatprep.subr.bf16.mxu0 0
        %1379 = vmatpush2.bf16.xpose.msra.mxu0 0
        %1380 = vmatprep.subr.bf16.mxu0 0
        %1381 = vmatpush2.bf16.xpose.msra.mxu0 0
        %1382 = vmatprep.subr.bf16.mxu0 0
        %1383 = vmatpush2.bf16.xpose.msra.mxu0 0
        %1384 = vmatprep.mubr.bf16.mxu0 0
        %1385 = vmatmul.mubr.bf16.gmra.mxu0 %v1347
        %v1386 = vpop.f32.mrf.mxu0
        %v1387 = vadd.f32 0.0, %v1386
        %v1388 = vpop.f32.mrf.mxu0
        %v1389 = vpop.f32.mrf.mxu0
        %v1390 = vpop.f32.mrf.mxu0
        %1391 = vdwg.mxu0
        %v1392 = vld [vmem:[#allocation5] sm:$0xf]
        %v1393 = vld [vmem:[#allocation5 + $0x4] sm:$0xf]
        %v1394 = vld [vmem:[#allocation5 + $0x8] sm:$0xf]
        %v1395 = vld [vmem:[#allocation5 + $0xc] sm:$0xf]
        %v1396 = vld [vmem:[#allocation5 + $0x10] sm:$0xf]
        %v1397 = vld [vmem:[#allocation5 + $0x14] sm:$0xf]
        %v1398 = vld [vmem:[#allocation5 + $0x18] sm:$0xf]
        %v1399 = vld [vmem:[#allocation5 + $0x1c] sm:$0xf]
        %v1400 = vpack.c.bf16 %v1392, %v1392
        %v1401 = vpack.c.bf16 %v1393, %v1393
        %v1402 = vpack.c.bf16 %v1394, %v1394
        %v1403 = vpack.c.bf16 %v1395, %v1395
        %v1404 = vpack.c.bf16 %v1396, %v1396
        %v1405 = vpack.c.bf16 %v1397, %v1397
        %v1406 = vpack.c.bf16 %v1398, %v1398
        %v1407 = vpack.c.bf16 %v1399, %v1399
        %v1408 = vld [vmem:[%s9] sm:$0xf]
        %v1409 = vld [vmem:[%s9 + $0x4] sm:$0xf]
        %v1410 = vld [vmem:[%s9 + $0x8] sm:$0xf]
        %v1411 = vld [vmem:[%s9 + $0xc] sm:$0xf]
        %v1412 = vld [vmem:[%s9 + $0x10] sm:$0xf]
        %v1413 = vld [vmem:[%s9 + $0x14] sm:$0xf]
        %v1414 = vld [vmem:[%s9 + $0x18] sm:$0xf]
        %v1415 = vld [vmem:[%s9 + $0x1c] sm:$0xf]
        %v1417 = vsel %vm938, %v1400, 0
        %v1420 = vsel %vm938, %v1408, 0
        %1422 = vmatprep.subr.bf16.mxu0 0
        %1423 = vmatpush1.bf16.xpose.msra.mxu0 0
        %1424 = vmatprep.subr.bf16.mxu0 0
        %1425 = vmatpush1.bf16.xpose.msra.mxu0 0
        %1426 = vmatprep.subr.bf16.mxu0 0
        %1427 = vmatpush1.bf16.xpose.msra.mxu0 0
        %1428 = vmatprep.subr.bf16.mxu0 0
        %1429 = vmatpush1.bf16.xpose.msra.mxu0 0
        %1430 = vmatprep.subr.bf16.mxu0 0
        %1431 = vmatpush1.bf16.xpose.msra.mxu0 0
        %1432 = vmatprep.subr.bf16.mxu0 0
        %1433 = vmatpush1.bf16.xpose.msra.mxu0 0
        %1434 = vmatprep.subr.bf16.mxu0 0
        %1435 = vmatpush1.bf16.xpose.msra.mxu0 0
        %1436 = vmatprep.subr.bf16.mxu0 0
        %1437 = vmatpush1.bf16.xpose.msra.mxu0 %v1420
        %1438 = vmatprep.subr.bf16.mxu0 0
        %1439 = vmatpush2.bf16.xpose.msra.mxu0 0
        %1440 = vmatprep.subr.bf16.mxu0 0
        %1441 = vmatpush2.bf16.xpose.msra.mxu0 0
        %1442 = vmatprep.subr.bf16.mxu0 0
        %1443 = vmatpush2.bf16.xpose.msra.mxu0 0
        %1444 = vmatprep.subr.bf16.mxu0 0
        %1445 = vmatpush2.bf16.xpose.msra.mxu0 0
        %1446 = vmatprep.subr.bf16.mxu0 0
        %1447 = vmatpush2.bf16.xpose.msra.mxu0 0
        %1448 = vmatprep.subr.bf16.mxu0 0
        %1449 = vmatpush2.bf16.xpose.msra.mxu0 0
        %1450 = vmatprep.subr.bf16.mxu0 0
        %1451 = vmatpush2.bf16.xpose.msra.mxu0 0
        %1452 = vmatprep.subr.bf16.mxu0 0
        %1453 = vmatpush2.bf16.xpose.msra.mxu0 0
        %1454 = vmatprep.mubr.bf16.mxu0 0
        %1455 = vmatmul.mubr.bf16.gmra.mxu0 %v1417
        %v1456 = vpop.f32.mrf.mxu0
        %v1457 = vadd.f32 0.0, %v1456
        %v1458 = vpop.f32.mrf.mxu0
        %v1459 = vpop.f32.mrf.mxu0
        %v1460 = vpop.f32.mrf.mxu0
        %1461 = vdwg.mxu0
        %v1463 = vsel %vm938, %v1401, 0
        %v1466 = vsel %vm938, %v1409, 0
        %1468 = vmatprep.subr.bf16.mxu0 0
        %1469 = vmatpush1.bf16.xpose.msra.mxu0 0
        %1470 = vmatprep.subr.bf16.mxu0 0
        %1471 = vmatpush1.bf16.xpose.msra.mxu0 0
        %1472 = vmatprep.subr.bf16.mxu0 0
        %1473 = vmatpush1.bf16.xpose.msra.mxu0 0
        %1474 = vmatprep.subr.bf16.mxu0 0
        %1475 = vmatpush1.bf16.xpose.msra.mxu0 0
        %1476 = vmatprep.subr.bf16.mxu0 0
        %1477 = vmatpush1.bf16.xpose.msra.mxu0 0
        %1478 = vmatprep.subr.bf16.mxu0 0
        %1479 = vmatpush1.bf16.xpose.msra.mxu0 0
        %1480 = vmatprep.subr.bf16.mxu0 0
        %1481 = vmatpush1.bf16.xpose.msra.mxu0 0
        %1482 = vmatprep.subr.bf16.mxu0 0
        %1483 = vmatpush1.bf16.xpose.msra.mxu0 %v1466
        %1484 = vmatprep.subr.bf16.mxu0 0
        %1485 = vmatpush2.bf16.xpose.msra.mxu0 0
        %1486 = vmatprep.subr.bf16.mxu0 0
        %1487 = vmatpush2.bf16.xpose.msra.mxu0 0
        %1488 = vmatprep.subr.bf16.mxu0 0
        %1489 = vmatpush2.bf16.xpose.msra.mxu0 0
        %1490 = vmatprep.subr.bf16.mxu0 0
        %1491 = vmatpush2.bf16.xpose.msra.mxu0 0
        %1492 = vmatprep.subr.bf16.mxu0 0
        %1493 = vmatpush2.bf16.xpose.msra.mxu0 0
        %1494 = vmatprep.subr.bf16.mxu0 0
        %1495 = vmatpush2.bf16.xpose.msra.mxu0 0
        %1496 = vmatprep.subr.bf16.mxu0 0
        %1497 = vmatpush2.bf16.xpose.msra.mxu0 0
        %1498 = vmatprep.subr.bf16.mxu0 0
        %1499 = vmatpush2.bf16.xpose.msra.mxu0 0
        %1500 = vmatprep.mubr.bf16.mxu0 0
        %1501 = vmatmul.mubr.bf16.gmra.mxu0 %v1463
        %v1502 = vpop.f32.mrf.mxu0
        %v1503 = vadd.f32 0.0, %v1502
        %v1504 = vpop.f32.mrf.mxu0
        %v1505 = vpop.f32.mrf.mxu0
        %v1506 = vpop.f32.mrf.mxu0
        %1507 = vdwg.mxu0
        %v1509 = vsel %vm938, %v1402, 0
        %v1512 = vsel %vm938, %v1410, 0
        %1514 = vmatprep.subr.bf16.mxu0 0
        %1515 = vmatpush1.bf16.xpose.msra.mxu0 0
        %1516 = vmatprep.subr.bf16.mxu0 0
        %1517 = vmatpush1.bf16.xpose.msra.mxu0 0
        %1518 = vmatprep.subr.bf16.mxu0 0
        %1519 = vmatpush1.bf16.xpose.msra.mxu0 0
        %1520 = vmatprep.subr.bf16.mxu0 0
        %1521 = vmatpush1.bf16.xpose.msra.mxu0 0
        %1522 = vmatprep.subr.bf16.mxu0 0
        %1523 = vmatpush1.bf16.xpose.msra.mxu0 0
        %1524 = vmatprep.subr.bf16.mxu0 0
        %1525 = vmatpush1.bf16.xpose.msra.mxu0 0
        %1526 = vmatprep.subr.bf16.mxu0 0
        %1527 = vmatpush1.bf16.xpose.msra.mxu0 0
        %1528 = vmatprep.subr.bf16.mxu0 0
        %1529 = vmatpush1.bf16.xpose.msra.mxu0 %v1512
        %1530 = vmatprep.subr.bf16.mxu0 0
        %1531 = vmatpush2.bf16.xpose.msra.mxu0 0
        %1532 = vmatprep.subr.bf16.mxu0 0
        %1533 = vmatpush2.bf16.xpose.msra.mxu0 0
        %1534 = vmatprep.subr.bf16.mxu0 0
        %1535 = vmatpush2.bf16.xpose.msra.mxu0 0
        %1536 = vmatprep.subr.bf16.mxu0 0
        %1537 = vmatpush2.bf16.xpose.msra.mxu0 0
        %1538 = vmatprep.subr.bf16.mxu0 0
        %1539 = vmatpush2.bf16.xpose.msra.mxu0 0
        %1540 = vmatprep.subr.bf16.mxu0 0
        %1541 = vmatpush2.bf16.xpose.msra.mxu0 0
        %1542 = vmatprep.subr.bf16.mxu0 0
        %1543 = vmatpush2.bf16.xpose.msra.mxu0 0
        %1544 = vmatprep.subr.bf16.mxu0 0
        %1545 = vmatpush2.bf16.xpose.msra.mxu0 0
        %1546 = vmatprep.mubr.bf16.mxu0 0
        %1547 = vmatmul.mubr.bf16.gmra.mxu0 %v1509
        %v1548 = vpop.f32.mrf.mxu0
        %v1549 = vadd.f32 0.0, %v1548
        %v1550 = vpop.f32.mrf.mxu0
        %v1551 = vpop.f32.mrf.mxu0
        %v1552 = vpop.f32.mrf.mxu0
        %1553 = vdwg.mxu0
        %v1555 = vsel %vm938, %v1403, 0
        %v1558 = vsel %vm938, %v1411, 0
        %1560 = vmatprep.subr.bf16.mxu0 0
        %1561 = vmatpush1.bf16.xpose.msra.mxu0 0
        %1562 = vmatprep.subr.bf16.mxu0 0
        %1563 = vmatpush1.bf16.xpose.msra.mxu0 0
        %1564 = vmatprep.subr.bf16.mxu0 0
        %1565 = vmatpush1.bf16.xpose.msra.mxu0 0
        %1566 = vmatprep.subr.bf16.mxu0 0
        %1567 = vmatpush1.bf16.xpose.msra.mxu0 0
        %1568 = vmatprep.subr.bf16.mxu0 0
        %1569 = vmatpush1.bf16.xpose.msra.mxu0 0
        %1570 = vmatprep.subr.bf16.mxu0 0
        %1571 = vmatpush1.bf16.xpose.msra.mxu0 0
        %1572 = vmatprep.subr.bf16.mxu0 0
        %1573 = vmatpush1.bf16.xpose.msra.mxu0 0
        %1574 = vmatprep.subr.bf16.mxu0 0
        %1575 = vmatpush1.bf16.xpose.msra.mxu0 %v1558
        %1576 = vmatprep.subr.bf16.mxu0 0
        %1577 = vmatpush2.bf16.xpose.msra.mxu0 0
        %1578 = vmatprep.subr.bf16.mxu0 0
        %1579 = vmatpush2.bf16.xpose.msra.mxu0 0
        %1580 = vmatprep.subr.bf16.mxu0 0
        %1581 = vmatpush2.bf16.xpose.msra.mxu0 0
        %1582 = vmatprep.subr.bf16.mxu0 0
        %1583 = vmatpush2.bf16.xpose.msra.mxu0 0
        %1584 = vmatprep.subr.bf16.mxu0 0
        %1585 = vmatpush2.bf16.xpose.msra.mxu0 0
        %1586 = vmatprep.subr.bf16.mxu0 0
        %1587 = vmatpush2.bf16.xpose.msra.mxu0 0
        %1588 = vmatprep.subr.bf16.mxu0 0
        %1589 = vmatpush2.bf16.xpose.msra.mxu0 0
        %1590 = vmatprep.subr.bf16.mxu0 0
        %1591 = vmatpush2.bf16.xpose.msra.mxu0 0
        %1592 = vmatprep.mubr.bf16.mxu0 0
        %1593 = vmatmul.mubr.bf16.gmra.mxu0 %v1555
        %v1594 = vpop.f32.mrf.mxu0
        %v1595 = vadd.f32 0.0, %v1594
        %v1596 = vpop.f32.mrf.mxu0
        %v1597 = vpop.f32.mrf.mxu0
        %v1598 = vpop.f32.mrf.mxu0
        %1599 = vdwg.mxu0
        %v1601 = vsel %vm938, %v1404, 0
        %v1604 = vsel %vm938, %v1412, 0
        %1606 = vmatprep.subr.bf16.mxu0 0
        %1607 = vmatpush1.bf16.xpose.msra.mxu0 0
        %1608 = vmatprep.subr.bf16.mxu0 0
        %1609 = vmatpush1.bf16.xpose.msra.mxu0 0
        %1610 = vmatprep.subr.bf16.mxu0 0
        %1611 = vmatpush1.bf16.xpose.msra.mxu0 0
        %1612 = vmatprep.subr.bf16.mxu0 0
        %1613 = vmatpush1.bf16.xpose.msra.mxu0 0
        %1614 = vmatprep.subr.bf16.mxu0 0
        %1615 = vmatpush1.bf16.xpose.msra.mxu0 0
        %1616 = vmatprep.subr.bf16.mxu0 0
        %1617 = vmatpush1.bf16.xpose.msra.mxu0 0
        %1618 = vmatprep.subr.bf16.mxu0 0
        %1619 = vmatpush1.bf16.xpose.msra.mxu0 0
        %1620 = vmatprep.subr.bf16.mxu0 0
        %1621 = vmatpush1.bf16.xpose.msra.mxu0 %v1604
        %1622 = vmatprep.subr.bf16.mxu0 0
        %1623 = vmatpush2.bf16.xpose.msra.mxu0 0
        %1624 = vmatprep.subr.bf16.mxu0 0
        %1625 = vmatpush2.bf16.xpose.msra.mxu0 0
        %1626 = vmatprep.subr.bf16.mxu0 0
        %1627 = vmatpush2.bf16.xpose.msra.mxu0 0
        %1628 = vmatprep.subr.bf16.mxu0 0
        %1629 = vmatpush2.bf16.xpose.msra.mxu0 0
        %1630 = vmatprep.subr.bf16.mxu0 0
        %1631 = vmatpush2.bf16.xpose.msra.mxu0 0
        %1632 = vmatprep.subr.bf16.mxu0 0
        %1633 = vmatpush2.bf16.xpose.msra.mxu0 0
        %1634 = vmatprep.subr.bf16.mxu0 0
        %1635 = vmatpush2.bf16.xpose.msra.mxu0 0
        %1636 = vmatprep.subr.bf16.mxu0 0
        %1637 = vmatpush2.bf16.xpose.msra.mxu0 0
        %1638 = vmatprep.mubr.bf16.mxu0 0
        %1639 = vmatmul.mubr.bf16.gmra.mxu0 %v1601
        %v1640 = vpop.f32.mrf.mxu0
        %v1641 = vadd.f32 0.0, %v1640
        %v1642 = vpop.f32.mrf.mxu0
        %v1643 = vpop.f32.mrf.mxu0
        %v1644 = vpop.f32.mrf.mxu0
        %1645 = vdwg.mxu0
        %v1647 = vsel %vm938, %v1405, 0
        %v1650 = vsel %vm938, %v1413, 0
        %1652 = vmatprep.subr.bf16.mxu0 0
        %1653 = vmatpush1.bf16.xpose.msra.mxu0 0
        %1654 = vmatprep.subr.bf16.mxu0 0
        %1655 = vmatpush1.bf16.xpose.msra.mxu0 0
        %1656 = vmatprep.subr.bf16.mxu0 0
        %1657 = vmatpush1.bf16.xpose.msra.mxu0 0
        %1658 = vmatprep.subr.bf16.mxu0 0
        %1659 = vmatpush1.bf16.xpose.msra.mxu0 0
        %1660 = vmatprep.subr.bf16.mxu0 0
        %1661 = vmatpush1.bf16.xpose.msra.mxu0 0
        %1662 = vmatprep.subr.bf16.mxu0 0
        %1663 = vmatpush1.bf16.xpose.msra.mxu0 0
        %1664 = vmatprep.subr.bf16.mxu0 0
        %1665 = vmatpush1.bf16.xpose.msra.mxu0 0
        %1666 = vmatprep.subr.bf16.mxu0 0
        %1667 = vmatpush1.bf16.xpose.msra.mxu0 %v1650
        %1668 = vmatprep.subr.bf16.mxu0 0
        %1669 = vmatpush2.bf16.xpose.msra.mxu0 0
        %1670 = vmatprep.subr.bf16.mxu0 0
        %1671 = vmatpush2.bf16.xpose.msra.mxu0 0
        %1672 = vmatprep.subr.bf16.mxu0 0
        %1673 = vmatpush2.bf16.xpose.msra.mxu0 0
        %1674 = vmatprep.subr.bf16.mxu0 0
        %1675 = vmatpush2.bf16.xpose.msra.mxu0 0
        %1676 = vmatprep.subr.bf16.mxu0 0
        %1677 = vmatpush2.bf16.xpose.msra.mxu0 0
        %1678 = vmatprep.subr.bf16.mxu0 0
        %1679 = vmatpush2.bf16.xpose.msra.mxu0 0
        %1680 = vmatprep.subr.bf16.mxu0 0
        %1681 = vmatpush2.bf16.xpose.msra.mxu0 0
        %1682 = vmatprep.subr.bf16.mxu0 0
        %1683 = vmatpush2.bf16.xpose.msra.mxu0 0
        %1684 = vmatprep.mubr.bf16.mxu0 0
        %1685 = vmatmul.mubr.bf16.gmra.mxu0 %v1647
        %v1686 = vpop.f32.mrf.mxu0
        %v1687 = vadd.f32 0.0, %v1686
        %v1688 = vpop.f32.mrf.mxu0
        %v1689 = vpop.f32.mrf.mxu0
        %v1690 = vpop.f32.mrf.mxu0
        %1691 = vdwg.mxu0
        %v1693 = vsel %vm938, %v1406, 0
        %v1696 = vsel %vm938, %v1414, 0
        %1698 = vmatprep.subr.bf16.mxu0 0
        %1699 = vmatpush1.bf16.xpose.msra.mxu0 0
        %1700 = vmatprep.subr.bf16.mxu0 0
        %1701 = vmatpush1.bf16.xpose.msra.mxu0 0
        %1702 = vmatprep.subr.bf16.mxu0 0
        %1703 = vmatpush1.bf16.xpose.msra.mxu0 0
        %1704 = vmatprep.subr.bf16.mxu0 0
        %1705 = vmatpush1.bf16.xpose.msra.mxu0 0
        %1706 = vmatprep.subr.bf16.mxu0 0
        %1707 = vmatpush1.bf16.xpose.msra.mxu0 0
        %1708 = vmatprep.subr.bf16.mxu0 0
        %1709 = vmatpush1.bf16.xpose.msra.mxu0 0
        %1710 = vmatprep.subr.bf16.mxu0 0
        %1711 = vmatpush1.bf16.xpose.msra.mxu0 0
        %1712 = vmatprep.subr.bf16.mxu0 0
        %1713 = vmatpush1.bf16.xpose.msra.mxu0 %v1696
        %1714 = vmatprep.subr.bf16.mxu0 0
        %1715 = vmatpush2.bf16.xpose.msra.mxu0 0
        %1716 = vmatprep.subr.bf16.mxu0 0
        %1717 = vmatpush2.bf16.xpose.msra.mxu0 0
        %1718 = vmatprep.subr.bf16.mxu0 0
        %1719 = vmatpush2.bf16.xpose.msra.mxu0 0
        %1720 = vmatprep.subr.bf16.mxu0 0
        %1721 = vmatpush2.bf16.xpose.msra.mxu0 0
        %1722 = vmatprep.subr.bf16.mxu0 0
        %1723 = vmatpush2.bf16.xpose.msra.mxu0 0
        %1724 = vmatprep.subr.bf16.mxu0 0
        %1725 = vmatpush2.bf16.xpose.msra.mxu0 0
        %1726 = vmatprep.subr.bf16.mxu0 0
        %1727 = vmatpush2.bf16.xpose.msra.mxu0 0
        %1728 = vmatprep.subr.bf16.mxu0 0
        %1729 = vmatpush2.bf16.xpose.msra.mxu0 0
        %1730 = vmatprep.mubr.bf16.mxu0 0
        %1731 = vmatmul.mubr.bf16.gmra.mxu0 %v1693
        %v1732 = vpop.f32.mrf.mxu0
        %v1733 = vadd.f32 0.0, %v1732
        %v1734 = vpop.f32.mrf.mxu0
        %v1735 = vpop.f32.mrf.mxu0
        %v1736 = vpop.f32.mrf.mxu0
        %1737 = vdwg.mxu0
        %v1739 = vsel %vm938, %v1407, 0
        %v1742 = vsel %vm938, %v1415, 0
        %1744 = vmatprep.subr.bf16.mxu0 0
        %1745 = vmatpush1.bf16.xpose.msra.mxu0 0
        %1746 = vmatprep.subr.bf16.mxu0 0
        %1747 = vmatpush1.bf16.xpose.msra.mxu0 0
        %1748 = vmatprep.subr.bf16.mxu0 0
        %1749 = vmatpush1.bf16.xpose.msra.mxu0 0
        %1750 = vmatprep.subr.bf16.mxu0 0
        %1751 = vmatpush1.bf16.xpose.msra.mxu0 0
        %1752 = vmatprep.subr.bf16.mxu0 0
        %1753 = vmatpush1.bf16.xpose.msra.mxu0 0
        %1754 = vmatprep.subr.bf16.mxu0 0
        %1755 = vmatpush1.bf16.xpose.msra.mxu0 0
        %1756 = vmatprep.subr.bf16.mxu0 0
        %1757 = vmatpush1.bf16.xpose.msra.mxu0 0
        %1758 = vmatprep.subr.bf16.mxu0 0
        %1759 = vmatpush1.bf16.xpose.msra.mxu0 %v1742
        %1760 = vmatprep.subr.bf16.mxu0 0
        %1761 = vmatpush2.bf16.xpose.msra.mxu0 0
        %1762 = vmatprep.subr.bf16.mxu0 0
        %1763 = vmatpush2.bf16.xpose.msra.mxu0 0
        %1764 = vmatprep.subr.bf16.mxu0 0
        %1765 = vmatpush2.bf16.xpose.msra.mxu0 0
        %1766 = vmatprep.subr.bf16.mxu0 0
        %1767 = vmatpush2.bf16.xpose.msra.mxu0 0
        %1768 = vmatprep.subr.bf16.mxu0 0
        %1769 = vmatpush2.bf16.xpose.msra.mxu0 0
        %1770 = vmatprep.subr.bf16.mxu0 0
        %1771 = vmatpush2.bf16.xpose.msra.mxu0 0
        %1772 = vmatprep.subr.bf16.mxu0 0
        %1773 = vmatpush2.bf16.xpose.msra.mxu0 0
        %1774 = vmatprep.subr.bf16.mxu0 0
        %1775 = vmatpush2.bf16.xpose.msra.mxu0 0
        %1776 = vmatprep.mubr.bf16.mxu0 0
        %1777 = vmatmul.mubr.bf16.gmra.mxu0 %v1739
        %v1778 = vpop.f32.mrf.mxu0
        %v1779 = vadd.f32 0.0, %v1778
        %v1780 = vpop.f32.mrf.mxu0
        %v1781 = vpop.f32.mrf.mxu0
        %v1782 = vpop.f32.mrf.mxu0
        %1783 = vdwg.mxu0
        %v1785 = vcombine.high %v1249, %v1249
        %v1787 = vunpack.c.l.s4 1966171168
        %v1788 = vunpack.c.0.s8 %v1787
        %v1789 = vlaneseq
        %v1790 = vshrl.u32 %v1789, 7
        %v1791 = vsub.s32 %v1788, %v1790
        %v1792 = vrot.slane %v1249, %v1791
        %v1794 = vunpack.c.l.s4 1966171168
        %v1795 = vunpack.c.0.s8 %v1794
        %v1796 = vlaneseq
        %v1797 = vshrl.u32 %v1796, 7
        %v1798 = vsub.s32 %v1795, %v1797
        %v1799 = vrot.slane %v1785, %v1798
        %v1800 = vcombine.high %v1792, %v1792
        %v1801 = vcombine.high %v1799, %v1799
        %v1803 = vunpack.c.l.s4 1966171168
        %v1804 = vunpack.c.0.s8 %v1803
        %v1805 = vlaneseq
        %v1806 = vshrl.u32 %v1805, 7
        %v1807 = vsub.s32 %v1804, %v1806
        %v1808 = vrot.slane %v1792, %v1807
        %v1810 = vunpack.c.l.s4 1966171168
        %v1811 = vunpack.c.0.s8 %v1810
        %v1812 = vlaneseq
        %v1813 = vshrl.u32 %v1812, 7
        %v1814 = vsub.s32 %v1811, %v1813
        %v1815 = vrot.slane %v1799, %v1814
        %v1817 = vunpack.c.l.s4 1966171168
        %v1818 = vunpack.c.0.s8 %v1817
        %v1819 = vlaneseq
        %v1820 = vshrl.u32 %v1819, 7
        %v1821 = vsub.s32 %v1818, %v1820
        %v1822 = vrot.slane %v1800, %v1821
        %v1824 = vunpack.c.l.s4 1966171168
        %v1825 = vunpack.c.0.s8 %v1824
        %v1826 = vlaneseq
        %v1827 = vshrl.u32 %v1826, 7
        %v1828 = vsub.s32 %v1825, %v1827
        %v1829 = vrot.slane %v1801, %v1828
        %v1830 = vcombine.high %v1808, %v1808
        %v1831 = vcombine.high %v1815, %v1815
        %v1832 = vcombine.high %v1822, %v1822
        %v1833 = vcombine.high %v1829, %v1829
        %1842 = vst.msk [vmem:[#allocation6] sm:$0x1] %vm998, %v1808
        %1843 = vst.msk [vmem:[#allocation6 + $0x4] sm:$0x1] %vm998, %v1822
        %1844 = vst.msk [vmem:[#allocation6 + $0x8] sm:$0x1] %vm998, %v1830
        %1845 = vst.msk [vmem:[#allocation6 + $0xc] sm:$0x1] %vm998, %v1832
        %1846 = vst.msk [vmem:[#allocation6 + $0x10] sm:$0x1] %vm998, %v1815
        %1847 = vst.msk [vmem:[#allocation6 + $0x14] sm:$0x1] %vm998, %v1829
        %1848 = vst.msk [vmem:[#allocation6 + $0x18] sm:$0x1] %vm998, %v1831
        %1849 = vst.msk [vmem:[#allocation6 + $0x1c] sm:$0x1] %vm998, %v1833
        %v1851 = vcombine.high %v1295, %v1295
        %v1853 = vunpack.c.l.s4 1966171168
        %v1854 = vunpack.c.0.s8 %v1853
        %v1855 = vlaneseq
        %v1856 = vshrl.u32 %v1855, 7
        %v1857 = vsub.s32 %v1854, %v1856
        %v1858 = vrot.slane %v1295, %v1857
        %v1860 = vunpack.c.l.s4 1966171168
        %v1861 = vunpack.c.0.s8 %v1860
        %v1862 = vlaneseq
        %v1863 = vshrl.u32 %v1862, 7
        %v1864 = vsub.s32 %v1861, %v1863
        %v1865 = vrot.slane %v1851, %v1864
        %v1866 = vcombine.high %v1858, %v1858
        %v1867 = vcombine.high %v1865, %v1865
        %v1869 = vunpack.c.l.s4 1966171168
        %v1870 = vunpack.c.0.s8 %v1869
        %v1871 = vlaneseq
        %v1872 = vshrl.u32 %v1871, 7
        %v1873 = vsub.s32 %v1870, %v1872
        %v1874 = vrot.slane %v1858, %v1873
        %v1876 = vunpack.c.l.s4 1966171168
        %v1877 = vunpack.c.0.s8 %v1876
        %v1878 = vlaneseq
        %v1879 = vshrl.u32 %v1878, 7
        %v1880 = vsub.s32 %v1877, %v1879
        %v1881 = vrot.slane %v1865, %v1880
        %v1883 = vunpack.c.l.s4 1966171168
        %v1884 = vunpack.c.0.s8 %v1883
        %v1885 = vlaneseq
        %v1886 = vshrl.u32 %v1885, 7
        %v1887 = vsub.s32 %v1884, %v1886
        %v1888 = vrot.slane %v1866, %v1887
        %v1890 = vunpack.c.l.s4 1966171168
        %v1891 = vunpack.c.0.s8 %v1890
        %v1892 = vlaneseq
        %v1893 = vshrl.u32 %v1892, 7
        %v1894 = vsub.s32 %v1891, %v1893
        %v1895 = vrot.slane %v1867, %v1894
        %v1896 = vcombine.high %v1874, %v1874
        %v1897 = vcombine.high %v1881, %v1881
        %v1898 = vcombine.high %v1888, %v1888
        %v1899 = vcombine.high %v1895, %v1895
        %1908 = vst.msk [vmem:[#allocation6 + $0x1] sm:$0x1] %vm998, %v1874
        %1909 = vst.msk [vmem:[#allocation6 + $0x5] sm:$0x1] %vm998, %v1888
        %1910 = vst.msk [vmem:[#allocation6 + $0x9] sm:$0x1] %vm998, %v1896
        %1911 = vst.msk [vmem:[#allocation6 + $0xd] sm:$0x1] %vm998, %v1898
        %1912 = vst.msk [vmem:[#allocation6 + $0x11] sm:$0x1] %vm998, %v1881
        %1913 = vst.msk [vmem:[#allocation6 + $0x15] sm:$0x1] %vm998, %v1895
        %1914 = vst.msk [vmem:[#allocation6 + $0x19] sm:$0x1] %vm998, %v1897
        %1915 = vst.msk [vmem:[#allocation6 + $0x1d] sm:$0x1] %vm998, %v1899
        %v1917 = vcombine.high %v1341, %v1341
        %v1919 = vunpack.c.l.s4 1966171168
        %v1920 = vunpack.c.0.s8 %v1919
        %v1921 = vlaneseq
        %v1922 = vshrl.u32 %v1921, 7
        %v1923 = vsub.s32 %v1920, %v1922
        %v1924 = vrot.slane %v1341, %v1923
        %v1926 = vunpack.c.l.s4 1966171168
        %v1927 = vunpack.c.0.s8 %v1926
        %v1928 = vlaneseq
        %v1929 = vshrl.u32 %v1928, 7
        %v1930 = vsub.s32 %v1927, %v1929
        %v1931 = vrot.slane %v1917, %v1930
        %v1932 = vcombine.high %v1924, %v1924
        %v1933 = vcombine.high %v1931, %v1931
        %v1935 = vunpack.c.l.s4 1966171168
        %v1936 = vunpack.c.0.s8 %v1935
        %v1937 = vlaneseq
        %v1938 = vshrl.u32 %v1937, 7
        %v1939 = vsub.s32 %v1936, %v1938
        %v1940 = vrot.slane %v1924, %v1939
        %v1942 = vunpack.c.l.s4 1966171168
        %v1943 = vunpack.c.0.s8 %v1942
        %v1944 = vlaneseq
        %v1945 = vshrl.u32 %v1944, 7
        %v1946 = vsub.s32 %v1943, %v1945
        %v1947 = vrot.slane %v1931, %v1946
        %v1949 = vunpack.c.l.s4 1966171168
        %v1950 = vunpack.c.0.s8 %v1949
        %v1951 = vlaneseq
        %v1952 = vshrl.u32 %v1951, 7
        %v1953 = vsub.s32 %v1950, %v1952
        %v1954 = vrot.slane %v1932, %v1953
        %v1956 = vunpack.c.l.s4 1966171168
        %v1957 = vunpack.c.0.s8 %v1956
        %v1958 = vlaneseq
        %v1959 = vshrl.u32 %v1958, 7
        %v1960 = vsub.s32 %v1957, %v1959
        %v1961 = vrot.slane %v1933, %v1960
        %v1962 = vcombine.high %v1940, %v1940
        %v1963 = vcombine.high %v1947, %v1947
        %v1964 = vcombine.high %v1954, %v1954
        %v1965 = vcombine.high %v1961, %v1961
        %1974 = vst.msk [vmem:[#allocation6 + $0x2] sm:$0x1] %vm998, %v1940
        %1975 = vst.msk [vmem:[#allocation6 + $0x6] sm:$0x1] %vm998, %v1954
        %1976 = vst.msk [vmem:[#allocation6 + $0xa] sm:$0x1] %vm998, %v1962
        %1977 = vst.msk [vmem:[#allocation6 + $0xe] sm:$0x1] %vm998, %v1964
        %1978 = vst.msk [vmem:[#allocation6 + $0x12] sm:$0x1] %vm998, %v1947
        %1979 = vst.msk [vmem:[#allocation6 + $0x16] sm:$0x1] %vm998, %v1961
        %1980 = vst.msk [vmem:[#allocation6 + $0x1a] sm:$0x1] %vm998, %v1963
        %1981 = vst.msk [vmem:[#allocation6 + $0x1e] sm:$0x1] %vm998, %v1965
        %v1983 = vcombine.high %v1387, %v1387
        %v1985 = vunpack.c.l.s4 1966171168
        %v1986 = vunpack.c.0.s8 %v1985
        %v1987 = vlaneseq
        %v1988 = vshrl.u32 %v1987, 7
        %v1989 = vsub.s32 %v1986, %v1988
        %v1990 = vrot.slane %v1387, %v1989
        %v1992 = vunpack.c.l.s4 1966171168
        %v1993 = vunpack.c.0.s8 %v1992
        %v1994 = vlaneseq
        %v1995 = vshrl.u32 %v1994, 7
        %v1996 = vsub.s32 %v1993, %v1995
        %v1997 = vrot.slane %v1983, %v1996
        %v1998 = vcombine.high %v1990, %v1990
        %v1999 = vcombine.high %v1997, %v1997
        %v2001 = vunpack.c.l.s4 1966171168
        %v2002 = vunpack.c.0.s8 %v2001
        %v2003 = vlaneseq
        %v2004 = vshrl.u32 %v2003, 7
        %v2005 = vsub.s32 %v2002, %v2004
        %v2006 = vrot.slane %v1990, %v2005
        %v2008 = vunpack.c.l.s4 1966171168
        %v2009 = vunpack.c.0.s8 %v2008
        %v2010 = vlaneseq
        %v2011 = vshrl.u32 %v2010, 7
        %v2012 = vsub.s32 %v2009, %v2011
        %v2013 = vrot.slane %v1997, %v2012
        %v2015 = vunpack.c.l.s4 1966171168
        %v2016 = vunpack.c.0.s8 %v2015
        %v2017 = vlaneseq
        %v2018 = vshrl.u32 %v2017, 7
        %v2019 = vsub.s32 %v2016, %v2018
        %v2020 = vrot.slane %v1998, %v2019
        %v2022 = vunpack.c.l.s4 1966171168
        %v2023 = vunpack.c.0.s8 %v2022
        %v2024 = vlaneseq
        %v2025 = vshrl.u32 %v2024, 7
        %v2026 = vsub.s32 %v2023, %v2025
        %v2027 = vrot.slane %v1999, %v2026
        %v2028 = vcombine.high %v2006, %v2006
        %v2029 = vcombine.high %v2013, %v2013
        %v2030 = vcombine.high %v2020, %v2020
        %v2031 = vcombine.high %v2027, %v2027
        %2040 = vst.msk [vmem:[#allocation6 + $0x3] sm:$0x1] %vm998, %v2006
        %2041 = vst.msk [vmem:[#allocation6 + $0x7] sm:$0x1] %vm998, %v2020
        %2042 = vst.msk [vmem:[#allocation6 + $0xb] sm:$0x1] %vm998, %v2028
        %2043 = vst.msk [vmem:[#allocation6 + $0xf] sm:$0x1] %vm998, %v2030
        %2044 = vst.msk [vmem:[#allocation6 + $0x13] sm:$0x1] %vm998, %v2013
        %2045 = vst.msk [vmem:[#allocation6 + $0x17] sm:$0x1] %vm998, %v2027
        %2046 = vst.msk [vmem:[#allocation6 + $0x1b] sm:$0x1] %vm998, %v2029
        %2047 = vst.msk [vmem:[#allocation6 + $0x1f] sm:$0x1] %vm998, %v2031
        %v2048 = vld [vmem:[#allocation6] sm:$0xf]
        %v2049 = vld [vmem:[#allocation6 + $0x4] sm:$0xf]
        %v2050 = vld [vmem:[#allocation6 + $0x8] sm:$0xf]
        %v2051 = vld [vmem:[#allocation6 + $0xc] sm:$0xf]
        %v2052 = vld [vmem:[#allocation6 + $0x10] sm:$0xf]
        %v2053 = vld [vmem:[#allocation6 + $0x14] sm:$0xf]
        %v2054 = vld [vmem:[#allocation6 + $0x18] sm:$0xf]
        %v2055 = vld [vmem:[#allocation6 + $0x1c] sm:$0xf]
        %v2056 = vadd.f32 %v2048, %v1457
        %v2057 = vadd.f32 %v2049, %v1503
        %v2058 = vadd.f32 %v2050, %v1549
        %v2059 = vadd.f32 %v2051, %v1595
        %v2060 = vadd.f32 %v2052, %v1641
        %v2061 = vadd.f32 %v2053, %v1687
        %v2062 = vadd.f32 %v2054, %v1733
        %v2063 = vadd.f32 %v2055, %v1779
        %vm2064 = vcmask 60416
        %v2065 = vsel %vm2064, %v2056, -inf
        %2066 = vmax.xlane.f32.xlu0 %v2065
        %v2067 = vpop.xlane.xlu0 %2066
        %v2068 = vsel %vm2064, %v2057, -inf
        %2069 = vmax.xlane.f32.xlu0 %v2068
        %v2070 = vpop.xlane.xlu0 %2069
        %v2071 = vsel %vm2064, %v2058, -inf
        %2072 = vmax.xlane.f32.xlu0 %v2071
        %v2073 = vpop.xlane.xlu0 %2072
        %v2074 = vsel %vm2064, %v2059, -inf
        %2075 = vmax.xlane.f32.xlu0 %v2074
        %v2076 = vpop.xlane.xlu0 %2075
        %v2077 = vsel %vm2064, %v2060, -inf
        %2078 = vmax.xlane.f32.xlu0 %v2077
        %v2079 = vpop.xlane.xlu0 %2078
        %v2080 = vsel %vm2064, %v2061, -inf
        %2081 = vmax.xlane.f32.xlu0 %v2080
        %v2082 = vpop.xlane.xlu0 %2081
        %v2083 = vsel %vm2064, %v2062, -inf
        %2084 = vmax.xlane.f32.xlu0 %v2083
        %v2085 = vpop.xlane.xlu0 %2084
        %v2086 = vsel %vm2064, %v2063, -inf
        %2087 = vmax.xlane.f32.xlu0 %v2086
        %v2088 = vpop.xlane.xlu0 %2087
        %v2089 = vsub.f32 %v2056, %v2067
        %v2090 = vsub.f32 %v2057, %v2070
        %v2091 = vsub.f32 %v2058, %v2073
        %v2092 = vsub.f32 %v2059, %v2076
        %v2093 = vsub.f32 %v2060, %v2079
        %v2094 = vsub.f32 %v2061, %v2082
        %v2095 = vsub.f32 %v2062, %v2085
        %v2096 = vsub.f32 %v2063, %v2088
        %v2097 = vmul.f32 %v2089, 1.442695
        %v2098 = vpow.pop %v2097
        %v2099 = vmul.f32 %v2090, 1.442695
        %v2100 = vpow.pop %v2099
        %v2101 = vmul.f32 %v2091, 1.442695
        %v2102 = vpow.pop %v2101
        %v2103 = vmul.f32 %v2092, 1.442695
        %v2104 = vpow.pop %v2103
        %v2105 = vmul.f32 %v2093, 1.442695
        %v2106 = vpow.pop %v2105
        %v2107 = vmul.f32 %v2094, 1.442695
        %v2108 = vpow.pop %v2107
        %v2109 = vmul.f32 %v2095, 1.442695
        %v2110 = vpow.pop %v2109
        %v2111 = vmul.f32 %v2096, 1.442695
        %v2112 = vpow.pop %v2111
        %v2113 = vsel %vm2064, %v2098, 0.0
        %2114 = vadd.xlane.f32.xlu0 %v2113
        %v2115 = vpop.xlane.xlu0 %2114
        %v2116 = vsel %vm2064, %v2100, 0.0
        %2117 = vadd.xlane.f32.xlu0 %v2116
        %v2118 = vpop.xlane.xlu0 %2117
        %v2119 = vsel %vm2064, %v2102, 0.0
        %2120 = vadd.xlane.f32.xlu0 %v2119
        %v2121 = vpop.xlane.xlu0 %2120
        %v2122 = vsel %vm2064, %v2104, 0.0
        %2123 = vadd.xlane.f32.xlu0 %v2122
        %v2124 = vpop.xlane.xlu0 %2123
        %v2125 = vsel %vm2064, %v2106, 0.0
        %2126 = vadd.xlane.f32.xlu0 %v2125
        %v2127 = vpop.xlane.xlu0 %2126
        %v2128 = vsel %vm2064, %v2108, 0.0
        %2129 = vadd.xlane.f32.xlu0 %v2128
        %v2130 = vpop.xlane.xlu0 %2129
        %v2131 = vsel %vm2064, %v2110, 0.0
        %2132 = vadd.xlane.f32.xlu0 %v2131
        %v2133 = vpop.xlane.xlu0 %2132
        %v2134 = vsel %vm2064, %v2112, 0.0
        %2135 = vadd.xlane.f32.xlu0 %v2134
        %v2136 = vpop.xlane.xlu0 %2135
        %v2137 = vrcp.pop %v2115
        %v2138 = vrcp.pop %v2118
        %v2139 = vrcp.pop %v2121
        %v2140 = vrcp.pop %v2124
        %v2141 = vrcp.pop %v2127
        %v2142 = vrcp.pop %v2130
        %v2143 = vrcp.pop %v2133
        %v2144 = vrcp.pop %v2136
        %v2145 = vmul.f32 %v2098, %v2137
        %v2146 = vmul.f32 %v2100, %v2138
        %v2147 = vmul.f32 %v2102, %v2139
        %v2148 = vmul.f32 %v2104, %v2140
        %v2149 = vmul.f32 %v2106, %v2141
        %v2150 = vmul.f32 %v2108, %v2142
        %v2151 = vmul.f32 %v2110, %v2143
        %v2152 = vmul.f32 %v2112, %v2144
        %v2153 = vpack.c.bf16 %v2145, %v2145
        %v2154 = vpack.c.bf16 %v2146, %v2146
        %v2155 = vpack.c.bf16 %v2147, %v2147
        %v2156 = vpack.c.bf16 %v2148, %v2148
        %v2157 = vpack.c.bf16 %v2149, %v2149
        %v2158 = vpack.c.bf16 %v2150, %v2150
        %v2159 = vpack.c.bf16 %v2151, %v2151
        %v2160 = vpack.c.bf16 %v2152, %v2152
        %v2161 = vld [vmem:[%s10] sm:$0xf]
        %v2162 = vld [vmem:[%s10 + $0x4] sm:$0xf]
        %v2163 = vld [vmem:[%s10 + $0x8] sm:$0xf]
        %v2164 = vld [vmem:[%s10 + $0xc] sm:$0xf]
        %v2165 = vld [vmem:[%s10 + $0x10] sm:$0xf]
        %v2166 = vld [vmem:[%s10 + $0x14] sm:$0xf]
        %v2167 = vld [vmem:[%s10 + $0x18] sm:$0xf]
        %v2168 = vld [vmem:[%s10 + $0x1c] sm:$0xf]
        %v2170 = vsel %vm938, %v2153, 0
        %vm2172 = vcmask 1043456
        %v2174 = vsel %vm2172, %v2161, 0
        %2176 = vmatprep.subr.bf16.mxu0 0
        %2177 = vmatpush1.bf16.msra.mxu0 0
        %2178 = vmatprep.subr.bf16.mxu0 0
        %2179 = vmatpush1.bf16.msra.mxu0 0
        %2180 = vmatprep.subr.bf16.mxu0 0
        %2181 = vmatpush1.bf16.msra.mxu0 0
        %2182 = vmatprep.subr.bf16.mxu0 0
        %2183 = vmatpush1.bf16.msra.mxu0 0
        %2184 = vmatprep.subr.bf16.mxu0 0
        %2185 = vmatpush1.bf16.msra.mxu0 0
        %2186 = vmatprep.subr.bf16.mxu0 0
        %2187 = vmatpush1.bf16.msra.mxu0 0
        %2188 = vmatprep.subr.bf16.mxu0 0
        %2189 = vmatpush1.bf16.msra.mxu0 0
        %2190 = vmatprep.subr.bf16.mxu0 0
        %2191 = vmatpush1.bf16.msra.mxu0 %v2174
        %2192 = vmatprep.subr.bf16.mxu0 0
        %2193 = vmatpush2.bf16.msra.mxu0 0
        %2194 = vmatprep.subr.bf16.mxu0 0
        %2195 = vmatpush2.bf16.msra.mxu0 0
        %2196 = vmatprep.subr.bf16.mxu0 0
        %2197 = vmatpush2.bf16.msra.mxu0 0
        %2198 = vmatprep.subr.bf16.mxu0 0
        %2199 = vmatpush2.bf16.msra.mxu0 0
        %2200 = vmatprep.subr.bf16.mxu0 0
        %2201 = vmatpush2.bf16.msra.mxu0 0
        %2202 = vmatprep.subr.bf16.mxu0 0
        %2203 = vmatpush2.bf16.msra.mxu0 0
        %2204 = vmatprep.subr.bf16.mxu0 0
        %2205 = vmatpush2.bf16.msra.mxu0 0
        %2206 = vmatprep.subr.bf16.mxu0 0
        %2207 = vmatpush2.bf16.msra.mxu0 0
        %2208 = vmatprep.mubr.bf16.mxu0 0
        %2209 = vmatmul.mubr.bf16.gmra.mxu0 %v2170
        %v2210 = vpop.f32.mrf.mxu0
        %v2211 = vadd.f32 0.0, %v2210
        %v2212 = vpop.f32.mrf.mxu0
        %v2213 = vpop.f32.mrf.mxu0
        %v2214 = vpop.f32.mrf.mxu0
        %2215 = vdwg.mxu0
        %v2217 = vsel %vm938, %v2154, 0
        %v2220 = vsel %vm2172, %v2162, 0
        %2222 = vmatprep.subr.bf16.mxu0 0
        %2223 = vmatpush1.bf16.msra.mxu0 0
        %2224 = vmatprep.subr.bf16.mxu0 0
        %2225 = vmatpush1.bf16.msra.mxu0 0
        %2226 = vmatprep.subr.bf16.mxu0 0
        %2227 = vmatpush1.bf16.msra.mxu0 0
        %2228 = vmatprep.subr.bf16.mxu0 0
        %2229 = vmatpush1.bf16.msra.mxu0 0
        %2230 = vmatprep.subr.bf16.mxu0 0
        %2231 = vmatpush1.bf16.msra.mxu0 0
        %2232 = vmatprep.subr.bf16.mxu0 0
        %2233 = vmatpush1.bf16.msra.mxu0 0
        %2234 = vmatprep.subr.bf16.mxu0 0
        %2235 = vmatpush1.bf16.msra.mxu0 0
        %2236 = vmatprep.subr.bf16.mxu0 0
        %2237 = vmatpush1.bf16.msra.mxu0 %v2220
        %2238 = vmatprep.subr.bf16.mxu0 0
        %2239 = vmatpush2.bf16.msra.mxu0 0
        %2240 = vmatprep.subr.bf16.mxu0 0
        %2241 = vmatpush2.bf16.msra.mxu0 0
        %2242 = vmatprep.subr.bf16.mxu0 0
        %2243 = vmatpush2.bf16.msra.mxu0 0
        %2244 = vmatprep.subr.bf16.mxu0 0
        %2245 = vmatpush2.bf16.msra.mxu0 0
        %2246 = vmatprep.subr.bf16.mxu0 0
        %2247 = vmatpush2.bf16.msra.mxu0 0
        %2248 = vmatprep.subr.bf16.mxu0 0
        %2249 = vmatpush2.bf16.msra.mxu0 0
        %2250 = vmatprep.subr.bf16.mxu0 0
        %2251 = vmatpush2.bf16.msra.mxu0 0
        %2252 = vmatprep.subr.bf16.mxu0 0
        %2253 = vmatpush2.bf16.msra.mxu0 0
        %2254 = vmatprep.mubr.bf16.mxu0 0
        %2255 = vmatmul.mubr.bf16.gmra.mxu0 %v2217
        %v2256 = vpop.f32.mrf.mxu0
        %v2257 = vadd.f32 0.0, %v2256
        %v2258 = vpop.f32.mrf.mxu0
        %v2259 = vpop.f32.mrf.mxu0
        %v2260 = vpop.f32.mrf.mxu0
        %2261 = vdwg.mxu0
        %v2263 = vsel %vm938, %v2155, 0
        %v2266 = vsel %vm2172, %v2163, 0
        %2268 = vmatprep.subr.bf16.mxu0 0
        %2269 = vmatpush1.bf16.msra.mxu0 0
        %2270 = vmatprep.subr.bf16.mxu0 0
        %2271 = vmatpush1.bf16.msra.mxu0 0
        %2272 = vmatprep.subr.bf16.mxu0 0
        %2273 = vmatpush1.bf16.msra.mxu0 0
        %2274 = vmatprep.subr.bf16.mxu0 0
        %2275 = vmatpush1.bf16.msra.mxu0 0
        %2276 = vmatprep.subr.bf16.mxu0 0
        %2277 = vmatpush1.bf16.msra.mxu0 0
        %2278 = vmatprep.subr.bf16.mxu0 0
        %2279 = vmatpush1.bf16.msra.mxu0 0
        %2280 = vmatprep.subr.bf16.mxu0 0
        %2281 = vmatpush1.bf16.msra.mxu0 0
        %2282 = vmatprep.subr.bf16.mxu0 0
        %2283 = vmatpush1.bf16.msra.mxu0 %v2266
        %2284 = vmatprep.subr.bf16.mxu0 0
        %2285 = vmatpush2.bf16.msra.mxu0 0
        %2286 = vmatprep.subr.bf16.mxu0 0
        %2287 = vmatpush2.bf16.msra.mxu0 0
        %2288 = vmatprep.subr.bf16.mxu0 0
        %2289 = vmatpush2.bf16.msra.mxu0 0
        %2290 = vmatprep.subr.bf16.mxu0 0
        %2291 = vmatpush2.bf16.msra.mxu0 0
        %2292 = vmatprep.subr.bf16.mxu0 0
        %2293 = vmatpush2.bf16.msra.mxu0 0
        %2294 = vmatprep.subr.bf16.mxu0 0
        %2295 = vmatpush2.bf16.msra.mxu0 0
        %2296 = vmatprep.subr.bf16.mxu0 0
        %2297 = vmatpush2.bf16.msra.mxu0 0
        %2298 = vmatprep.subr.bf16.mxu0 0
        %2299 = vmatpush2.bf16.msra.mxu0 0
        %2300 = vmatprep.mubr.bf16.mxu0 0
        %2301 = vmatmul.mubr.bf16.gmra.mxu0 %v2263
        %v2302 = vpop.f32.mrf.mxu0
        %v2303 = vadd.f32 0.0, %v2302
        %v2304 = vpop.f32.mrf.mxu0
        %v2305 = vpop.f32.mrf.mxu0
        %v2306 = vpop.f32.mrf.mxu0
        %2307 = vdwg.mxu0
        %v2309 = vsel %vm938, %v2156, 0
        %v2312 = vsel %vm2172, %v2164, 0
        %2314 = vmatprep.subr.bf16.mxu0 0
        %2315 = vmatpush1.bf16.msra.mxu0 0
        %2316 = vmatprep.subr.bf16.mxu0 0
        %2317 = vmatpush1.bf16.msra.mxu0 0
        %2318 = vmatprep.subr.bf16.mxu0 0
        %2319 = vmatpush1.bf16.msra.mxu0 0
        %2320 = vmatprep.subr.bf16.mxu0 0
        %2321 = vmatpush1.bf16.msra.mxu0 0
        %2322 = vmatprep.subr.bf16.mxu0 0
        %2323 = vmatpush1.bf16.msra.mxu0 0
        %2324 = vmatprep.subr.bf16.mxu0 0
        %2325 = vmatpush1.bf16.msra.mxu0 0
        %2326 = vmatprep.subr.bf16.mxu0 0
        %2327 = vmatpush1.bf16.msra.mxu0 0
        %2328 = vmatprep.subr.bf16.mxu0 0
        %2329 = vmatpush1.bf16.msra.mxu0 %v2312
        %2330 = vmatprep.subr.bf16.mxu0 0
        %2331 = vmatpush2.bf16.msra.mxu0 0
        %2332 = vmatprep.subr.bf16.mxu0 0
        %2333 = vmatpush2.bf16.msra.mxu0 0
        %2334 = vmatprep.subr.bf16.mxu0 0
        %2335 = vmatpush2.bf16.msra.mxu0 0
        %2336 = vmatprep.subr.bf16.mxu0 0
        %2337 = vmatpush2.bf16.msra.mxu0 0
        %2338 = vmatprep.subr.bf16.mxu0 0
        %2339 = vmatpush2.bf16.msra.mxu0 0
        %2340 = vmatprep.subr.bf16.mxu0 0
        %2341 = vmatpush2.bf16.msra.mxu0 0
        %2342 = vmatprep.subr.bf16.mxu0 0
        %2343 = vmatpush2.bf16.msra.mxu0 0
        %2344 = vmatprep.subr.bf16.mxu0 0
        %2345 = vmatpush2.bf16.msra.mxu0 0
        %2346 = vmatprep.mubr.bf16.mxu0 0
        %2347 = vmatmul.mubr.bf16.gmra.mxu0 %v2309
        %v2348 = vpop.f32.mrf.mxu0
        %v2349 = vadd.f32 0.0, %v2348
        %v2350 = vpop.f32.mrf.mxu0
        %v2351 = vpop.f32.mrf.mxu0
        %v2352 = vpop.f32.mrf.mxu0
        %2353 = vdwg.mxu0
        %v2355 = vsel %vm938, %v2157, 0
        %v2358 = vsel %vm2172, %v2165, 0
        %2360 = vmatprep.subr.bf16.mxu0 0
        %2361 = vmatpush1.bf16.msra.mxu0 0
        %2362 = vmatprep.subr.bf16.mxu0 0
        %2363 = vmatpush1.bf16.msra.mxu0 0
        %2364 = vmatprep.subr.bf16.mxu0 0
        %2365 = vmatpush1.bf16.msra.mxu0 0
        %2366 = vmatprep.subr.bf16.mxu0 0
        %2367 = vmatpush1.bf16.msra.mxu0 0
        %2368 = vmatprep.subr.bf16.mxu0 0
        %2369 = vmatpush1.bf16.msra.mxu0 0
        %2370 = vmatprep.subr.bf16.mxu0 0
        %2371 = vmatpush1.bf16.msra.mxu0 0
        %2372 = vmatprep.subr.bf16.mxu0 0
        %2373 = vmatpush1.bf16.msra.mxu0 0
        %2374 = vmatprep.subr.bf16.mxu0 0
        %2375 = vmatpush1.bf16.msra.mxu0 %v2358
        %2376 = vmatprep.subr.bf16.mxu0 0
        %2377 = vmatpush2.bf16.msra.mxu0 0
        %2378 = vmatprep.subr.bf16.mxu0 0
        %2379 = vmatpush2.bf16.msra.mxu0 0
        %2380 = vmatprep.subr.bf16.mxu0 0
        %2381 = vmatpush2.bf16.msra.mxu0 0
        %2382 = vmatprep.subr.bf16.mxu0 0
        %2383 = vmatpush2.bf16.msra.mxu0 0
        %2384 = vmatprep.subr.bf16.mxu0 0
        %2385 = vmatpush2.bf16.msra.mxu0 0
        %2386 = vmatprep.subr.bf16.mxu0 0
        %2387 = vmatpush2.bf16.msra.mxu0 0
        %2388 = vmatprep.subr.bf16.mxu0 0
        %2389 = vmatpush2.bf16.msra.mxu0 0
        %2390 = vmatprep.subr.bf16.mxu0 0
        %2391 = vmatpush2.bf16.msra.mxu0 0
        %2392 = vmatprep.mubr.bf16.mxu0 0
        %2393 = vmatmul.mubr.bf16.gmra.mxu0 %v2355
        %v2394 = vpop.f32.mrf.mxu0
        %v2395 = vadd.f32 0.0, %v2394
        %v2396 = vpop.f32.mrf.mxu0
        %v2397 = vpop.f32.mrf.mxu0
        %v2398 = vpop.f32.mrf.mxu0
        %2399 = vdwg.mxu0
        %v2401 = vsel %vm938, %v2158, 0
        %v2404 = vsel %vm2172, %v2166, 0
        %2406 = vmatprep.subr.bf16.mxu0 0
        %2407 = vmatpush1.bf16.msra.mxu0 0
        %2408 = vmatprep.subr.bf16.mxu0 0
        %2409 = vmatpush1.bf16.msra.mxu0 0
        %2410 = vmatprep.subr.bf16.mxu0 0
        %2411 = vmatpush1.bf16.msra.mxu0 0
        %2412 = vmatprep.subr.bf16.mxu0 0
        %2413 = vmatpush1.bf16.msra.mxu0 0
        %2414 = vmatprep.subr.bf16.mxu0 0
        %2415 = vmatpush1.bf16.msra.mxu0 0
        %2416 = vmatprep.subr.bf16.mxu0 0
        %2417 = vmatpush1.bf16.msra.mxu0 0
        %2418 = vmatprep.subr.bf16.mxu0 0
        %2419 = vmatpush1.bf16.msra.mxu0 0
        %2420 = vmatprep.subr.bf16.mxu0 0
        %2421 = vmatpush1.bf16.msra.mxu0 %v2404
        %2422 = vmatprep.subr.bf16.mxu0 0
        %2423 = vmatpush2.bf16.msra.mxu0 0
        %2424 = vmatprep.subr.bf16.mxu0 0
        %2425 = vmatpush2.bf16.msra.mxu0 0
        %2426 = vmatprep.subr.bf16.mxu0 0
        %2427 = vmatpush2.bf16.msra.mxu0 0
        %2428 = vmatprep.subr.bf16.mxu0 0
        %2429 = vmatpush2.bf16.msra.mxu0 0
        %2430 = vmatprep.subr.bf16.mxu0 0
        %2431 = vmatpush2.bf16.msra.mxu0 0
        %2432 = vmatprep.subr.bf16.mxu0 0
        %2433 = vmatpush2.bf16.msra.mxu0 0
        %2434 = vmatprep.subr.bf16.mxu0 0
        %2435 = vmatpush2.bf16.msra.mxu0 0
        %2436 = vmatprep.subr.bf16.mxu0 0
        %2437 = vmatpush2.bf16.msra.mxu0 0
        %2438 = vmatprep.mubr.bf16.mxu0 0
        %2439 = vmatmul.mubr.bf16.gmra.mxu0 %v2401
        %v2440 = vpop.f32.mrf.mxu0
        %v2441 = vadd.f32 0.0, %v2440
        %v2442 = vpop.f32.mrf.mxu0
        %v2443 = vpop.f32.mrf.mxu0
        %v2444 = vpop.f32.mrf.mxu0
        %2445 = vdwg.mxu0
        %v2447 = vsel %vm938, %v2159, 0
        %v2450 = vsel %vm2172, %v2167, 0
        %2452 = vmatprep.subr.bf16.mxu0 0
        %2453 = vmatpush1.bf16.msra.mxu0 0
        %2454 = vmatprep.subr.bf16.mxu0 0
        %2455 = vmatpush1.bf16.msra.mxu0 0
        %2456 = vmatprep.subr.bf16.mxu0 0
        %2457 = vmatpush1.bf16.msra.mxu0 0
        %2458 = vmatprep.subr.bf16.mxu0 0
        %2459 = vmatpush1.bf16.msra.mxu0 0
        %2460 = vmatprep.subr.bf16.mxu0 0
        %2461 = vmatpush1.bf16.msra.mxu0 0
        %2462 = vmatprep.subr.bf16.mxu0 0
        %2463 = vmatpush1.bf16.msra.mxu0 0
        %2464 = vmatprep.subr.bf16.mxu0 0
        %2465 = vmatpush1.bf16.msra.mxu0 0
        %2466 = vmatprep.subr.bf16.mxu0 0
        %2467 = vmatpush1.bf16.msra.mxu0 %v2450
        %2468 = vmatprep.subr.bf16.mxu0 0
        %2469 = vmatpush2.bf16.msra.mxu0 0
        %2470 = vmatprep.subr.bf16.mxu0 0
        %2471 = vmatpush2.bf16.msra.mxu0 0
        %2472 = vmatprep.subr.bf16.mxu0 0
        %2473 = vmatpush2.bf16.msra.mxu0 0
        %2474 = vmatprep.subr.bf16.mxu0 0
        %2475 = vmatpush2.bf16.msra.mxu0 0
        %2476 = vmatprep.subr.bf16.mxu0 0
        %2477 = vmatpush2.bf16.msra.mxu0 0
        %2478 = vmatprep.subr.bf16.mxu0 0
        %2479 = vmatpush2.bf16.msra.mxu0 0
        %2480 = vmatprep.subr.bf16.mxu0 0
        %2481 = vmatpush2.bf16.msra.mxu0 0
        %2482 = vmatprep.subr.bf16.mxu0 0
        %2483 = vmatpush2.bf16.msra.mxu0 0
        %2484 = vmatprep.mubr.bf16.mxu0 0
        %2485 = vmatmul.mubr.bf16.gmra.mxu0 %v2447
        %v2486 = vpop.f32.mrf.mxu0
        %v2487 = vadd.f32 0.0, %v2486
        %v2488 = vpop.f32.mrf.mxu0
        %v2489 = vpop.f32.mrf.mxu0
        %v2490 = vpop.f32.mrf.mxu0
        %2491 = vdwg.mxu0
        %v2493 = vsel %vm938, %v2160, 0
        %v2496 = vsel %vm2172, %v2168, 0
        %2498 = vmatprep.subr.bf16.mxu0 0
        %2499 = vmatpush1.bf16.msra.mxu0 0
        %2500 = vmatprep.subr.bf16.mxu0 0
        %2501 = vmatpush1.bf16.msra.mxu0 0
        %2502 = vmatprep.subr.bf16.mxu0 0
        %2503 = vmatpush1.bf16.msra.mxu0 0
        %2504 = vmatprep.subr.bf16.mxu0 0
        %2505 = vmatpush1.bf16.msra.mxu0 0
        %2506 = vmatprep.subr.bf16.mxu0 0
        %2507 = vmatpush1.bf16.msra.mxu0 0
        %2508 = vmatprep.subr.bf16.mxu0 0
        %2509 = vmatpush1.bf16.msra.mxu0 0
        %2510 = vmatprep.subr.bf16.mxu0 0
        %2511 = vmatpush1.bf16.msra.mxu0 0
        %2512 = vmatprep.subr.bf16.mxu0 0
        %2513 = vmatpush1.bf16.msra.mxu0 %v2496
        %2514 = vmatprep.subr.bf16.mxu0 0
        %2515 = vmatpush2.bf16.msra.mxu0 0
        %2516 = vmatprep.subr.bf16.mxu0 0
        %2517 = vmatpush2.bf16.msra.mxu0 0
        %2518 = vmatprep.subr.bf16.mxu0 0
        %2519 = vmatpush2.bf16.msra.mxu0 0
        %2520 = vmatprep.subr.bf16.mxu0 0
        %2521 = vmatpush2.bf16.msra.mxu0 0
        %2522 = vmatprep.subr.bf16.mxu0 0
        %2523 = vmatpush2.bf16.msra.mxu0 0
        %2524 = vmatprep.subr.bf16.mxu0 0
        %2525 = vmatpush2.bf16.msra.mxu0 0
        %2526 = vmatprep.subr.bf16.mxu0 0
        %2527 = vmatpush2.bf16.msra.mxu0 0
        %2528 = vmatprep.subr.bf16.mxu0 0
        %2529 = vmatpush2.bf16.msra.mxu0 0
        %2530 = vmatprep.mubr.bf16.mxu0 0
        %2531 = vmatmul.mubr.bf16.gmra.mxu0 %v2493
        %v2532 = vpop.f32.mrf.mxu0
        %v2533 = vadd.f32 0.0, %v2532
        %v2534 = vpop.f32.mrf.mxu0
        %v2535 = vpop.f32.mrf.mxu0
        %v2536 = vpop.f32.mrf.mxu0
        %2537 = vdwg.mxu0
        %v2546 = vrot.slane %v2146, 7
        %vm2547 = vcmask 1041409
        %v2548 = vsel %vm2547, %v2546, %v2145
        %v2549 = vrot.slane %v2147, 6
        %vm2550 = vcmask 1042434
        %v2551 = vsel %vm2550, %v2549, %v2548
        %v2552 = vrot.slane %v2148, 5
        %vm2553 = vcmask 1043459
        %v2554 = vsel %vm2553, %v2552, %v2551
        %v2555 = vrot.slane %v2149, 4
        %vm2556 = vcmask 1044484
        %v2557 = vsel %vm2556, %v2555, %v2554
        %v2558 = vrot.slane %v2150, 3
        %vm2559 = vcmask 1045509
        %v2560 = vsel %vm2559, %v2558, %v2557
        %v2561 = vrot.slane %v2151, 2
        %vm2562 = vcmask 1046534
        %v2563 = vsel %vm2562, %v2561, %v2560
        %v2564 = vrot.slane %v2152, 1
        %vm2565 = vcmask 1047559
        %v2566 = vsel %vm2565, %v2564, %v2563
        %2568 = vst.msk [vmem:[#allocation7] sm:$0xff] %vm938, %v2566
        %v2569 = vsel %vm2550, %v2546, %v2145
        %v2570 = vsel %vm2553, %v2549, %v2569
        %v2571 = vsel %vm2556, %v2552, %v2570
        %v2572 = vsel %vm2559, %v2555, %v2571
        %v2573 = vsel %vm2562, %v2558, %v2572
        %v2574 = vsel %vm2565, %v2561, %v2573
        %s2577 = scalar_lea.vmem [#allocation7], 8
        %vm2578 = vcmask 64513
        %2579 = vst.msk [vmem:[%s2577 - $0x1] sm:$0xfe] %vm2578, %v2574
        %2580 = vst.msk [vmem:[%s2577 + $0x7] sm:$0x1] %vm998, %v2564
        %v2581 = vsel %vm2553, %v2546, %v2145
        %v2582 = vsel %vm2556, %v2549, %v2581
        %v2583 = vsel %vm2559, %v2552, %v2582
        %v2584 = vsel %vm2562, %v2555, %v2583
        %v2585 = vsel %vm2565, %v2558, %v2584
        %v2586 = vsel %vm2547, %v2564, %v2561
        %s2589 = scalar_lea.vmem [#allocation7], 16
        %vm2590 = vcmask 64514
        %2591 = vst.msk [vmem:[%s2589 - $0x2] sm:$0xfc] %vm2590, %v2585
        %vm2592 = vcmask 58368
        %2593 = vst.msk [vmem:[%s2589 + $0x6] sm:$0x3] %vm2592, %v2586
        %v2594 = vsel %vm2556, %v2546, %v2145
        %v2595 = vsel %vm2559, %v2549, %v2594
        %v2596 = vsel %vm2562, %v2552, %v2595
        %v2597 = vsel %vm2565, %v2555, %v2596
        %v2598 = vsel %vm2547, %v2561, %v2558
        %v2599 = vsel %vm2550, %v2564, %v2598
        %s2602 = scalar_lea.vmem [#allocation7], 24
        %vm2603 = vcmask 64515
        %2604 = vst.msk [vmem:[%s2602 - $0x3] sm:$0xf8] %vm2603, %v2597
        %vm2605 = vcmask 59392
        %2606 = vst.msk [vmem:[%s2602 + $0x5] sm:$0x7] %vm2605, %v2599
        %v2607 = vld [vmem:[#allocation7] sm:$0xff]
        %v2608 = vld [vmem:[#allocation7 + $0x8] sm:$0xff]
        %v2609 = vld [vmem:[#allocation7 + $0x10] sm:$0xff]
        %v2610 = vld [vmem:[#allocation7 + $0x18] sm:$0xff]
        %v2611 = vpack.c.bf16 %v2607, %v2607
        %v2612 = vpack.c.bf16 %v2608, %v2608
        %v2613 = vpack.c.bf16 %v2609, %v2609
        %v2614 = vpack.c.bf16 %v2610, %v2610
        %v2616 = vsel %vm938, %v2611, 0
        %v2619 = vsel %vm2172, %v1204, 0
        %2621 = vmatprep.subr.bf16.mxu0 0
        %2622 = vmatpush1.bf16.msra.mxu0 0
        %2623 = vmatprep.subr.bf16.mxu0 0
        %2624 = vmatpush1.bf16.msra.mxu0 0
        %2625 = vmatprep.subr.bf16.mxu0 0
        %2626 = vmatpush1.bf16.msra.mxu0 0
        %2627 = vmatprep.subr.bf16.mxu0 0
        %2628 = vmatpush1.bf16.msra.mxu0 0
        %2629 = vmatprep.subr.bf16.mxu0 0
        %2630 = vmatpush1.bf16.msra.mxu0 0
        %2631 = vmatprep.subr.bf16.mxu0 0
        %2632 = vmatpush1.bf16.msra.mxu0 0
        %2633 = vmatprep.subr.bf16.mxu0 0
        %2634 = vmatpush1.bf16.msra.mxu0 0
        %2635 = vmatprep.subr.bf16.mxu0 0
        %2636 = vmatpush1.bf16.msra.mxu0 %v2619
        %2637 = vmatprep.subr.bf16.mxu0 0
        %2638 = vmatpush2.bf16.msra.mxu0 0
        %2639 = vmatprep.subr.bf16.mxu0 0
        %2640 = vmatpush2.bf16.msra.mxu0 0
        %2641 = vmatprep.subr.bf16.mxu0 0
        %2642 = vmatpush2.bf16.msra.mxu0 0
        %2643 = vmatprep.subr.bf16.mxu0 0
        %2644 = vmatpush2.bf16.msra.mxu0 0
        %2645 = vmatprep.subr.bf16.mxu0 0
        %2646 = vmatpush2.bf16.msra.mxu0 0
        %2647 = vmatprep.subr.bf16.mxu0 0
        %2648 = vmatpush2.bf16.msra.mxu0 0
        %2649 = vmatprep.subr.bf16.mxu0 0
        %2650 = vmatpush2.bf16.msra.mxu0 0
        %2651 = vmatprep.subr.bf16.mxu0 0
        %2652 = vmatpush2.bf16.msra.mxu0 0
        %2653 = vmatprep.mubr.bf16.mxu0 0
        %2654 = vmatmul.mubr.bf16.gmra.mxu0 %v2616
        %v2655 = vpop.f32.mrf.mxu0
        %v2656 = vadd.f32 0.0, %v2655
        %v2657 = vpop.f32.mrf.mxu0
        %v2658 = vpop.f32.mrf.mxu0
        %v2659 = vpop.f32.mrf.mxu0
        %2660 = vdwg.mxu0
        %v2662 = vsel %vm938, %v2612, 0
        %v2665 = vsel %vm2172, %v1205, 0
        %2667 = vmatprep.subr.bf16.mxu0 0
        %2668 = vmatpush1.bf16.msra.mxu0 0
        %2669 = vmatprep.subr.bf16.mxu0 0
        %2670 = vmatpush1.bf16.msra.mxu0 0
        %2671 = vmatprep.subr.bf16.mxu0 0
        %2672 = vmatpush1.bf16.msra.mxu0 0
        %2673 = vmatprep.subr.bf16.mxu0 0
        %2674 = vmatpush1.bf16.msra.mxu0 0
        %2675 = vmatprep.subr.bf16.mxu0 0
        %2676 = vmatpush1.bf16.msra.mxu0 0
        %2677 = vmatprep.subr.bf16.mxu0 0
        %2678 = vmatpush1.bf16.msra.mxu0 0
        %2679 = vmatprep.subr.bf16.mxu0 0
        %2680 = vmatpush1.bf16.msra.mxu0 0
        %2681 = vmatprep.subr.bf16.mxu0 0
        %2682 = vmatpush1.bf16.msra.mxu0 %v2665
        %2683 = vmatprep.subr.bf16.mxu0 0
        %2684 = vmatpush2.bf16.msra.mxu0 0
        %2685 = vmatprep.subr.bf16.mxu0 0
        %2686 = vmatpush2.bf16.msra.mxu0 0
        %2687 = vmatprep.subr.bf16.mxu0 0
        %2688 = vmatpush2.bf16.msra.mxu0 0
        %2689 = vmatprep.subr.bf16.mxu0 0
        %2690 = vmatpush2.bf16.msra.mxu0 0
        %2691 = vmatprep.subr.bf16.mxu0 0
        %2692 = vmatpush2.bf16.msra.mxu0 0
        %2693 = vmatprep.subr.bf16.mxu0 0
        %2694 = vmatpush2.bf16.msra.mxu0 0
        %2695 = vmatprep.subr.bf16.mxu0 0
        %2696 = vmatpush2.bf16.msra.mxu0 0
        %2697 = vmatprep.subr.bf16.mxu0 0
        %2698 = vmatpush2.bf16.msra.mxu0 0
        %2699 = vmatprep.mubr.bf16.mxu0 0
        %2700 = vmatmul.mubr.bf16.gmra.mxu0 %v2662
        %v2701 = vpop.f32.mrf.mxu0
        %v2702 = vadd.f32 0.0, %v2701
        %v2703 = vpop.f32.mrf.mxu0
        %v2704 = vpop.f32.mrf.mxu0
        %v2705 = vpop.f32.mrf.mxu0
        %2706 = vdwg.mxu0
        %v2708 = vsel %vm938, %v2613, 0
        %v2711 = vsel %vm2172, %v1206, 0
        %2713 = vmatprep.subr.bf16.mxu0 0
        %2714 = vmatpush1.bf16.msra.mxu0 0
        %2715 = vmatprep.subr.bf16.mxu0 0
        %2716 = vmatpush1.bf16.msra.mxu0 0
        %2717 = vmatprep.subr.bf16.mxu0 0
        %2718 = vmatpush1.bf16.msra.mxu0 0
        %2719 = vmatprep.subr.bf16.mxu0 0
        %2720 = vmatpush1.bf16.msra.mxu0 0
        %2721 = vmatprep.subr.bf16.mxu0 0
        %2722 = vmatpush1.bf16.msra.mxu0 0
        %2723 = vmatprep.subr.bf16.mxu0 0
        %2724 = vmatpush1.bf16.msra.mxu0 0
        %2725 = vmatprep.subr.bf16.mxu0 0
        %2726 = vmatpush1.bf16.msra.mxu0 0
        %2727 = vmatprep.subr.bf16.mxu0 0
        %2728 = vmatpush1.bf16.msra.mxu0 %v2711
        %2729 = vmatprep.subr.bf16.mxu0 0
        %2730 = vmatpush2.bf16.msra.mxu0 0
        %2731 = vmatprep.subr.bf16.mxu0 0
        %2732 = vmatpush2.bf16.msra.mxu0 0
        %2733 = vmatprep.subr.bf16.mxu0 0
        %2734 = vmatpush2.bf16.msra.mxu0 0
        %2735 = vmatprep.subr.bf16.mxu0 0
        %2736 = vmatpush2.bf16.msra.mxu0 0
        %2737 = vmatprep.subr.bf16.mxu0 0
        %2738 = vmatpush2.bf16.msra.mxu0 0
        %2739 = vmatprep.subr.bf16.mxu0 0
        %2740 = vmatpush2.bf16.msra.mxu0 0
        %2741 = vmatprep.subr.bf16.mxu0 0
        %2742 = vmatpush2.bf16.msra.mxu0 0
        %2743 = vmatprep.subr.bf16.mxu0 0
        %2744 = vmatpush2.bf16.msra.mxu0 0
        %2745 = vmatprep.mubr.bf16.mxu0 0
        %2746 = vmatmul.mubr.bf16.gmra.mxu0 %v2708
        %v2747 = vpop.f32.mrf.mxu0
        %v2748 = vadd.f32 0.0, %v2747
        %v2749 = vpop.f32.mrf.mxu0
        %v2750 = vpop.f32.mrf.mxu0
        %v2751 = vpop.f32.mrf.mxu0
        %2752 = vdwg.mxu0
        %v2754 = vsel %vm938, %v2614, 0
        %v2757 = vsel %vm2172, %v1207, 0
        %2759 = vmatprep.subr.bf16.mxu0 0
        %2760 = vmatpush1.bf16.msra.mxu0 0
        %2761 = vmatprep.subr.bf16.mxu0 0
        %2762 = vmatpush1.bf16.msra.mxu0 0
        %2763 = vmatprep.subr.bf16.mxu0 0
        %2764 = vmatpush1.bf16.msra.mxu0 0
        %2765 = vmatprep.subr.bf16.mxu0 0
        %2766 = vmatpush1.bf16.msra.mxu0 0
        %2767 = vmatprep.subr.bf16.mxu0 0
        %2768 = vmatpush1.bf16.msra.mxu0 0
        %2769 = vmatprep.subr.bf16.mxu0 0
        %2770 = vmatpush1.bf16.msra.mxu0 0
        %2771 = vmatprep.subr.bf16.mxu0 0
        %2772 = vmatpush1.bf16.msra.mxu0 0
        %2773 = vmatprep.subr.bf16.mxu0 0
        %2774 = vmatpush1.bf16.msra.mxu0 %v2757
        %2775 = vmatprep.subr.bf16.mxu0 0
        %2776 = vmatpush2.bf16.msra.mxu0 0
        %2777 = vmatprep.subr.bf16.mxu0 0
        %2778 = vmatpush2.bf16.msra.mxu0 0
        %2779 = vmatprep.subr.bf16.mxu0 0
        %2780 = vmatpush2.bf16.msra.mxu0 0
        %2781 = vmatprep.subr.bf16.mxu0 0
        %2782 = vmatpush2.bf16.msra.mxu0 0
        %2783 = vmatprep.subr.bf16.mxu0 0
        %2784 = vmatpush2.bf16.msra.mxu0 0
        %2785 = vmatprep.subr.bf16.mxu0 0
        %2786 = vmatpush2.bf16.msra.mxu0 0
        %2787 = vmatprep.subr.bf16.mxu0 0
        %2788 = vmatpush2.bf16.msra.mxu0 0
        %2789 = vmatprep.subr.bf16.mxu0 0
        %2790 = vmatpush2.bf16.msra.mxu0 0
        %2791 = vmatprep.mubr.bf16.mxu0 0
        %2792 = vmatmul.mubr.bf16.gmra.mxu0 %v2754
        %v2793 = vpop.f32.mrf.mxu0
        %v2794 = vadd.f32 0.0, %v2793
        %v2795 = vpop.f32.mrf.mxu0
        %v2796 = vpop.f32.mrf.mxu0
        %v2797 = vpop.f32.mrf.mxu0
        %2798 = vdwg.mxu0
        %v2807 = vrot.slane %v2257, 7
        %v2808 = vsel %vm2547, %v2807, %v2211
        %v2809 = vrot.slane %v2303, 6
        %v2810 = vsel %vm2550, %v2809, %v2808
        %v2811 = vrot.slane %v2349, 5
        %v2812 = vsel %vm2553, %v2811, %v2810
        %v2813 = vrot.slane %v2395, 4
        %v2814 = vsel %vm2556, %v2813, %v2812
        %v2815 = vrot.slane %v2441, 3
        %v2816 = vsel %vm2559, %v2815, %v2814
        %v2817 = vrot.slane %v2487, 2
        %v2818 = vsel %vm2562, %v2817, %v2816
        %v2819 = vrot.slane %v2533, 1
        %v2820 = vsel %vm2565, %v2819, %v2818
        %v2822 = vadd.f32 %v2656, %v2820
        %2823 = vst.msk [vmem:[#allocation8] sm:$0xff] %vm938, %v2822
        %v2824 = vrot.slane %v2211, 1
        %v2825 = vsel %vm2547, %v2257, %v2824
        %v2826 = vrot.slane %v2303, 7
        %v2827 = vsel %vm2550, %v2826, %v2825
        %v2828 = vrot.slane %v2349, 6
        %v2829 = vsel %vm2553, %v2828, %v2827
        %v2830 = vrot.slane %v2395, 5
        %v2831 = vsel %vm2556, %v2830, %v2829
        %v2832 = vrot.slane %v2441, 4
        %v2833 = vsel %vm2559, %v2832, %v2831
        %v2834 = vrot.slane %v2487, 3
        %v2835 = vsel %vm2562, %v2834, %v2833
        %v2836 = vrot.slane %v2533, 2
        %v2837 = vsel %vm2565, %v2836, %v2835
        %v2839 = vadd.f32 %v2702, %v2837
        %s2840 = scalar_lea.vmem [#allocation8], 8
        %2841 = vst.msk [vmem:[%s2840] sm:$0xff] %vm938, %v2839
        %v2842 = vrot.slane %v2211, 2
        %v2843 = vrot.slane %v2257, 1
        %v2844 = vsel %vm2547, %v2843, %v2842
        %v2845 = vsel %vm2550, %v2303, %v2844
        %v2846 = vrot.slane %v2349, 7
        %v2847 = vsel %vm2553, %v2846, %v2845
        %v2848 = vrot.slane %v2395, 6
        %v2849 = vsel %vm2556, %v2848, %v2847
        %v2850 = vrot.slane %v2441, 5
        %v2851 = vsel %vm2559, %v2850, %v2849
        %v2852 = vrot.slane %v2487, 4
        %v2853 = vsel %vm2562, %v2852, %v2851
        %v2854 = vrot.slane %v2533, 3
        %v2855 = vsel %vm2565, %v2854, %v2853
        %v2857 = vadd.f32 %v2748, %v2855
        %s2858 = scalar_lea.vmem [#allocation8], 16
        %2859 = vst.msk [vmem:[%s2858] sm:$0xff] %vm938, %v2857
        %v2860 = vrot.slane %v2211, 3
        %v2861 = vrot.slane %v2257, 2
        %v2862 = vsel %vm2547, %v2861, %v2860
        %v2863 = vrot.slane %v2303, 1
        %v2864 = vsel %vm2550, %v2863, %v2862
        %v2865 = vsel %vm2553, %v2349, %v2864
        %v2866 = vrot.slane %v2395, 7
        %v2867 = vsel %vm2556, %v2866, %v2865
        %v2868 = vrot.slane %v2441, 6
        %v2869 = vsel %vm2559, %v2868, %v2867
        %v2870 = vrot.slane %v2487, 5
        %v2871 = vsel %vm2562, %v2870, %v2869
        %v2872 = vrot.slane %v2533, 4
        %v2873 = vsel %vm2565, %v2872, %v2871
        %v2875 = vadd.f32 %v2794, %v2873
        %s2876 = scalar_lea.vmem [#allocation8], 24
        %2877 = vst.msk [vmem:[%s2876] sm:$0xff] %vm938, %v2875
        %v2878 = vld [vmem:[#allocation8] sm:$0xff]
        %v2879 = vld [vmem:[#allocation8 + $0x8] sm:$0xff]
        %v2880 = vld [vmem:[#allocation8 + $0x10] sm:$0xff]
        %v2881 = vld [vmem:[#allocation8 + $0x18] sm:$0xff]
        %v2882 = vpack.c.bf16 %v2878, %v2878
        %v2883 = vpack.c.bf16 %v2879, %v2879
        %v2884 = vpack.c.bf16 %v2880, %v2880
        %v2885 = vpack.c.bf16 %v2881, %v2881
        %v2886 = vld [vmem:[#allocation21] sm:$0xf]
        %v2887 = vld [vmem:[#allocation21 + $0x4] sm:$0xf]
        %v2888 = vld [vmem:[#allocation21 + $0x8] sm:$0xf]
        %v2889 = vld [vmem:[#allocation21 + $0xc] sm:$0xf]
        %v2891 = vsel %vm938, %v2882, 0
        %v2894 = vsel %vm2172, %v2886, 0
        %2896 = vmatprep.subr.bf16.mxu0 0
        %2897 = vmatpush1.bf16.msra.mxu0 0
        %2898 = vmatprep.subr.bf16.mxu0 0
        %2899 = vmatpush1.bf16.msra.mxu0 0
        %2900 = vmatprep.subr.bf16.mxu0 0
        %2901 = vmatpush1.bf16.msra.mxu0 0
        %2902 = vmatprep.subr.bf16.mxu0 0
        %2903 = vmatpush1.bf16.msra.mxu0 0
        %2904 = vmatprep.subr.bf16.mxu0 0
        %2905 = vmatpush1.bf16.msra.mxu0 0
        %2906 = vmatprep.subr.bf16.mxu0 0
        %2907 = vmatpush1.bf16.msra.mxu0 0
        %2908 = vmatprep.subr.bf16.mxu0 0
        %2909 = vmatpush1.bf16.msra.mxu0 0
        %2910 = vmatprep.subr.bf16.mxu0 0
        %2911 = vmatpush1.bf16.msra.mxu0 %v2894
        %2912 = vmatprep.subr.bf16.mxu0 0
        %2913 = vmatpush2.bf16.msra.mxu0 0
        %2914 = vmatprep.subr.bf16.mxu0 0
        %2915 = vmatpush2.bf16.msra.mxu0 0
        %2916 = vmatprep.subr.bf16.mxu0 0
        %2917 = vmatpush2.bf16.msra.mxu0 0
        %2918 = vmatprep.subr.bf16.mxu0 0
        %2919 = vmatpush2.bf16.msra.mxu0 0
        %2920 = vmatprep.subr.bf16.mxu0 0
        %2921 = vmatpush2.bf16.msra.mxu0 0
        %2922 = vmatprep.subr.bf16.mxu0 0
        %2923 = vmatpush2.bf16.msra.mxu0 0
        %2924 = vmatprep.subr.bf16.mxu0 0
        %2925 = vmatpush2.bf16.msra.mxu0 0
        %2926 = vmatprep.subr.bf16.mxu0 0
        %2927 = vmatpush2.bf16.msra.mxu0 0
        %2928 = vmatprep.mubr.bf16.mxu0 0
        %2929 = vmatmul.mubr.bf16.gmra.mxu0 %v2891
        %v2930 = vpop.f32.mrf.mxu0
        %v2931 = vadd.f32 0.0, %v2930
        %v2932 = vpop.f32.mrf.mxu0
        %v2933 = vpop.f32.mrf.mxu0
        %v2934 = vpop.f32.mrf.mxu0
        %2935 = vdwg.mxu0
        %v2937 = vsel %vm938, %v2883, 0
        %v2940 = vsel %vm2172, %v2887, 0
        %2942 = vmatprep.subr.bf16.mxu0 0
        %2943 = vmatpush1.bf16.msra.mxu0 0
        %2944 = vmatprep.subr.bf16.mxu0 0
        %2945 = vmatpush1.bf16.msra.mxu0 0
        %2946 = vmatprep.subr.bf16.mxu0 0
        %2947 = vmatpush1.bf16.msra.mxu0 0
        %2948 = vmatprep.subr.bf16.mxu0 0
        %2949 = vmatpush1.bf16.msra.mxu0 0
        %2950 = vmatprep.subr.bf16.mxu0 0
        %2951 = vmatpush1.bf16.msra.mxu0 0
        %2952 = vmatprep.subr.bf16.mxu0 0
        %2953 = vmatpush1.bf16.msra.mxu0 0
        %2954 = vmatprep.subr.bf16.mxu0 0
        %2955 = vmatpush1.bf16.msra.mxu0 0
        %2956 = vmatprep.subr.bf16.mxu0 0
        %2957 = vmatpush1.bf16.msra.mxu0 %v2940
        %2958 = vmatprep.subr.bf16.mxu0 0
        %2959 = vmatpush2.bf16.msra.mxu0 0
        %2960 = vmatprep.subr.bf16.mxu0 0
        %2961 = vmatpush2.bf16.msra.mxu0 0
        %2962 = vmatprep.subr.bf16.mxu0 0
        %2963 = vmatpush2.bf16.msra.mxu0 0
        %2964 = vmatprep.subr.bf16.mxu0 0
        %2965 = vmatpush2.bf16.msra.mxu0 0
        %2966 = vmatprep.subr.bf16.mxu0 0
        %2967 = vmatpush2.bf16.msra.mxu0 0
        %2968 = vmatprep.subr.bf16.mxu0 0
        %2969 = vmatpush2.bf16.msra.mxu0 0
        %2970 = vmatprep.subr.bf16.mxu0 0
        %2971 = vmatpush2.bf16.msra.mxu0 0
        %2972 = vmatprep.subr.bf16.mxu0 0
        %2973 = vmatpush2.bf16.msra.mxu0 0
        %2974 = vmatprep.mubr.bf16.mxu0 0
        %2975 = vmatmul.mubr.bf16.gmra.mxu0 %v2937
        %v2976 = vpop.f32.mrf.mxu0
        %v2977 = vadd.f32 0.0, %v2976
        %v2978 = vpop.f32.mrf.mxu0
        %v2979 = vpop.f32.mrf.mxu0
        %v2980 = vpop.f32.mrf.mxu0
        %2981 = vdwg.mxu0
        %v2983 = vsel %vm938, %v2884, 0
        %v2986 = vsel %vm2172, %v2888, 0
        %2988 = vmatprep.subr.bf16.mxu0 0
        %2989 = vmatpush1.bf16.msra.mxu0 0
        %2990 = vmatprep.subr.bf16.mxu0 0
        %2991 = vmatpush1.bf16.msra.mxu0 0
        %2992 = vmatprep.subr.bf16.mxu0 0
        %2993 = vmatpush1.bf16.msra.mxu0 0
        %2994 = vmatprep.subr.bf16.mxu0 0
        %2995 = vmatpush1.bf16.msra.mxu0 0
        %2996 = vmatprep.subr.bf16.mxu0 0
        %2997 = vmatpush1.bf16.msra.mxu0 0
        %2998 = vmatprep.subr.bf16.mxu0 0
        %2999 = vmatpush1.bf16.msra.mxu0 0
        %3000 = vmatprep.subr.bf16.mxu0 0
        %3001 = vmatpush1.bf16.msra.mxu0 0
        %3002 = vmatprep.subr.bf16.mxu0 0
        %3003 = vmatpush1.bf16.msra.mxu0 %v2986
        %3004 = vmatprep.subr.bf16.mxu0 0
        %3005 = vmatpush2.bf16.msra.mxu0 0
        %3006 = vmatprep.subr.bf16.mxu0 0
        %3007 = vmatpush2.bf16.msra.mxu0 0
        %3008 = vmatprep.subr.bf16.mxu0 0
        %3009 = vmatpush2.bf16.msra.mxu0 0
        %3010 = vmatprep.subr.bf16.mxu0 0
        %3011 = vmatpush2.bf16.msra.mxu0 0
        %3012 = vmatprep.subr.bf16.mxu0 0
        %3013 = vmatpush2.bf16.msra.mxu0 0
        %3014 = vmatprep.subr.bf16.mxu0 0
        %3015 = vmatpush2.bf16.msra.mxu0 0
        %3016 = vmatprep.subr.bf16.mxu0 0
        %3017 = vmatpush2.bf16.msra.mxu0 0
        %3018 = vmatprep.subr.bf16.mxu0 0
        %3019 = vmatpush2.bf16.msra.mxu0 0
        %3020 = vmatprep.mubr.bf16.mxu0 0
        %3021 = vmatmul.mubr.bf16.gmra.mxu0 %v2983
        %v3022 = vpop.f32.mrf.mxu0
        %v3023 = vadd.f32 0.0, %v3022
        %v3024 = vpop.f32.mrf.mxu0
        %v3025 = vpop.f32.mrf.mxu0
        %v3026 = vpop.f32.mrf.mxu0
        %3027 = vdwg.mxu0
        %v3029 = vsel %vm938, %v2885, 0
        %v3032 = vsel %vm2172, %v2889, 0
        %3034 = vmatprep.subr.bf16.mxu0 0
        %3035 = vmatpush1.bf16.msra.mxu0 0
        %3036 = vmatprep.subr.bf16.mxu0 0
        %3037 = vmatpush1.bf16.msra.mxu0 0
        %3038 = vmatprep.subr.bf16.mxu0 0
        %3039 = vmatpush1.bf16.msra.mxu0 0
        %3040 = vmatprep.subr.bf16.mxu0 0
        %3041 = vmatpush1.bf16.msra.mxu0 0
        %3042 = vmatprep.subr.bf16.mxu0 0
        %3043 = vmatpush1.bf16.msra.mxu0 0
        %3044 = vmatprep.subr.bf16.mxu0 0
        %3045 = vmatpush1.bf16.msra.mxu0 0
        %3046 = vmatprep.subr.bf16.mxu0 0
        %3047 = vmatpush1.bf16.msra.mxu0 0
        %3048 = vmatprep.subr.bf16.mxu0 0
        %3049 = vmatpush1.bf16.msra.mxu0 %v3032
        %3050 = vmatprep.subr.bf16.mxu0 0
        %3051 = vmatpush2.bf16.msra.mxu0 0
        %3052 = vmatprep.subr.bf16.mxu0 0
        %3053 = vmatpush2.bf16.msra.mxu0 0
        %3054 = vmatprep.subr.bf16.mxu0 0
        %3055 = vmatpush2.bf16.msra.mxu0 0
        %3056 = vmatprep.subr.bf16.mxu0 0
        %3057 = vmatpush2.bf16.msra.mxu0 0
        %3058 = vmatprep.subr.bf16.mxu0 0
        %3059 = vmatpush2.bf16.msra.mxu0 0
        %3060 = vmatprep.subr.bf16.mxu0 0
        %3061 = vmatpush2.bf16.msra.mxu0 0
        %3062 = vmatprep.subr.bf16.mxu0 0
        %3063 = vmatpush2.bf16.msra.mxu0 0
        %3064 = vmatprep.subr.bf16.mxu0 0
        %3065 = vmatpush2.bf16.msra.mxu0 0
        %3066 = vmatprep.mubr.bf16.mxu0 0
        %3067 = vmatmul.mubr.bf16.gmra.mxu0 %v3029
        %v3068 = vpop.f32.mrf.mxu0
        %v3069 = vadd.f32 0.0, %v3068
        %v3070 = vpop.f32.mrf.mxu0
        %v3071 = vpop.f32.mrf.mxu0
        %v3072 = vpop.f32.mrf.mxu0
        %3073 = vdwg.mxu0
        %v3074 = vsel %vm767, %v2931, 0.0
        %v3075 = vsel %vm767, %v2977, 0.0
        %v3076 = vadd.f32 %v3074, %v3075
        %v3077 = vsel %vm767, %v3023, 0.0
        %v3078 = vadd.f32 %v3076, %v3077
        %v3079 = vsel %vm767, %v3069, 0.0
        %v3080 = vadd.f32 %v3078, %v3079
        %v3081 = vld [vmem:[#allocation23] sm:$0x1]
        %v3083 = vlaneseq
        %v3084 = vshrl.u32 %v3083, 7
        %v3085 = vsub.s32 0, %v3084
        %v3086 = vrot.slane %v3081, %v3085
        %v3088 = vadd.f32 %v3080, %v3086
        %v3089 = vadd.f32 %v742, %v3088
        %v3090 = vsel %vm767, %v3089, 0.0
        %3091 = vadd.xlane.f32.xlu0 %v3090
        %v3092 = vpop.xlane.xlu0 %3091
        %v3093 = vrcp.pop 32.0
        %v3094 = vmul.f32 %v3092, %v3093
        %v3095 = vsub.f32 %v3089, %v3094
        %v3096 = vmul.f32 %v3095, %v3095
        %v3097 = vsel %vm767, %v3096, 0.0
        %3098 = vadd.xlane.f32.xlu0 %v3097
        %v3099 = vpop.xlane.xlu0 %3098
        %v3100 = vmul.f32 %v3099, %v3093
        %v3101 = vadd.f32 %v3100, 1e-05
        %v3102 = vrsqrt.pop %v3101
        %v3103 = vmul.f32 %v3095, %v3102
        %v3104 = vld [vmem:[%s11] sm:$0x1]
        %v3106 = vlaneseq
        %v3107 = vshrl.u32 %v3106, 7
        %v3108 = vsub.s32 0, %v3107
        %v3109 = vrot.slane %v3104, %v3108
        %v3111 = vmul.f32 %v3103, %v3109
        %v3112 = vld [vmem:[%s12] sm:$0x1]
        %v3114 = vlaneseq
        %v3115 = vshrl.u32 %v3114, 7
        %v3116 = vsub.s32 0, %v3115
        %v3117 = vrot.slane %v3112, %v3116
        %v3119 = vadd.f32 %v3111, %v3117
        %v3120 = vpack.c.bf16 %v3119, %v3119
        %v3121 = vld [vmem:[#allocation24] sm:$0xf]
        %v3122 = vld [vmem:[#allocation24 + $0x4] sm:$0xf]
        %v3123 = vld [vmem:[#allocation24 + $0x8] sm:$0xf]
        %v3124 = vld [vmem:[#allocation24 + $0xc] sm:$0xf]
        %v3125 = vld [vmem:[%s14] sm:$0x1]
        %v3127 = vlaneseq
        %v3128 = vshrl.u32 %v3127, 7
        %v3129 = vsub.s32 0, %v3128
        %v3130 = vrot.slane %v3125, %v3129
        %v3136 = vunpack.c.l.b16 %v3121
        %v3137 = vunpack.c.l.b16 %v3122
        %v3138 = vunpack.c.l.b16 %v3123
        %v3139 = vunpack.c.l.b16 %v3124
        %v3140 = vpack.c.b16 %v3137, %v3136
        %v3141 = vpack.c.b16 %v3139, %v3138
        %v3145 = vsel %vm767, %v3120, 0
        %3147 = vmatprep.subr.bf16.mxu0 0
        %3148 = vmatpush1.bf16.msra.mxu0 0
        %3149 = vmatprep.subr.bf16.mxu0 0
        %3150 = vmatpush1.bf16.msra.mxu0 0
        %3151 = vmatprep.subr.bf16.mxu0 0
        %3152 = vmatpush1.bf16.msra.mxu0 0
        %3153 = vmatprep.subr.bf16.mxu0 0
        %3154 = vmatpush1.bf16.msra.mxu0 0
        %3155 = vmatprep.subr.bf16.mxu0 0
        %3156 = vmatpush1.bf16.msra.mxu0 0
        %3157 = vmatprep.subr.bf16.mxu0 0
        %3158 = vmatpush1.bf16.msra.mxu0 0
        %3159 = vmatprep.subr.bf16.mxu0 0
        %3160 = vmatpush1.bf16.msra.mxu0 %v3141
        %3161 = vmatprep.subr.bf16.mxu0 0
        %3162 = vmatpush1.bf16.msra.mxu0 %v3140
        %3163 = vmatprep.subr.bf16.mxu0 0
        %3164 = vmatpush2.bf16.msra.mxu0 0
        %3165 = vmatprep.subr.bf16.mxu0 0
        %3166 = vmatpush2.bf16.msra.mxu0 0
        %3167 = vmatprep.subr.bf16.mxu0 0
        %3168 = vmatpush2.bf16.msra.mxu0 0
        %3169 = vmatprep.subr.bf16.mxu0 0
        %3170 = vmatpush2.bf16.msra.mxu0 0
        %3171 = vmatprep.subr.bf16.mxu0 0
        %3172 = vmatpush2.bf16.msra.mxu0 0
        %3173 = vmatprep.subr.bf16.mxu0 0
        %3174 = vmatpush2.bf16.msra.mxu0 0
        %3175 = vmatprep.subr.bf16.mxu0 0
        %3176 = vmatpush2.bf16.msra.mxu0 0
        %3177 = vmatprep.subr.bf16.mxu0 0
        %3178 = vmatpush2.bf16.msra.mxu0 0
        %3179 = vmatprep.mubr.bf16.mxu0 0
        %3180 = vmatmul.mubr.bf16.gmra.mxu0 %v3145
        %v3181 = vpop.f32.mrf.mxu0
        %v3182 = vadd.f32 %v3130, %v3181
        %v3183 = vpop.f32.mrf.mxu0
        %v3184 = vpop.f32.mrf.mxu0
        %v3185 = vpop.f32.mrf.mxu0
        %3186 = vdwg.mxu0
        %v3187 = vmax.f32 %v3182, 0.0
        %v3188 = vpack.c.bf16 %v3187, %v3187
        %v3189 = vld [vmem:[%s15] sm:$0xf]
        %v3190 = vld [vmem:[%s15 + $0x4] sm:$0xf]
        %v3191 = vld [vmem:[%s15 + $0x8] sm:$0xf]
        %v3192 = vld [vmem:[%s15 + $0xc] sm:$0xf]
        %v3193 = vld [vmem:[%s15 + $0x10] sm:$0xf]
        %v3194 = vld [vmem:[%s15 + $0x14] sm:$0xf]
        %v3195 = vld [vmem:[%s15 + $0x18] sm:$0xf]
        %v3196 = vld [vmem:[%s15 + $0x1c] sm:$0xf]
        %v3197 = vld [vmem:[%s16] sm:$0x1]
        %v3199 = vlaneseq
        %v3200 = vshrl.u32 %v3199, 7
        %v3201 = vsub.s32 0, %v3200
        %v3202 = vrot.slane %v3197, %v3201
        %v3212 = vunpack.c.l.b16 %v3189
        %v3213 = vunpack.c.l.b16 %v3190
        %v3214 = vunpack.c.l.b16 %v3191
        %v3215 = vunpack.c.l.b16 %v3192
        %v3216 = vunpack.c.l.b16 %v3193
        %v3217 = vunpack.c.l.b16 %v3194
        %v3218 = vunpack.c.l.b16 %v3195
        %v3219 = vunpack.c.l.b16 %v3196
        %v3220 = vpack.c.b16 %v3213, %v3212
        %v3221 = vpack.c.b16 %v3215, %v3214
        %v3222 = vpack.c.b16 %v3217, %v3216
        %v3223 = vpack.c.b16 %v3219, %v3218
        %vm3228 = vcmask 523264
        %v3230 = vsel %vm3228, %v3188, 0
        %3232 = vmatprep.subr.bf16.mxu0 0
        %3233 = vmatpush1.bf16.msra.mxu0 0
        %3234 = vmatprep.subr.bf16.mxu0 0
        %3235 = vmatpush1.bf16.msra.mxu0 0
        %3236 = vmatprep.subr.bf16.mxu0 0
        %3237 = vmatpush1.bf16.msra.mxu0 0
        %3238 = vmatprep.subr.bf16.mxu0 0
        %3239 = vmatpush1.bf16.msra.mxu0 0
        %3240 = vmatprep.subr.bf16.mxu0 0
        %3241 = vmatpush1.bf16.msra.mxu0 %v3223
        %3242 = vmatprep.subr.bf16.mxu0 0
        %3243 = vmatpush1.bf16.msra.mxu0 %v3222
        %3244 = vmatprep.subr.bf16.mxu0 0
        %3245 = vmatpush1.bf16.msra.mxu0 %v3221
        %3246 = vmatprep.subr.bf16.mxu0 0
        %3247 = vmatpush1.bf16.msra.mxu0 %v3220
        %3248 = vmatprep.subr.bf16.mxu0 0
        %3249 = vmatpush2.bf16.msra.mxu0 0
        %3250 = vmatprep.subr.bf16.mxu0 0
        %3251 = vmatpush2.bf16.msra.mxu0 0
        %3252 = vmatprep.subr.bf16.mxu0 0
        %3253 = vmatpush2.bf16.msra.mxu0 0
        %3254 = vmatprep.subr.bf16.mxu0 0
        %3255 = vmatpush2.bf16.msra.mxu0 0
        %3256 = vmatprep.subr.bf16.mxu0 0
        %3257 = vmatpush2.bf16.msra.mxu0 0
        %3258 = vmatprep.subr.bf16.mxu0 0
        %3259 = vmatpush2.bf16.msra.mxu0 0
        %3260 = vmatprep.subr.bf16.mxu0 0
        %3261 = vmatpush2.bf16.msra.mxu0 0
        %3262 = vmatprep.subr.bf16.mxu0 0
        %3263 = vmatpush2.bf16.msra.mxu0 0
        %3264 = vmatprep.mubr.bf16.mxu0 0
        %3265 = vmatmul.mubr.bf16.gmra.mxu0 %v3230
        %v3266 = vpop.f32.mrf.mxu0
        %v3267 = vadd.f32 %v3202, %v3266
        %v3268 = vpop.f32.mrf.mxu0
        %v3269 = vpop.f32.mrf.mxu0
        %v3270 = vpop.f32.mrf.mxu0
        %3271 = vdwg.mxu0
        %v3272 = vadd.f32 %v3119, %v3267
        %v3273 = vsel %vm767, %v3272, 0.0
        %3274 = vadd.xlane.f32.xlu0 %v3273
        %v3275 = vpop.xlane.xlu0 %3274
        %v3276 = vmul.f32 %v3275, %v3093
        %v3277 = vsub.f32 %v3272, %v3276
        %v3278 = vmul.f32 %v3277, %v3277
        %v3279 = vsel %vm767, %v3278, 0.0
        %3280 = vadd.xlane.f32.xlu0 %v3279
        %v3281 = vpop.xlane.xlu0 %3280
        %v3282 = vmul.f32 %v3281, %v3093
        %v3283 = vadd.f32 %v3282, 1e-05
        %v3284 = vrsqrt.pop %v3283
        %v3285 = vmul.f32 %v3277, %v3284
        %v3286 = vld [vmem:[%s17] sm:$0x1]
        %v3288 = vlaneseq
        %v3289 = vshrl.u32 %v3288, 7
        %v3290 = vsub.s32 0, %v3289
        %v3291 = vrot.slane %v3286, %v3290
        %v3293 = vmul.f32 %v3285, %v3291
        %v3294 = vld [vmem:[%s18] sm:$0x1]
        %v3296 = vlaneseq
        %v3297 = vshrl.u32 %v3296, 7
        %v3298 = vsub.s32 0, %v3297
        %v3299 = vrot.slane %v3294, %v3298
        %v3301 = vadd.f32 %v3293, %v3299
        %3302 = vst.msk [vmem:[%s740] sm:$0xff] %vm767, %v3301
        %s3303 = sand.u32 %s453, 1
        %s3304 = scalar_lea.sflag [#allocation11], %s3303
        %s3305 = sand.u32 %s453, 1
        %s3306 = smul.addr %s3305, 8
        %s3307 = scalar_lea.vmem [#allocation26], %s3306
        // Predicated region
        $region137: #{tpu_custom_call.1} parent=95 // pred_check
          %p3308 = pneg %p463
        $region138: #{tpu_custom_call.1} parent=95 // pred_check_branch
          %3310 = sbr.rel (%p3308) target = $region140
        $region139: #{tpu_custom_call.1} parent=95 // pred_region
          %s3312 = ssub.s32 128, 128
          %3313 = vsyncadd %s3304, %s3312
          %s3314 = smul.addr %s41, 128
          %s3315 = scalar_lea.hbm %s19, %s3314
          %s3317 = sshll.u32 %s3307, 4
          %s3318 = int_to_ptr.vmem [resolvable:$true] %s3317
          %3320 = dma.vmem_to_hbm [thread:$0]  %s3318, 128, %s3315, %s3304
        $region140: #{tpu_custom_call.1} parent=95 // pred_fallthru
          _
      $region96: #{tpu_custom_call.1} parent=5 // pred_fallthru
        _
      %p3321 = scmp.le.s32.totalorder 2, %s36
      // Predicated region
      $region141: #{tpu_custom_call.1} parent=5 // pred_check
        %p3322 = pneg %p3321
      $region142: #{tpu_custom_call.1} parent=5 // pred_check_branch
        %3324 = sbr.rel (%p3322) target = $region144
      $region143: #{tpu_custom_call.1} parent=5 // pred_region
        %s3325 = ssub.s32 %s36, 2
        // Predicated region
        $region145: #{tpu_custom_call.1} parent=143 // pred_check
          %p3326 = pneg %p469
        $region146: #{tpu_custom_call.1} parent=143 // pred_check_branch
          %3328 = sbr.rel (%p3326) target = $region148
        $region147: #{tpu_custom_call.1} parent=143 // pred_region
          %s3329 = sand.u32 %s454, 1
          %s3330 = scalar_lea.sflag [#allocation11], %s3329
          %s3331 = sand.u32 %s454, 1
          %s3332 = smul.addr %s3331, 8
          %s3333 = scalar_lea.vmem [#allocation26], %s3332
          %3334 = dma.done %s3330, 128
        $region148: #{tpu_custom_call.1} parent=143 // pred_fallthru
          _
      $region144: #{tpu_custom_call.1} parent=5 // pred_fallthru
        _
    $region6: #{tpu_custom_call.1} parent=1 // loop_footer
      %s40 = sadd.s32 1, %s36
    $region7: #{tpu_custom_call.1} parent=1 // loop_footer_branch
      %35 = sbr.rel target = $region3
    $region8: #{tpu_custom_call.1} parent=1 // loop_exit
      _
    %3335 = vsyncpa [#allocation10], 1
    %s3336 = scalar_lea.sflag [#allocation10], 1
    %3337 = vsyncpa %s3336, 1
    %3338 = vsyncpa [#allocation13], 1
    %3339 = vsyncpa [#allocation16], 1
    %3340 = vsyncpa [#allocation19], 1
    %3341 = vsyncpa [#allocation22], 1
    %3342 = vsyncpa [#allocation25], 1
    %3343 = vsyncpa [#allocation11], 1
    %s3344 = scalar_lea.sflag [#allocation11], 1
    %3345 = vsyncpa %s3344, 1

</llo_original>
